<compile_context>
chip_gen: v7x
topology: tpu7x:2x2x1
jax: 0.10.0
libtpu: 0.0.40
codegen_flags: <defaults>
</compile_context>

<pallas_src>
import functools

import jax
import jax.numpy as jnp
from jax.experimental import pallas as pl
from jax.experimental.pallas import tpu as pltpu

KSIZE = 7
PAD = 3      # conv padding (KSIZE // 2)
LPAD = 8     # left column padding of the scratch (sublane-aligned interior store)
RPAD = 8     # right column padding (>= PAD, multiple of 8)


def _sepconv_kernel(x_ref, w1_ref, s_ref, b_ref, dw_ref, w2_ref, o_ref,
                    mid_ref, *, tile_h):
    # x_ref : (1, tile_h + 2*PAD, W, dim)  bf16  input strip incl. row halo
    # w1_ref: (dim, med)                   bf16  (resident)
    # s_ref : (1, 1) f32 ; b_ref: (1, 1) f32     StarReLU scale / bias
    # dw_ref: (KSIZE*KSIZE, med)           f32   depthwise weights (resident)
    # w2_ref: (med, dim)                   bf16  (resident)
    # o_ref : (tile_h, W, dim)             f32   output strip
    # mid_ref: (tile_h + 2*PAD, LPAD + W + RPAD, med) f32 VMEM scratch
    i = pl.program_id(0)
    n = pl.num_programs(0)

    _, S, W, dim = x_ref.shape
    med = w1_ref.shape[1]
    WPAD = LPAD + W + RPAD

    # ---- pwconv1 (MXU, bf16 x bf16 -> f32) + StarReLU (VPU, f32) ----
    x2d = x_ref[0].reshape(S * W, dim)
    h = jnp.dot(x2d, w1_ref[...], preferred_element_type=jnp.float32)
    h = s_ref[...] * jnp.square(jnp.maximum(h, 0.0)) + b_ref[...]

    # ---- stage activated strip in the padded scratch ----
    # interior store is sublane-aligned (column offset LPAD = 8)
    mid_ref[:, pl.ds(LPAD, W), :] = h.reshape(S, W, med)
    # zero only the halo columns (never the whole scratch)
    mid_ref[:, pl.ds(0, LPAD), :] = jnp.zeros((S, LPAD, med), jnp.float32)
    mid_ref[:, pl.ds(LPAD + W, RPAD), :] = jnp.zeros((S, RPAD, med), jnp.float32)

    # rows of the intermediate outside the image must be zero (the host-side
    # zero rows of x yield StarReLU(0) = bias there, not 0) — boundary strips only.
    @pl.when(i == 0)
    def _():
        mid_ref[pl.ds(0, PAD), :, :] = jnp.zeros((PAD, WPAD, med), jnp.float32)

    @pl.when(i == n - 1)
    def _():
        mid_ref[pl.ds(tile_h + PAD, PAD), :, :] = jnp.zeros(
            (PAD, WPAD, med), jnp.float32)

    # ---- depthwise 7x7 conv (VPU, f32) ----
    dwv = dw_ref[...]                                  # (49, med): loaded once
    acc = jnp.zeros((tile_h, W, med), jnp.float32)
    for kh in range(KSIZE):
        band = mid_ref[pl.ds(kh, tile_h), :, :]        # (tile_h, WPAD, med): 1 load / kh
        for kw in range(KSIZE):
            off = LPAD - PAD + kw
            tap = band[:, off:off + W, :]              # static value slice
            acc = acc + tap * dwv[kh * KSIZE + kw]

    # ---- pwconv2 (MXU, bf16 x bf16 -> f32), strip-wise ----
    out = jnp.dot(acc.reshape(tile_h * W, med).astype(jnp.bfloat16),
                  w2_ref[...], preferred_element_type=jnp.float32)
    o_ref[...] = out.reshape(tile_h, W, dim).astype(o_ref.dtype)


def sepconv(x, w1, star_scale, star_bias, dw, w2, *, tile_h=None):
    """x: (H, W, dim) f32; w1: (dim, med); dw: (7, 7, med); w2: (med, dim)."""
    H, W, dim = x.shape
    med = w1.shape[1]

    if tile_h is None:
        tile_h = 8 if H % 8 == 0 else H
    assert H % tile_h == 0, "H must be divisible by tile_h"
    num_strips = H // tile_h
    S = tile_h + 2 * PAD
    WPAD = LPAD + W + RPAD

    # Host prep: zero-pad rows and materialise overlapping halo strips so the
    # BlockSpec pipeline can prefetch strip i+1 while strip i is computed.
    x_pad = jnp.pad(x, ((PAD, PAD), (0, 0), (0, 0)))
    rows = jnp.arange(num_strips)[:, None] * tile_h + jnp.arange(S)[None, :]
    x_strips = x_pad[rows].astype(jnp.bfloat16)        # (num_strips, S, W, dim)

    w1_b = w1.astype(jnp.bfloat16)
    w2_b = w2.astype(jnp.bfloat16)
    dw_flat = dw.reshape(KSIZE * KSIZE, med).astype(jnp.float32)
    s11 = jnp.asarray(star_scale, jnp.float32).reshape(1, 1)
    b11 = jnp.asarray(star_bias, jnp.float32).reshape(1, 1)

    # VMEM budget: double-buffered x/o blocks + resident weights + scratch + headroom.
    vmem_bytes = (
        2 * S * W * dim * 2            # x strip (bf16), double-buffered
        + 2 * tile_h * W * dim * 4     # out strip (f32), double-buffered
        + dim * med * 2 + med * dim * 2 + KSIZE * KSIZE * med * 4 + 8
        + S * WPAD * med * 4           # padded intermediate scratch
        + 4 * tile_h * W * med * 4     # accumulator / temporaries headroom
    )
    vmem_limit = int(min(64 * 1024 * 1024, max(16 * 1024 * 1024, 2 * vmem_bytes)))

    kernel = functools.partial(_sepconv_kernel, tile_h=tile_h)

    return pl.pallas_call(
        kernel,
        out_shape=jax.ShapeDtypeStruct((H, W, dim), x.dtype),
        grid_spec=pltpu.PrefetchScalarGridSpec(
            num_scalar_prefetch=0,
            grid=(num_strips,),
            in_specs=[
                pl.BlockSpec((1, S, W, dim), lambda i: (i, 0, 0, 0)),  # x strip
                pl.BlockSpec((dim, med), lambda i: (0, 0)),            # w1 (resident)
                pl.BlockSpec((1, 1), lambda i: (0, 0)),                # StarReLU scale
                pl.BlockSpec((1, 1), lambda i: (0, 0)),                # StarReLU bias
                pl.BlockSpec((KSIZE * KSIZE, med), lambda i: (0, 0)),  # dw (resident)
                pl.BlockSpec((med, dim), lambda i: (0, 0)),            # w2 (resident)
            ],
            out_specs=pl.BlockSpec((tile_h, W, dim), lambda i: (i, 0, 0)),
            scratch_shapes=[pltpu.VMEM((S, WPAD, med), jnp.float32)],
        ),
        compiler_params=pltpu.CompilerParams(
            dimension_semantics=("parallel",),
            vmem_limit_bytes=vmem_limit,
        ),
    )(x_strips, w1_b, s11, b11, dw_flat, w2_b)


def sepconv_reference(x, w1, star_scale, star_bias, dw, w2):
    """Pure-JAX reference mirroring the PyTorch forward (same bf16-in / f32-acc
    matmul numerics as the kernel)."""
    H, W, dim = x.shape
    med = w1.shape[1]
    h = jnp.dot(x.astype(jnp.bfloat16).reshape(H * W, dim),
                w1.astype(jnp.bfloat16),
                preferred_element_type=jnp.float32).reshape(H, W, med)
    h = star_scale[0] * jnp.square(jnp.maximum(h, 0.0)) + star_bias[0]
    y = jax.lax.conv_general_dilated(
        h[None], dw[:, :, None, :], window_strides=(1, 1),
        padding=((PAD, PAD), (PAD, PAD)),
        dimension_numbers=("NHWC", "HWIO", "NHWC"),
        feature_group_count=med)[0]
    out = jnp.dot(y.reshape(H * W, med).astype(jnp.bfloat16),
                  w2.astype(jnp.bfloat16),
                  preferred_element_type=jnp.float32)
    return out.reshape(H, W, dim)


if __name__ == "__main__":
    H, W, dim = 16, 16, 16
    expansion_ratio = 2
    med = expansion_ratio * dim

    key = jax.random.PRNGKey(0)
    kx, k1, k2, k3 = jax.random.split(key, 4)

    x = jax.random.normal(kx, (H, W, dim), dtype=jnp.float32)
    # Linear weights stored transposed (in_features, out_features)
    w1 = jax.random.normal(k1, (dim, med), dtype=jnp.float32) * (1.0 / dim ** 0.5)
    w2 = jax.random.normal(k2, (med, dim), dtype=jnp.float32) * (1.0 / med ** 0.5)
    # Depthwise conv weight, channels-last (kh, kw, med)
    dw = jax.random.normal(k3, (KSIZE, KSIZE, med), dtype=jnp.float32) * (1.0 / KSIZE)
    # StarReLU scalar parameters (non-zero bias exercises the conv zero-padding path)
    star_scale = jnp.array([0.8944], dtype=jnp.float32)
    star_bias = jnp.array([-0.4472], dtype=jnp.float32)

    out = jax.jit(sepconv)(x, w1, star_scale, star_bias, dw, w2)
    out = jax.block_until_ready(out)

    ref = sepconv_reference(x, w1, star_scale, star_bias, dw, w2)
    assert out.shape == (H, W, dim)
    assert jnp.allclose(out, ref, atol=1e-2, rtol=1e-2), (
        f"mismatch vs reference, max abs diff = {float(jnp.max(jnp.abs(out - ref)))}")

    print("KERNEL_OK")
</pallas_src>

<mosaic_0001>
module attributes {stable_mosaic.version = 11 : i64} {
  func.func @_sepconv_kernel(%arg0: i32, %arg1: memref<1x14x16x16xbf16, #tpu.memory_space<vmem>>, %arg2: memref<16x32xbf16, #tpu.memory_space<vmem>>, %arg3: memref<1x1xf32, #tpu.memory_space<vmem>>, %arg4: memref<1x1xf32, #tpu.memory_space<vmem>>, %arg5: memref<49x32xf32, #tpu.memory_space<vmem>>, %arg6: memref<32x16xbf16, #tpu.memory_space<vmem>>, %arg7: memref<8x16x16xf32, #tpu.memory_space<vmem>>, %arg8: memref<14x32x32xf32, #tpu.memory_space<vmem>>) attributes {dimension_semantics = [#tpu.dimension_semantics<parallel>], iteration_bounds = array<i64: 2>, scalar_prefetch = 0 : i64, scratch_operands = 1 : i64, tpu.core_type = #tpu.core_type<tc>, window_params = [{transform_indices = @transform_0, window_bounds = array<i64: 1, 14, 16, 16>}, {pipeline_mode = #tpu.pipeline_mode<synchronous>, transform_indices = @transform_1, window_bounds = array<i64: 16, 32>}, {pipeline_mode = #tpu.pipeline_mode<synchronous>, transform_indices = @transform_2, window_bounds = array<i64: 1, 1>}, {pipeline_mode = #tpu.pipeline_mode<synchronous>, transform_indices = @transform_3, window_bounds = array<i64: 1, 1>}, {pipeline_mode = #tpu.pipeline_mode<synchronous>, transform_indices = @transform_4, window_bounds = array<i64: 49, 32>}, {pipeline_mode = #tpu.pipeline_mode<synchronous>, transform_indices = @transform_5, window_bounds = array<i64: 32, 16>}, {transform_indices = @transform_6, window_bounds = array<i64: 8, 16, 16>}]} {
    %c0 = arith.constant 0 : index
    %c0_0 = arith.constant 0 : index
    %c0_1 = arith.constant 0 : index
    %c0_2 = arith.constant 0 : index
    %0 = vector.load %arg1[%c0, %c0_0, %c0_1, %c0_2] : memref<1x14x16x16xbf16, #tpu.memory_space<vmem>>, vector<1x14x16x16xbf16>
    %1 = vector.shape_cast %0 : vector<1x14x16x16xbf16> to vector<14x16x16xbf16>
    %2 = vector.shape_cast %1 : vector<14x16x16xbf16> to vector<224x16xbf16>
    %c0_3 = arith.constant 0 : index
    %c0_4 = arith.constant 0 : index
    %3 = vector.load %arg2[%c0_3, %c0_4] : memref<16x32xbf16, #tpu.memory_space<vmem>>, vector<16x32xbf16>
    %cst = arith.constant dense<0.000000e+00> : vector<224x32xf32>
    %4 = tpu.matmul %2, %3, %cst {dimension_numbers = #tpu.dot_dimension_numbers<[1], [0], [0], [1], [0, 0, 1, 1], [], []>} : vector<224x16xbf16>, vector<16x32xbf16>, vector<224x32xf32> -> vector<224x32xf32>
    %c0_5 = arith.constant 0 : index
    %c0_6 = arith.constant 0 : index
    %5 = vector.load %arg3[%c0_5, %c0_6] : memref<1x1xf32, #tpu.memory_space<vmem>>, vector<1x1xf32>
    %cst_7 = arith.constant 0.000000e+00 : f32
    %6 = vector.broadcast %cst_7 : f32 to vector<224x32xf32>
    %7 = arith.maximumf %4, %6 : vector<224x32xf32>
    %8 = arith.mulf %7, %7 : vector<224x32xf32>
    %9 = vector.broadcast %5 : vector<1x1xf32> to vector<224x32xf32>
    %10 = arith.mulf %9, %8 : vector<224x32xf32>
    %c0_8 = arith.constant 0 : index
    %c0_9 = arith.constant 0 : index
    %11 = vector.load %arg4[%c0_8, %c0_9] : memref<1x1xf32, #tpu.memory_space<vmem>>, vector<1x1xf32>
    %12 = vector.broadcast %11 : vector<1x1xf32> to vector<224x32xf32>
    %13 = arith.addf %10, %12 : vector<224x32xf32>
    %14 = vector.shape_cast %13 : vector<224x32xf32> to vector<14x16x32xf32>
    %c0_10 = arith.constant 0 : index
    %c8 = arith.constant 8 : index
    %c0_11 = arith.constant 0 : index
    %15 = vector.load %arg8[%c0_10, %c8, %c0_11] : memref<14x32x32xf32, #tpu.memory_space<vmem>>, vector<14x16x32xf32>
    tpu.vector_store %arg8[%c0_10, %c8, %c0_11], %14 {strides = array<i32>} : memref<14x32x32xf32, #tpu.memory_space<vmem>>, vector<14x16x32xf32>,
    %cst_12 = arith.constant 0.000000e+00 : f32
    %16 = vector.broadcast %cst_12 : f32 to vector<14x8x32xf32>
    %c0_13 = arith.constant 0 : index
    %c0_14 = arith.constant 0 : index
    %c0_15 = arith.constant 0 : index
    %17 = vector.load %arg8[%c0_13, %c0_14, %c0_15] : memref<14x32x32xf32, #tpu.memory_space<vmem>>, vector<14x8x32xf32>
    tpu.vector_store %arg8[%c0_13, %c0_14, %c0_15], %16 {strides = array<i32>} : memref<14x32x32xf32, #tpu.memory_space<vmem>>, vector<14x8x32xf32>,
    %cst_16 = arith.constant 0.000000e+00 : f32
    %18 = vector.broadcast %cst_16 : f32 to vector<14x8x32xf32>
    %c0_17 = arith.constant 0 : index
    %c24 = arith.constant 24 : index
    %c0_18 = arith.constant 0 : index
    %19 = vector.load %arg8[%c0_17, %c24, %c0_18] : memref<14x32x32xf32, #tpu.memory_space<vmem>>, vector<14x8x32xf32>
    tpu.vector_store %arg8[%c0_17, %c24, %c0_18], %18 {strides = array<i32>} : memref<14x32x32xf32, #tpu.memory_space<vmem>>, vector<14x8x32xf32>,
    %c0_i32 = arith.constant 0 : i32
    %20 = arith.cmpi eq, %arg0, %c0_i32 : i32
    %21 = arith.extui %20 : i1 to i32
    %c0_i32_19 = arith.constant 0 : i32
    %22 = arith.cmpi ne, %21, %c0_i32_19 : i32
    scf.if %22 {
      %cst_45 = arith.constant 0.000000e+00 : f32
      %384 = vector.broadcast %cst_45 : f32 to vector<3x32x32xf32>
      %c0_46 = arith.constant 0 : index
      %c0_47 = arith.constant 0 : index
      %c0_48 = arith.constant 0 : index
      %385 = vector.load %arg8[%c0_46, %c0_47, %c0_48] : memref<14x32x32xf32, #tpu.memory_space<vmem>>, vector<3x32x32xf32>
      tpu.vector_store %arg8[%c0_46, %c0_47, %c0_48], %384 {strides = array<i32>} : memref<14x32x32xf32, #tpu.memory_space<vmem>>, vector<3x32x32xf32>,
    } else {
    }
    %c1_i32 = arith.constant 1 : i32
    %23 = arith.cmpi eq, %arg0, %c1_i32 : i32
    %24 = arith.extui %23 : i1 to i32
    %c0_i32_20 = arith.constant 0 : i32
    %25 = arith.cmpi ne, %24, %c0_i32_20 : i32
    scf.if %25 {
      %cst_45 = arith.constant 0.000000e+00 : f32
      %384 = vector.broadcast %cst_45 : f32 to vector<3x32x32xf32>
      %c11 = arith.constant 11 : index
      %c0_46 = arith.constant 0 : index
      %c0_47 = arith.constant 0 : index
      %385 = vector.load %arg8[%c11, %c0_46, %c0_47] : memref<14x32x32xf32, #tpu.memory_space<vmem>>, vector<3x32x32xf32>
      tpu.vector_store %arg8[%c11, %c0_46, %c0_47], %384 {strides = array<i32>} : memref<14x32x32xf32, #tpu.memory_space<vmem>>, vector<3x32x32xf32>,
    } else {
    }
    %c0_21 = arith.constant 0 : index
    %c0_22 = arith.constant 0 : index
    %26 = vector.load %arg5[%c0_21, %c0_22] : memref<49x32xf32, #tpu.memory_space<vmem>>, vector<49x32xf32>
    %cst_23 = arith.constant 0.000000e+00 : f32
    %27 = vector.broadcast %cst_23 : f32 to vector<8x16x32xf32>
    %c0_24 = arith.constant 0 : index
    %c0_25 = arith.constant 0 : index
    %c0_26 = arith.constant 0 : index
    %28 = vector.load %arg8[%c0_24, %c0_25, %c0_26] : memref<14x32x32xf32, #tpu.memory_space<vmem>>, vector<8x32x32xf32>
    %29 = vector.extract_strided_slice %28 {offsets = [0, 5, 0], sizes = [8, 16, 32], strides = [1, 1, 1]} : vector<8x32x32xf32> to vector<8x16x32xf32>
    %30 = vector.extract_strided_slice %26 {offsets = [0, 0], sizes = [1, 32], strides = [1, 1]} : vector<49x32xf32> to vector<1x32xf32>
    %31 = vector.shape_cast %30 : vector<1x32xf32> to vector<32xf32>
    %32 = vector.shape_cast %31 : vector<32xf32> to vector<1x1x32xf32>
    %33 = vector.broadcast %32 : vector<1x1x32xf32> to vector<8x16x32xf32>
    %34 = arith.mulf %29, %33 : vector<8x16x32xf32>
    %35 = arith.addf %27, %34 : vector<8x16x32xf32>
    %36 = vector.extract_strided_slice %28 {offsets = [0, 6, 0], sizes = [8, 16, 32], strides = [1, 1, 1]} : vector<8x32x32xf32> to vector<8x16x32xf32>
    %37 = vector.extract_strided_slice %26 {offsets = [1, 0], sizes = [1, 32], strides = [1, 1]} : vector<49x32xf32> to vector<1x32xf32>
    %38 = vector.shape_cast %37 : vector<1x32xf32> to vector<32xf32>
    %39 = vector.shape_cast %38 : vector<32xf32> to vector<1x1x32xf32>
    %40 = vector.broadcast %39 : vector<1x1x32xf32> to vector<8x16x32xf32>
    %41 = arith.mulf %36, %40 : vector<8x16x32xf32>
    %42 = arith.addf %35, %41 : vector<8x16x32xf32>
    %43 = vector.extract_strided_slice %28 {offsets = [0, 7, 0], sizes = [8, 16, 32], strides = [1, 1, 1]} : vector<8x32x32xf32> to vector<8x16x32xf32>
    %44 = vector.extract_strided_slice %26 {offsets = [2, 0], sizes = [1, 32], strides = [1, 1]} : vector<49x32xf32> to vector<1x32xf32>
    %45 = vector.shape_cast %44 : vector<1x32xf32> to vector<32xf32>
    %46 = vector.shape_cast %45 : vector<32xf32> to vector<1x1x32xf32>
    %47 = vector.broadcast %46 : vector<1x1x32xf32> to vector<8x16x32xf32>
    %48 = arith.mulf %43, %47 : vector<8x16x32xf32>
    %49 = arith.addf %42, %48 : vector<8x16x32xf32>
    %50 = vector.extract_strided_slice %28 {offsets = [0, 8, 0], sizes = [8, 16, 32], strides = [1, 1, 1]} : vector<8x32x32xf32> to vector<8x16x32xf32>
    %51 = vector.extract_strided_slice %26 {offsets = [3, 0], sizes = [1, 32], strides = [1, 1]} : vector<49x32xf32> to vector<1x32xf32>
    %52 = vector.shape_cast %51 : vector<1x32xf32> to vector<32xf32>
    %53 = vector.shape_cast %52 : vector<32xf32> to vector<1x1x32xf32>
    %54 = vector.broadcast %53 : vector<1x1x32xf32> to vector<8x16x32xf32>
    %55 = arith.mulf %50, %54 : vector<8x16x32xf32>
    %56 = arith.addf %49, %55 : vector<8x16x32xf32>
    %57 = vector.extract_strided_slice %28 {offsets = [0, 9, 0], sizes = [8, 16, 32], strides = [1, 1, 1]} : vector<8x32x32xf32> to vector<8x16x32xf32>
    %58 = vector.extract_strided_slice %26 {offsets = [4, 0], sizes = [1, 32], strides = [1, 1]} : vector<49x32xf32> to vector<1x32xf32>
    %59 = vector.shape_cast %58 : vector<1x32xf32> to vector<32xf32>
    %60 = vector.shape_cast %59 : vector<32xf32> to vector<1x1x32xf32>
    %61 = vector.broadcast %60 : vector<1x1x32xf32> to vector<8x16x32xf32>
    %62 = arith.mulf %57, %61 : vector<8x16x32xf32>
    %63 = arith.addf %56, %62 : vector<8x16x32xf32>
    %64 = vector.extract_strided_slice %28 {offsets = [0, 10, 0], sizes = [8, 16, 32], strides = [1, 1, 1]} : vector<8x32x32xf32> to vector<8x16x32xf32>
    %65 = vector.extract_strided_slice %26 {offsets = [5, 0], sizes = [1, 32], strides = [1, 1]} : vector<49x32xf32> to vector<1x32xf32>
    %66 = vector.shape_cast %65 : vector<1x32xf32> to vector<32xf32>
    %67 = vector.shape_cast %66 : vector<32xf32> to vector<1x1x32xf32>
    %68 = vector.broadcast %67 : vector<1x1x32xf32> to vector<8x16x32xf32>
    %69 = arith.mulf %64, %68 : vector<8x16x32xf32>
    %70 = arith.addf %63, %69 : vector<8x16x32xf32>
    %71 = vector.extract_strided_slice %28 {offsets = [0, 11, 0], sizes = [8, 16, 32], strides = [1, 1, 1]} : vector<8x32x32xf32> to vector<8x16x32xf32>
    %72 = vector.extract_strided_slice %26 {offsets = [6, 0], sizes = [1, 32], strides = [1, 1]} : vector<49x32xf32> to vector<1x32xf32>
    %73 = vector.shape_cast %72 : vector<1x32xf32> to vector<32xf32>
    %74 = vector.shape_cast %73 : vector<32xf32> to vector<1x1x32xf32>
    %75 = vector.broadcast %74 : vector<1x1x32xf32> to vector<8x16x32xf32>
    %76 = arith.mulf %71, %75 : vector<8x16x32xf32>
    %77 = arith.addf %70, %76 : vector<8x16x32xf32>
    %c1 = arith.constant 1 : index
    %c0_27 = arith.constant 0 : index
    %c0_28 = arith.constant 0 : index
    %78 = vector.load %arg8[%c1, %c0_27, %c0_28] : memref<14x32x32xf32, #tpu.memory_space<vmem>>, vector<8x32x32xf32>
    %79 = vector.extract_strided_slice %78 {offsets = [0, 5, 0], sizes = [8, 16, 32], strides = [1, 1, 1]} : vector<8x32x32xf32> to vector<8x16x32xf32>
    %80 = vector.extract_strided_slice %26 {offsets = [7, 0], sizes = [1, 32], strides = [1, 1]} : vector<49x32xf32> to vector<1x32xf32>
    %81 = vector.shape_cast %80 : vector<1x32xf32> to vector<32xf32>
    %82 = vector.shape_cast %81 : vector<32xf32> to vector<1x1x32xf32>
    %83 = vector.broadcast %82 : vector<1x1x32xf32> to vector<8x16x32xf32>
    %84 = arith.mulf %79, %83 : vector<8x16x32xf32>
    %85 = arith.addf %77, %84 : vector<8x16x32xf32>
    %86 = vector.extract_strided_slice %78 {offsets = [0, 6, 0], sizes = [8, 16, 32], strides = [1, 1, 1]} : vector<8x32x32xf32> to vector<8x16x32xf32>
    %87 = vector.extract_strided_slice %26 {offsets = [8, 0], sizes = [1, 32], strides = [1, 1]} : vector<49x32xf32> to vector<1x32xf32>
    %88 = vector.shape_cast %87 : vector<1x32xf32> to vector<32xf32>
    %89 = vector.shape_cast %88 : vector<32xf32> to vector<1x1x32xf32>
    %90 = vector.broadcast %89 : vector<1x1x32xf32> to vector<8x16x32xf32>
    %91 = arith.mulf %86, %90 : vector<8x16x32xf32>
    %92 = arith.addf %85, %91 : vector<8x16x32xf32>
    %93 = vector.extract_strided_slice %78 {offsets = [0, 7, 0], sizes = [8, 16, 32], strides = [1, 1, 1]} : vector<8x32x32xf32> to vector<8x16x32xf32>
    %94 = vector.extract_strided_slice %26 {offsets = [9, 0], sizes = [1, 32], strides = [1, 1]} : vector<49x32xf32> to vector<1x32xf32>
    %95 = vector.shape_cast %94 : vector<1x32xf32> to vector<32xf32>
    %96 = vector.shape_cast %95 : vector<32xf32> to vector<1x1x32xf32>
    %97 = vector.broadcast %96 : vector<1x1x32xf32> to vector<8x16x32xf32>
    %98 = arith.mulf %93, %97 : vector<8x16x32xf32>
    %99 = arith.addf %92, %98 : vector<8x16x32xf32>
    %100 = vector.extract_strided_slice %78 {offsets = [0, 8, 0], sizes = [8, 16, 32], strides = [1, 1, 1]} : vector<8x32x32xf32> to vector<8x16x32xf32>
    %101 = vector.extract_strided_slice %26 {offsets = [10, 0], sizes = [1, 32], strides = [1, 1]} : vector<49x32xf32> to vector<1x32xf32>
    %102 = vector.shape_cast %101 : vector<1x32xf32> to vector<32xf32>
    %103 = vector.shape_cast %102 : vector<32xf32> to vector<1x1x32xf32>
    %104 = vector.broadcast %103 : vector<1x1x32xf32> to vector<8x16x32xf32>
    %105 = arith.mulf %100, %104 : vector<8x16x32xf32>
    %106 = arith.addf %99, %105 : vector<8x16x32xf32>
    %107 = vector.extract_strided_slice %78 {offsets = [0, 9, 0], sizes = [8, 16, 32], strides = [1, 1, 1]} : vector<8x32x32xf32> to vector<8x16x32xf32>
    %108 = vector.extract_strided_slice %26 {offsets = [11, 0], sizes = [1, 32], strides = [1, 1]} : vector<49x32xf32> to vector<1x32xf32>
    %109 = vector.shape_cast %108 : vector<1x32xf32> to vector<32xf32>
    %110 = vector.shape_cast %109 : vector<32xf32> to vector<1x1x32xf32>
    %111 = vector.broadcast %110 : vector<1x1x32xf32> to vector<8x16x32xf32>
    %112 = arith.mulf %107, %111 : vector<8x16x32xf32>
    %113 = arith.addf %106, %112 : vector<8x16x32xf32>
    %114 = vector.extract_strided_slice %78 {offsets = [0, 10, 0], sizes = [8, 16, 32], strides = [1, 1, 1]} : vector<8x32x32xf32> to vector<8x16x32xf32>
    %115 = vector.extract_strided_slice %26 {offsets = [12, 0], sizes = [1, 32], strides = [1, 1]} : vector<49x32xf32> to vector<1x32xf32>
    %116 = vector.shape_cast %115 : vector<1x32xf32> to vector<32xf32>
    %117 = vector.shape_cast %116 : vector<32xf32> to vector<1x1x32xf32>
    %118 = vector.broadcast %117 : vector<1x1x32xf32> to vector<8x16x32xf32>
    %119 = arith.mulf %114, %118 : vector<8x16x32xf32>
    %120 = arith.addf %113, %119 : vector<8x16x32xf32>
    %121 = vector.extract_strided_slice %78 {offsets = [0, 11, 0], sizes = [8, 16, 32], strides = [1, 1, 1]} : vector<8x32x32xf32> to vector<8x16x32xf32>
    %122 = vector.extract_strided_slice %26 {offsets = [13, 0], sizes = [1, 32], strides = [1, 1]} : vector<49x32xf32> to vector<1x32xf32>
    %123 = vector.shape_cast %122 : vector<1x32xf32> to vector<32xf32>
    %124 = vector.shape_cast %123 : vector<32xf32> to vector<1x1x32xf32>
    %125 = vector.broadcast %124 : vector<1x1x32xf32> to vector<8x16x32xf32>
    %126 = arith.mulf %121, %125 : vector<8x16x32xf32>
    %127 = arith.addf %120, %126 : vector<8x16x32xf32>
    %c2 = arith.constant 2 : index
    %c0_29 = arith.constant 0 : index
    %c0_30 = arith.constant 0 : index
    %128 = vector.load %arg8[%c2, %c0_29, %c0_30] : memref<14x32x32xf32, #tpu.memory_space<vmem>>, vector<8x32x32xf32>
    %129 = vector.extract_strided_slice %128 {offsets = [0, 5, 0], sizes = [8, 16, 32], strides = [1, 1, 1]} : vector<8x32x32xf32> to vector<8x16x32xf32>
    %130 = vector.extract_strided_slice %26 {offsets = [14, 0], sizes = [1, 32], strides = [1, 1]} : vector<49x32xf32> to vector<1x32xf32>
    %131 = vector.shape_cast %130 : vector<1x32xf32> to vector<32xf32>
    %132 = vector.shape_cast %131 : vector<32xf32> to vector<1x1x32xf32>
    %133 = vector.broadcast %132 : vector<1x1x32xf32> to vector<8x16x32xf32>
    %134 = arith.mulf %129, %133 : vector<8x16x32xf32>
    %135 = arith.addf %127, %134 : vector<8x16x32xf32>
    %136 = vector.extract_strided_slice %128 {offsets = [0, 6, 0], sizes = [8, 16, 32], strides = [1, 1, 1]} : vector<8x32x32xf32> to vector<8x16x32xf32>
    %137 = vector.extract_strided_slice %26 {offsets = [15, 0], sizes = [1, 32], strides = [1, 1]} : vector<49x32xf32> to vector<1x32xf32>
    %138 = vector.shape_cast %137 : vector<1x32xf32> to vector<32xf32>
    %139 = vector.shape_cast %138 : vector<32xf32> to vector<1x1x32xf32>
    %140 = vector.broadcast %139 : vector<1x1x32xf32> to vector<8x16x32xf32>
    %141 = arith.mulf %136, %140 : vector<8x16x32xf32>
    %142 = arith.addf %135, %141 : vector<8x16x32xf32>
    %143 = vector.extract_strided_slice %128 {offsets = [0, 7, 0], sizes = [8, 16, 32], strides = [1, 1, 1]} : vector<8x32x32xf32> to vector<8x16x32xf32>
    %144 = vector.extract_strided_slice %26 {offsets = [16, 0], sizes = [1, 32], strides = [1, 1]} : vector<49x32xf32> to vector<1x32xf32>
    %145 = vector.shape_cast %144 : vector<1x32xf32> to vector<32xf32>
    %146 = vector.shape_cast %145 : vector<32xf32> to vector<1x1x32xf32>
    %147 = vector.broadcast %146 : vector<1x1x32xf32> to vector<8x16x32xf32>
    %148 = arith.mulf %143, %147 : vector<8x16x32xf32>
    %149 = arith.addf %142, %148 : vector<8x16x32xf32>
    %150 = vector.extract_strided_slice %128 {offsets = [0, 8, 0], sizes = [8, 16, 32], strides = [1, 1, 1]} : vector<8x32x32xf32> to vector<8x16x32xf32>
    %151 = vector.extract_strided_slice %26 {offsets = [17, 0], sizes = [1, 32], strides = [1, 1]} : vector<49x32xf32> to vector<1x32xf32>
    %152 = vector.shape_cast %151 : vector<1x32xf32> to vector<32xf32>
    %153 = vector.shape_cast %152 : vector<32xf32> to vector<1x1x32xf32>
    %154 = vector.broadcast %153 : vector<1x1x32xf32> to vector<8x16x32xf32>
    %155 = arith.mulf %150, %154 : vector<8x16x32xf32>
    %156 = arith.addf %149, %155 : vector<8x16x32xf32>
    %157 = vector.extract_strided_slice %128 {offsets = [0, 9, 0], sizes = [8, 16, 32], strides = [1, 1, 1]} : vector<8x32x32xf32> to vector<8x16x32xf32>
    %158 = vector.extract_strided_slice %26 {offsets = [18, 0], sizes = [1, 32], strides = [1, 1]} : vector<49x32xf32> to vector<1x32xf32>
    %159 = vector.shape_cast %158 : vector<1x32xf32> to vector<32xf32>
    %160 = vector.shape_cast %159 : vector<32xf32> to vector<1x1x32xf32>
    %161 = vector.broadcast %160 : vector<1x1x32xf32> to vector<8x16x32xf32>
    %162 = arith.mulf %157, %161 : vector<8x16x32xf32>
    %163 = arith.addf %156, %162 : vector<8x16x32xf32>
    %164 = vector.extract_strided_slice %128 {offsets = [0, 10, 0], sizes = [8, 16, 32], strides = [1, 1, 1]} : vector<8x32x32xf32> to vector<8x16x32xf32>
    %165 = vector.extract_strided_slice %26 {offsets = [19, 0], sizes = [1, 32], strides = [1, 1]} : vector<49x32xf32> to vector<1x32xf32>
    %166 = vector.shape_cast %165 : vector<1x32xf32> to vector<32xf32>
    %167 = vector.shape_cast %166 : vector<32xf32> to vector<1x1x32xf32>
    %168 = vector.broadcast %167 : vector<1x1x32xf32> to vector<8x16x32xf32>
    %169 = arith.mulf %164, %168 : vector<8x16x32xf32>
    %170 = arith.addf %163, %169 : vector<8x16x32xf32>
    %171 = vector.extract_strided_slice %128 {offsets = [0, 11, 0], sizes = [8, 16, 32], strides = [1, 1, 1]} : vector<8x32x32xf32> to vector<8x16x32xf32>
    %172 = vector.extract_strided_slice %26 {offsets = [20, 0], sizes = [1, 32], strides = [1, 1]} : vector<49x32xf32> to vector<1x32xf32>
    %173 = vector.shape_cast %172 : vector<1x32xf32> to vector<32xf32>
    %174 = vector.shape_cast %173 : vector<32xf32> to vector<1x1x32xf32>
    %175 = vector.broadcast %174 : vector<1x1x32xf32> to vector<8x16x32xf32>
    %176 = arith.mulf %171, %175 : vector<8x16x32xf32>
    %177 = arith.addf %170, %176 : vector<8x16x32xf32>
    %c3 = arith.constant 3 : index
    %c0_31 = arith.constant 0 : index
    %c0_32 = arith.constant 0 : index
    %178 = vector.load %arg8[%c3, %c0_31, %c0_32] : memref<14x32x32xf32, #tpu.memory_space<vmem>>, vector<8x32x32xf32>
    %179 = vector.extract_strided_slice %178 {offsets = [0, 5, 0], sizes = [8, 16, 32], strides = [1, 1, 1]} : vector<8x32x32xf32> to vector<8x16x32xf32>
    %180 = vector.extract_strided_slice %26 {offsets = [21, 0], sizes = [1, 32], strides = [1, 1]} : vector<49x32xf32> to vector<1x32xf32>
    %181 = vector.shape_cast %180 : vector<1x32xf32> to vector<32xf32>
    %182 = vector.shape_cast %181 : vector<32xf32> to vector<1x1x32xf32>
    %183 = vector.broadcast %182 : vector<1x1x32xf32> to vector<8x16x32xf32>
    %184 = arith.mulf %179, %183 : vector<8x16x32xf32>
    %185 = arith.addf %177, %184 : vector<8x16x32xf32>
    %186 = vector.extract_strided_slice %178 {offsets = [0, 6, 0], sizes = [8, 16, 32], strides = [1, 1, 1]} : vector<8x32x32xf32> to vector<8x16x32xf32>
    %187 = vector.extract_strided_slice %26 {offsets = [22, 0], sizes = [1, 32], strides = [1, 1]} : vector<49x32xf32> to vector<1x32xf32>
    %188 = vector.shape_cast %187 : vector<1x32xf32> to vector<32xf32>
    %189 = vector.shape_cast %188 : vector<32xf32> to vector<1x1x32xf32>
    %190 = vector.broadcast %189 : vector<1x1x32xf32> to vector<8x16x32xf32>
    %191 = arith.mulf %186, %190 : vector<8x16x32xf32>
    %192 = arith.addf %185, %191 : vector<8x16x32xf32>
    %193 = vector.extract_strided_slice %178 {offsets = [0, 7, 0], sizes = [8, 16, 32], strides = [1, 1, 1]} : vector<8x32x32xf32> to vector<8x16x32xf32>
    %194 = vector.extract_strided_slice %26 {offsets = [23, 0], sizes = [1, 32], strides = [1, 1]} : vector<49x32xf32> to vector<1x32xf32>
    %195 = vector.shape_cast %194 : vector<1x32xf32> to vector<32xf32>
    %196 = vector.shape_cast %195 : vector<32xf32> to vector<1x1x32xf32>
    %197 = vector.broadcast %196 : vector<1x1x32xf32> to vector<8x16x32xf32>
    %198 = arith.mulf %193, %197 : vector<8x16x32xf32>
    %199 = arith.addf %192, %198 : vector<8x16x32xf32>
    %200 = vector.extract_strided_slice %178 {offsets = [0, 8, 0], sizes = [8, 16, 32], strides = [1, 1, 1]} : vector<8x32x32xf32> to vector<8x16x32xf32>
    %201 = vector.extract_strided_slice %26 {offsets = [24, 0], sizes = [1, 32], strides = [1, 1]} : vector<49x32xf32> to vector<1x32xf32>
    %202 = vector.shape_cast %201 : vector<1x32xf32> to vector<32xf32>
    %203 = vector.shape_cast %202 : vector<32xf32> to vector<1x1x32xf32>
    %204 = vector.broadcast %203 : vector<1x1x32xf32> to vector<8x16x32xf32>
    %205 = arith.mulf %200, %204 : vector<8x16x32xf32>
    %206 = arith.addf %199, %205 : vector<8x16x32xf32>
    %207 = vector.extract_strided_slice %178 {offsets = [0, 9, 0], sizes = [8, 16, 32], strides = [1, 1, 1]} : vector<8x32x32xf32> to vector<8x16x32xf32>
    %208 = vector.extract_strided_slice %26 {offsets = [25, 0], sizes = [1, 32], strides = [1, 1]} : vector<49x32xf32> to vector<1x32xf32>
    %209 = vector.shape_cast %208 : vector<1x32xf32> to vector<32xf32>
    %210 = vector.shape_cast %209 : vector<32xf32> to vector<1x1x32xf32>
    %211 = vector.broadcast %210 : vector<1x1x32xf32> to vector<8x16x32xf32>
    %212 = arith.mulf %207, %211 : vector<8x16x32xf32>
    %213 = arith.addf %206, %212 : vector<8x16x32xf32>
    %214 = vector.extract_strided_slice %178 {offsets = [0, 10, 0], sizes = [8, 16, 32], strides = [1, 1, 1]} : vector<8x32x32xf32> to vector<8x16x32xf32>
    %215 = vector.extract_strided_slice %26 {offsets = [26, 0], sizes = [1, 32], strides = [1, 1]} : vector<49x32xf32> to vector<1x32xf32>
    %216 = vector.shape_cast %215 : vector<1x32xf32> to vector<32xf32>
    %217 = vector.shape_cast %216 : vector<32xf32> to vector<1x1x32xf32>
    %218 = vector.broadcast %217 : vector<1x1x32xf32> to vector<8x16x32xf32>
    %219 = arith.mulf %214, %218 : vector<8x16x32xf32>
    %220 = arith.addf %213, %219 : vector<8x16x32xf32>
    %221 = vector.extract_strided_slice %178 {offsets = [0, 11, 0], sizes = [8, 16, 32], strides = [1, 1, 1]} : vector<8x32x32xf32> to vector<8x16x32xf32>
    %222 = vector.extract_strided_slice %26 {offsets = [27, 0], sizes = [1, 32], strides = [1, 1]} : vector<49x32xf32> to vector<1x32xf32>
    %223 = vector.shape_cast %222 : vector<1x32xf32> to vector<32xf32>
    %224 = vector.shape_cast %223 : vector<32xf32> to vector<1x1x32xf32>
    %225 = vector.broadcast %224 : vector<1x1x32xf32> to vector<8x16x32xf32>
    %226 = arith.mulf %221, %225 : vector<8x16x32xf32>
    %227 = arith.addf %220, %226 : vector<8x16x32xf32>
    %c4 = arith.constant 4 : index
    %c0_33 = arith.constant 0 : index
    %c0_34 = arith.constant 0 : index
    %228 = vector.load %arg8[%c4, %c0_33, %c0_34] : memref<14x32x32xf32, #tpu.memory_space<vmem>>, vector<8x32x32xf32>
    %229 = vector.extract_strided_slice %228 {offsets = [0, 5, 0], sizes = [8, 16, 32], strides = [1, 1, 1]} : vector<8x32x32xf32> to vector<8x16x32xf32>
    %230 = vector.extract_strided_slice %26 {offsets = [28, 0], sizes = [1, 32], strides = [1, 1]} : vector<49x32xf32> to vector<1x32xf32>
    %231 = vector.shape_cast %230 : vector<1x32xf32> to vector<32xf32>
    %232 = vector.shape_cast %231 : vector<32xf32> to vector<1x1x32xf32>
    %233 = vector.broadcast %232 : vector<1x1x32xf32> to vector<8x16x32xf32>
    %234 = arith.mulf %229, %233 : vector<8x16x32xf32>
    %235 = arith.addf %227, %234 : vector<8x16x32xf32>
    %236 = vector.extract_strided_slice %228 {offsets = [0, 6, 0], sizes = [8, 16, 32], strides = [1, 1, 1]} : vector<8x32x32xf32> to vector<8x16x32xf32>
    %237 = vector.extract_strided_slice %26 {offsets = [29, 0], sizes = [1, 32], strides = [1, 1]} : vector<49x32xf32> to vector<1x32xf32>
    %238 = vector.shape_cast %237 : vector<1x32xf32> to vector<32xf32>
    %239 = vector.shape_cast %238 : vector<32xf32> to vector<1x1x32xf32>
    %240 = vector.broadcast %239 : vector<1x1x32xf32> to vector<8x16x32xf32>
    %241 = arith.mulf %236, %240 : vector<8x16x32xf32>
    %242 = arith.addf %235, %241 : vector<8x16x32xf32>
    %243 = vector.extract_strided_slice %228 {offsets = [0, 7, 0], sizes = [8, 16, 32], strides = [1, 1, 1]} : vector<8x32x32xf32> to vector<8x16x32xf32>
    %244 = vector.extract_strided_slice %26 {offsets = [30, 0], sizes = [1, 32], strides = [1, 1]} : vector<49x32xf32> to vector<1x32xf32>
    %245 = vector.shape_cast %244 : vector<1x32xf32> to vector<32xf32>
    %246 = vector.shape_cast %245 : vector<32xf32> to vector<1x1x32xf32>
    %247 = vector.broadcast %246 : vector<1x1x32xf32> to vector<8x16x32xf32>
    %248 = arith.mulf %243, %247 : vector<8x16x32xf32>
    %249 = arith.addf %242, %248 : vector<8x16x32xf32>
    %250 = vector.extract_strided_slice %228 {offsets = [0, 8, 0], sizes = [8, 16, 32], strides = [1, 1, 1]} : vector<8x32x32xf32> to vector<8x16x32xf32>
    %251 = vector.extract_strided_slice %26 {offsets = [31, 0], sizes = [1, 32], strides = [1, 1]} : vector<49x32xf32> to vector<1x32xf32>
    %252 = vector.shape_cast %251 : vector<1x32xf32> to vector<32xf32>
    %253 = vector.shape_cast %252 : vector<32xf32> to vector<1x1x32xf32>
    %254 = vector.broadcast %253 : vector<1x1x32xf32> to vector<8x16x32xf32>
    %255 = arith.mulf %250, %254 : vector<8x16x32xf32>
    %256 = arith.addf %249, %255 : vector<8x16x32xf32>
    %257 = vector.extract_strided_slice %228 {offsets = [0, 9, 0], sizes = [8, 16, 32], strides = [1, 1, 1]} : vector<8x32x32xf32> to vector<8x16x32xf32>
    %258 = vector.extract_strided_slice %26 {offsets = [32, 0], sizes = [1, 32], strides = [1, 1]} : vector<49x32xf32> to vector<1x32xf32>
    %259 = vector.shape_cast %258 : vector<1x32xf32> to vector<32xf32>
    %260 = vector.shape_cast %259 : vector<32xf32> to vector<1x1x32xf32>
    %261 = vector.broadcast %260 : vector<1x1x32xf32> to vector<8x16x32xf32>
    %262 = arith.mulf %257, %261 : vector<8x16x32xf32>
    %263 = arith.addf %256, %262 : vector<8x16x32xf32>
    %264 = vector.extract_strided_slice %228 {offsets = [0, 10, 0], sizes = [8, 16, 32], strides = [1, 1, 1]} : vector<8x32x32xf32> to vector<8x16x32xf32>
    %265 = vector.extract_strided_slice %26 {offsets = [33, 0], sizes = [1, 32], strides = [1, 1]} : vector<49x32xf32> to vector<1x32xf32>
    %266 = vector.shape_cast %265 : vector<1x32xf32> to vector<32xf32>
    %267 = vector.shape_cast %266 : vector<32xf32> to vector<1x1x32xf32>
    %268 = vector.broadcast %267 : vector<1x1x32xf32> to vector<8x16x32xf32>
    %269 = arith.mulf %264, %268 : vector<8x16x32xf32>
    %270 = arith.addf %263, %269 : vector<8x16x32xf32>
    %271 = vector.extract_strided_slice %228 {offsets = [0, 11, 0], sizes = [8, 16, 32], strides = [1, 1, 1]} : vector<8x32x32xf32> to vector<8x16x32xf32>
    %272 = vector.extract_strided_slice %26 {offsets = [34, 0], sizes = [1, 32], strides = [1, 1]} : vector<49x32xf32> to vector<1x32xf32>
    %273 = vector.shape_cast %272 : vector<1x32xf32> to vector<32xf32>
    %274 = vector.shape_cast %273 : vector<32xf32> to vector<1x1x32xf32>
    %275 = vector.broadcast %274 : vector<1x1x32xf32> to vector<8x16x32xf32>
    %276 = arith.mulf %271, %275 : vector<8x16x32xf32>
    %277 = arith.addf %270, %276 : vector<8x16x32xf32>
    %c5 = arith.constant 5 : index
    %c0_35 = arith.constant 0 : index
    %c0_36 = arith.constant 0 : index
    %278 = vector.load %arg8[%c5, %c0_35, %c0_36] : memref<14x32x32xf32, #tpu.memory_space<vmem>>, vector<8x32x32xf32>
    %279 = vector.extract_strided_slice %278 {offsets = [0, 5, 0], sizes = [8, 16, 32], strides = [1, 1, 1]} : vector<8x32x32xf32> to vector<8x16x32xf32>
    %280 = vector.extract_strided_slice %26 {offsets = [35, 0], sizes = [1, 32], strides = [1, 1]} : vector<49x32xf32> to vector<1x32xf32>
    %281 = vector.shape_cast %280 : vector<1x32xf32> to vector<32xf32>
    %282 = vector.shape_cast %281 : vector<32xf32> to vector<1x1x32xf32>
    %283 = vector.broadcast %282 : vector<1x1x32xf32> to vector<8x16x32xf32>
    %284 = arith.mulf %279, %283 : vector<8x16x32xf32>
    %285 = arith.addf %277, %284 : vector<8x16x32xf32>
    %286 = vector.extract_strided_slice %278 {offsets = [0, 6, 0], sizes = [8, 16, 32], strides = [1, 1, 1]} : vector<8x32x32xf32> to vector<8x16x32xf32>
    %287 = vector.extract_strided_slice %26 {offsets = [36, 0], sizes = [1, 32], strides = [1, 1]} : vector<49x32xf32> to vector<1x32xf32>
    %288 = vector.shape_cast %287 : vector<1x32xf32> to vector<32xf32>
    %289 = vector.shape_cast %288 : vector<32xf32> to vector<1x1x32xf32>
    %290 = vector.broadcast %289 : vector<1x1x32xf32> to vector<8x16x32xf32>
    %291 = arith.mulf %286, %290 : vector<8x16x32xf32>
    %292 = arith.addf %285, %291 : vector<8x16x32xf32>
    %293 = vector.extract_strided_slice %278 {offsets = [0, 7, 0], sizes = [8, 16, 32], strides = [1, 1, 1]} : vector<8x32x32xf32> to vector<8x16x32xf32>
    %294 = vector.extract_strided_slice %26 {offsets = [37, 0], sizes = [1, 32], strides = [1, 1]} : vector<49x32xf32> to vector<1x32xf32>
    %295 = vector.shape_cast %294 : vector<1x32xf32> to vector<32xf32>
    %296 = vector.shape_cast %295 : vector<32xf32> to vector<1x1x32xf32>
    %297 = vector.broadcast %296 : vector<1x1x32xf32> to vector<8x16x32xf32>
    %298 = arith.mulf %293, %297 : vector<8x16x32xf32>
    %299 = arith.addf %292, %298 : vector<8x16x32xf32>
    %300 = vector.extract_strided_slice %278 {offsets = [0, 8, 0], sizes = [8, 16, 32], strides = [1, 1, 1]} : vector<8x32x32xf32> to vector<8x16x32xf32>
    %301 = vector.extract_strided_slice %26 {offsets = [38, 0], sizes = [1, 32], strides = [1, 1]} : vector<49x32xf32> to vector<1x32xf32>
    %302 = vector.shape_cast %301 : vector<1x32xf32> to vector<32xf32>
    %303 = vector.shape_cast %302 : vector<32xf32> to vector<1x1x32xf32>
    %304 = vector.broadcast %303 : vector<1x1x32xf32> to vector<8x16x32xf32>
    %305 = arith.mulf %300, %304 : vector<8x16x32xf32>
    %306 = arith.addf %299, %305 : vector<8x16x32xf32>
    %307 = vector.extract_strided_slice %278 {offsets = [0, 9, 0], sizes = [8, 16, 32], strides = [1, 1, 1]} : vector<8x32x32xf32> to vector<8x16x32xf32>
    %308 = vector.extract_strided_slice %26 {offsets = [39, 0], sizes = [1, 32], strides = [1, 1]} : vector<49x32xf32> to vector<1x32xf32>
    %309 = vector.shape_cast %308 : vector<1x32xf32> to vector<32xf32>
    %310 = vector.shape_cast %309 : vector<32xf32> to vector<1x1x32xf32>
    %311 = vector.broadcast %310 : vector<1x1x32xf32> to vector<8x16x32xf32>
    %312 = arith.mulf %307, %311 : vector<8x16x32xf32>
    %313 = arith.addf %306, %312 : vector<8x16x32xf32>
    %314 = vector.extract_strided_slice %278 {offsets = [0, 10, 0], sizes = [8, 16, 32], strides = [1, 1, 1]} : vector<8x32x32xf32> to vector<8x16x32xf32>
    %315 = vector.extract_strided_slice %26 {offsets = [40, 0], sizes = [1, 32], strides = [1, 1]} : vector<49x32xf32> to vector<1x32xf32>
    %316 = vector.shape_cast %315 : vector<1x32xf32> to vector<32xf32>
    %317 = vector.shape_cast %316 : vector<32xf32> to vector<1x1x32xf32>
    %318 = vector.broadcast %317 : vector<1x1x32xf32> to vector<8x16x32xf32>
    %319 = arith.mulf %314, %318 : vector<8x16x32xf32>
    %320 = arith.addf %313, %319 : vector<8x16x32xf32>
    %321 = vector.extract_strided_slice %278 {offsets = [0, 11, 0], sizes = [8, 16, 32], strides = [1, 1, 1]} : vector<8x32x32xf32> to vector<8x16x32xf32>
    %322 = vector.extract_strided_slice %26 {offsets = [41, 0], sizes = [1, 32], strides = [1, 1]} : vector<49x32xf32> to vector<1x32xf32>
    %323 = vector.shape_cast %322 : vector<1x32xf32> to vector<32xf32>
    %324 = vector.shape_cast %323 : vector<32xf32> to vector<1x1x32xf32>
    %325 = vector.broadcast %324 : vector<1x1x32xf32> to vector<8x16x32xf32>
    %326 = arith.mulf %321, %325 : vector<8x16x32xf32>
    %327 = arith.addf %320, %326 : vector<8x16x32xf32>
    %c6 = arith.constant 6 : index
    %c0_37 = arith.constant 0 : index
    %c0_38 = arith.constant 0 : index
    %328 = vector.load %arg8[%c6, %c0_37, %c0_38] : memref<14x32x32xf32, #tpu.memory_space<vmem>>, vector<8x32x32xf32>
    %329 = vector.extract_strided_slice %328 {offsets = [0, 5, 0], sizes = [8, 16, 32], strides = [1, 1, 1]} : vector<8x32x32xf32> to vector<8x16x32xf32>
    %330 = vector.extract_strided_slice %26 {offsets = [42, 0], sizes = [1, 32], strides = [1, 1]} : vector<49x32xf32> to vector<1x32xf32>
    %331 = vector.shape_cast %330 : vector<1x32xf32> to vector<32xf32>
    %332 = vector.shape_cast %331 : vector<32xf32> to vector<1x1x32xf32>
    %333 = vector.broadcast %332 : vector<1x1x32xf32> to vector<8x16x32xf32>
    %334 = arith.mulf %329, %333 : vector<8x16x32xf32>
    %335 = arith.addf %327, %334 : vector<8x16x32xf32>
    %336 = vector.extract_strided_slice %328 {offsets = [0, 6, 0], sizes = [8, 16, 32], strides = [1, 1, 1]} : vector<8x32x32xf32> to vector<8x16x32xf32>
    %337 = vector.extract_strided_slice %26 {offsets = [43, 0], sizes = [1, 32], strides = [1, 1]} : vector<49x32xf32> to vector<1x32xf32>
    %338 = vector.shape_cast %337 : vector<1x32xf32> to vector<32xf32>
    %339 = vector.shape_cast %338 : vector<32xf32> to vector<1x1x32xf32>
    %340 = vector.broadcast %339 : vector<1x1x32xf32> to vector<8x16x32xf32>
    %341 = arith.mulf %336, %340 : vector<8x16x32xf32>
    %342 = arith.addf %335, %341 : vector<8x16x32xf32>
    %343 = vector.extract_strided_slice %328 {offsets = [0, 7, 0], sizes = [8, 16, 32], strides = [1, 1, 1]} : vector<8x32x32xf32> to vector<8x16x32xf32>
    %344 = vector.extract_strided_slice %26 {offsets = [44, 0], sizes = [1, 32], strides = [1, 1]} : vector<49x32xf32> to vector<1x32xf32>
    %345 = vector.shape_cast %344 : vector<1x32xf32> to vector<32xf32>
    %346 = vector.shape_cast %345 : vector<32xf32> to vector<1x1x32xf32>
    %347 = vector.broadcast %346 : vector<1x1x32xf32> to vector<8x16x32xf32>
    %348 = arith.mulf %343, %347 : vector<8x16x32xf32>
    %349 = arith.addf %342, %348 : vector<8x16x32xf32>
    %350 = vector.extract_strided_slice %328 {offsets = [0, 8, 0], sizes = [8, 16, 32], strides = [1, 1, 1]} : vector<8x32x32xf32> to vector<8x16x32xf32>
    %351 = vector.extract_strided_slice %26 {offsets = [45, 0], sizes = [1, 32], strides = [1, 1]} : vector<49x32xf32> to vector<1x32xf32>
    %352 = vector.shape_cast %351 : vector<1x32xf32> to vector<32xf32>
    %353 = vector.shape_cast %352 : vector<32xf32> to vector<1x1x32xf32>
    %354 = vector.broadcast %353 : vector<1x1x32xf32> to vector<8x16x32xf32>
    %355 = arith.mulf %350, %354 : vector<8x16x32xf32>
    %356 = arith.addf %349, %355 : vector<8x16x32xf32>
    %357 = vector.extract_strided_slice %328 {offsets = [0, 9, 0], sizes = [8, 16, 32], strides = [1, 1, 1]} : vector<8x32x32xf32> to vector<8x16x32xf32>
    %358 = vector.extract_strided_slice %26 {offsets = [46, 0], sizes = [1, 32], strides = [1, 1]} : vector<49x32xf32> to vector<1x32xf32>
    %359 = vector.shape_cast %358 : vector<1x32xf32> to vector<32xf32>
    %360 = vector.shape_cast %359 : vector<32xf32> to vector<1x1x32xf32>
    %361 = vector.broadcast %360 : vector<1x1x32xf32> to vector<8x16x32xf32>
    %362 = arith.mulf %357, %361 : vector<8x16x32xf32>
    %363 = arith.addf %356, %362 : vector<8x16x32xf32>
    %364 = vector.extract_strided_slice %328 {offsets = [0, 10, 0], sizes = [8, 16, 32], strides = [1, 1, 1]} : vector<8x32x32xf32> to vector<8x16x32xf32>
    %365 = vector.extract_strided_slice %26 {offsets = [47, 0], sizes = [1, 32], strides = [1, 1]} : vector<49x32xf32> to vector<1x32xf32>
    %366 = vector.shape_cast %365 : vector<1x32xf32> to vector<32xf32>
    %367 = vector.shape_cast %366 : vector<32xf32> to vector<1x1x32xf32>
    %368 = vector.broadcast %367 : vector<1x1x32xf32> to vector<8x16x32xf32>
    %369 = arith.mulf %364, %368 : vector<8x16x32xf32>
    %370 = arith.addf %363, %369 : vector<8x16x32xf32>
    %371 = vector.extract_strided_slice %328 {offsets = [0, 11, 0], sizes = [8, 16, 32], strides = [1, 1, 1]} : vector<8x32x32xf32> to vector<8x16x32xf32>
    %372 = vector.extract_strided_slice %26 {offsets = [48, 0], sizes = [1, 32], strides = [1, 1]} : vector<49x32xf32> to vector<1x32xf32>
    %373 = vector.shape_cast %372 : vector<1x32xf32> to vector<32xf32>
    %374 = vector.shape_cast %373 : vector<32xf32> to vector<1x1x32xf32>
    %375 = vector.broadcast %374 : vector<1x1x32xf32> to vector<8x16x32xf32>
    %376 = arith.mulf %371, %375 : vector<8x16x32xf32>
    %377 = arith.addf %370, %376 : vector<8x16x32xf32>
    %378 = vector.shape_cast %377 : vector<8x16x32xf32> to vector<128x32xf32>
    %379 = arith.truncf %378 : vector<128x32xf32> to vector<128x32xbf16>
    %c0_39 = arith.constant 0 : index
    %c0_40 = arith.constant 0 : index
    %380 = vector.load %arg6[%c0_39, %c0_40] : memref<32x16xbf16, #tpu.memory_space<vmem>>, vector<32x16xbf16>
    %cst_41 = arith.constant dense<0.000000e+00> : vector<128x16xf32>
    %381 = tpu.matmul %379, %380, %cst_41 {dimension_numbers = #tpu.dot_dimension_numbers<[1], [0], [0], [1], [0, 0, 1, 1], [], []>} : vector<128x32xbf16>, vector<32x16xbf16>, vector<128x16xf32> -> vector<128x16xf32>
    %382 = vector.shape_cast %381 : vector<128x16xf32> to vector<8x16x16xf32>
    %c0_42 = arith.constant 0 : index
    %c0_43 = arith.constant 0 : index
    %c0_44 = arith.constant 0 : index
    %383 = vector.load %arg7[%c0_42, %c0_43, %c0_44] : memref<8x16x16xf32, #tpu.memory_space<vmem>>, vector<8x16x16xf32>
    tpu.vector_store %arg7[%c0_42, %c0_43, %c0_44], %382 {strides = array<i32>} : memref<8x16x16xf32, #tpu.memory_space<vmem>>, vector<8x16x16xf32>,
    return
  }
  func.func @transform_0(%arg0: i32) -> (i32, i32, i32, i32) {
    %c0_i32 = arith.constant 0 : i32
    %c0_i32_0 = arith.constant 0 : i32
    %c0_i32_1 = arith.constant 0 : i32
    %c0_i32_2 = arith.constant 0 : i32
    return %arg0, %c0_i32, %c0_i32_0, %c0_i32_1 : i32, i32, i32, i32
  }
  func.func @transform_1(%arg0: i32) -> (i32, i32) {
    %c0_i32 = arith.constant 0 : i32
    %c0_i32_0 = arith.constant 0 : i32
    %c0_i32_1 = arith.constant 0 : i32
    return %c0_i32, %c0_i32_0 : i32, i32
  }
  func.func @transform_2(%arg0: i32) -> (i32, i32) {
    %c0_i32 = arith.constant 0 : i32
    %c0_i32_0 = arith.constant 0 : i32
    %c0_i32_1 = arith.constant 0 : i32
    return %c0_i32, %c0_i32_0 : i32, i32
  }
  func.func @transform_3(%arg0: i32) -> (i32, i32) {
    %c0_i32 = arith.constant 0 : i32
    %c0_i32_0 = arith.constant 0 : i32
    %c0_i32_1 = arith.constant 0 : i32
    return %c0_i32, %c0_i32_0 : i32, i32
  }
  func.func @transform_4(%arg0: i32) -> (i32, i32) {
    %c0_i32 = arith.constant 0 : i32
    %c0_i32_0 = arith.constant 0 : i32
    %c0_i32_1 = arith.constant 0 : i32
    return %c0_i32, %c0_i32_0 : i32, i32
  }
  func.func @transform_5(%arg0: i32) -> (i32, i32) {
    %c0_i32 = arith.constant 0 : i32
    %c0_i32_0 = arith.constant 0 : i32
    %c0_i32_1 = arith.constant 0 : i32
    return %c0_i32, %c0_i32_0 : i32, i32
  }
  func.func @transform_6(%arg0: i32) -> (i32, i32, i32) {
    %c0_i32 = arith.constant 0 : i32
    %c0_i32_0 = arith.constant 0 : i32
    %c0_i32_1 = arith.constant 0 : i32
    return %arg0, %c0_i32, %c0_i32_0 : i32, i32, i32
  }
}

</mosaic_0001>

<llo_original>
// kernel: sepconv.1
$region0: #{sepconv.1}
  #allocation0 [shape = 'u32[]', space=smem, size = 0x4, offset = 0x4, fixed_abs, tag = 'smem constant byte address 0x4 - core index']
  #allocation1 [shape = 'u32[144,128]{1,0:T(1,128)}', space=vmem, size = 0x12000, scoped, tag = 'internal scratch']
  #allocation2 [shape = 'f32[14,32,32]{2,1,0:T(8,128)}', space=vmem, size = 0x38000, scoped, tag = 'scratch operand']
  #allocation3 [shape = 'f32[1,1]{1,0:T(1,128)S(1)}', space=vmem, size = 0x200, scoped, tag = 'scoped memory for sepconv.1']
  #allocation4 [shape = 'f32[1,1]{1,0:T(1,128)S(1)}', space=vmem, size = 0x200, scoped, tag = 'scoped memory for sepconv.1']
  %s0 = inlined_call_operand.vmem [shape: bf16[2,14,16,16], index: 0, kind: input, shape index: {}]
  %s1 = inlined_call_operand.vmem [shape: bf16[16,32], index: 1, kind: input, shape index: {}]
  %s2 = inlined_call_operand.<no memory space> [shape: f32[1,1], index: 2, kind: input, shape index: {}]
  %s3 = inlined_call_operand.<no memory space> [shape: f32[1,1], index: 3, kind: input, shape index: {}]
  %s4 = inlined_call_operand.vmem [shape: f32[49,32], index: 4, kind: input, shape index: {}]
  %s5 = inlined_call_operand.vmem [shape: bf16[32,16], index: 5, kind: input, shape index: {}]
  %s6 = inlined_call_operand.hbm [shape: f32[16,16,16], index: 6, kind: output, shape index: {}]
  %s7 = sld [smem:[#allocation0]]
  $region65: #{sepconv.1} parent=0
    _
  %s9 = ssub.s32 1, %s7
  %s10 = scalar_select 0, %s9, %s7
  %v11 = vstv %s2
  %12 = vst [vmem:[#allocation3] sm:$0x1] %v11
  %v13 = vstv %s3
  %14 = vst [vmem:[#allocation4] sm:$0x1] %v13
  $region1: #{sepconv.1} parent=0
    #allocation5 [shape = 'u8[131072]{0}', space=vmem, size = 0x20000, scoped, tag = 'output window, operand 0']
    #allocation6 [shape = 's32[2]{0}', space=sflag, size = 0x8, scoped, tag = 'scoped memory for sepconv.1']
    %15 = vsyncpa [#allocation6], 0
    %s16 = scalar_lea.sflag [#allocation6], 1
    %17 = vsyncpa %s16, 0
    loop: start=0, step=1, limit=4
    $region2: #{sepconv.1} parent=1 // loop_pre_header
      _
    $region3: #{sepconv.1} parent=1 // loop_header
      %s19 = sphi 0, %s23
      %p20 = scmp.ge.s32.totalorder %s19, 4
      %s29 = sphi 0, %s31
      %s32 = sphi 0, %s29
      %s33 = sphi 0, %s32
      %s49 = sphi 0, %s33
      %s53 = sphi 0, %s53
      %s55 = sphi 0, %s53
      %s56 = sphi 0, %s55
      %s70 = sphi 0, %s56
      %s74 = sphi 0, %s74
      %s76 = sphi 0, %s74
      %s77 = sphi 0, %s76
      %s91 = sphi 0, %s77
      %s95 = sphi 0, %s95
      %s97 = sphi 0, %s95
      %s98 = sphi 0, %s97
      %s112 = sphi 0, %s98
      %s116 = sphi 0, %s116
      %s118 = sphi 0, %s116
      %s119 = sphi 0, %s118
      %s133 = sphi 0, %s119
      %s137 = sphi 0, %s137
      %s139 = sphi 0, %s137
      %s140 = sphi 0, %s139
      %s154 = sphi 0, %s140
      %s160 = sphi 0, %s162
      %s163 = sphi 0, %s160
      %s164 = sphi 0, %s163
      %s180 = sphi 0, %s164
    $region4: #{sepconv.1} parent=1 // loop_header_branch
      %22 = sbr.rel (%p20) target = $region8
    $region5: #{sepconv.1} parent=1 // loop_body
      %s24 = ssub.s32 %s19, 1
      %s25 = ssub.s32 %s19, 2
      %s26 = sadd.s32 %s19, 1
      %s27 = ssub.s32 %s19, %s26
      %p28 = scmp.eq.s32.totalorder %s27, 0
      %s30 = sadd.s32 %s29, 1
      %s31 = scalar_select %p28, %s29, %s30
      %p34 = pneg %p28
      %p35 = scmp.eq.s32.totalorder %s19, 1
      %p36 = por %p34, %p35
      %p37 = scmp.ne.s32.totalorder %s29, %s32
      %p38 = scmp.eq.s32.totalorder %s19, 0
      %p39 = por %p37, %p38
      %p40 = scmp.ne.s32.totalorder %s29, %s32
      %p41 = scmp.eq.s32.totalorder %s24, 1
      %p42 = por %p40, %p41
      %p43 = scmp.ne.s32.totalorder %s32, %s33
      %p44 = scmp.eq.s32.totalorder %s24, 0
      %p45 = por %p43, %p44
      %p46 = scmp.ne.s32.totalorder %s32, %s33
      %p47 = scmp.eq.s32.totalorder %s25, 1
      %p48 = por %p46, %p47
      %p50 = scmp.ne.s32.totalorder %s33, %s49
      %p51 = scmp.eq.s32.totalorder %s25, 0
      %p52 = por %p50, %p51
      %s54 = sadd.s32 %s53, 1
      %p57 = scmp.eq.s32.totalorder %s19, 1
      %p58 = scmp.ne.s32.totalorder %s53, %s55
      %p59 = scmp.eq.s32.totalorder %s19, 0
      %p60 = por %p58, %p59
      %p61 = scmp.ne.s32.totalorder %s53, %s55
      %p62 = scmp.eq.s32.totalorder %s24, 1
      %p63 = por %p61, %p62
      %p64 = scmp.ne.s32.totalorder %s55, %s56
      %p65 = scmp.eq.s32.totalorder %s24, 0
      %p66 = por %p64, %p65
      %p67 = scmp.ne.s32.totalorder %s55, %s56
      %p68 = scmp.eq.s32.totalorder %s25, 1
      %p69 = por %p67, %p68
      %p71 = scmp.ne.s32.totalorder %s56, %s70
      %p72 = scmp.eq.s32.totalorder %s25, 0
      %p73 = por %p71, %p72
      %s75 = sadd.s32 %s74, 1
      %p78 = scmp.eq.s32.totalorder %s19, 1
      %p79 = scmp.ne.s32.totalorder %s74, %s76
      %p80 = scmp.eq.s32.totalorder %s19, 0
      %p81 = por %p79, %p80
      %p82 = scmp.ne.s32.totalorder %s74, %s76
      %p83 = scmp.eq.s32.totalorder %s24, 1
      %p84 = por %p82, %p83
      %p85 = scmp.ne.s32.totalorder %s76, %s77
      %p86 = scmp.eq.s32.totalorder %s24, 0
      %p87 = por %p85, %p86
      %p88 = scmp.ne.s32.totalorder %s76, %s77
      %p89 = scmp.eq.s32.totalorder %s25, 1
      %p90 = por %p88, %p89
      %p92 = scmp.ne.s32.totalorder %s77, %s91
      %p93 = scmp.eq.s32.totalorder %s25, 0
      %p94 = por %p92, %p93
      %s96 = sadd.s32 %s95, 1
      %p99 = scmp.eq.s32.totalorder %s19, 1
      %p100 = scmp.ne.s32.totalorder %s95, %s97
      %p101 = scmp.eq.s32.totalorder %s19, 0
      %p102 = por %p100, %p101
      %p103 = scmp.ne.s32.totalorder %s95, %s97
      %p104 = scmp.eq.s32.totalorder %s24, 1
      %p105 = por %p103, %p104
      %p106 = scmp.ne.s32.totalorder %s97, %s98
      %p107 = scmp.eq.s32.totalorder %s24, 0
      %p108 = por %p106, %p107
      %p109 = scmp.ne.s32.totalorder %s97, %s98
      %p110 = scmp.eq.s32.totalorder %s25, 1
      %p111 = por %p109, %p110
      %p113 = scmp.ne.s32.totalorder %s98, %s112
      %p114 = scmp.eq.s32.totalorder %s25, 0
      %p115 = por %p113, %p114
      %s117 = sadd.s32 %s116, 1
      %p120 = scmp.eq.s32.totalorder %s19, 1
      %p121 = scmp.ne.s32.totalorder %s116, %s118
      %p122 = scmp.eq.s32.totalorder %s19, 0
      %p123 = por %p121, %p122
      %p124 = scmp.ne.s32.totalorder %s116, %s118
      %p125 = scmp.eq.s32.totalorder %s24, 1
      %p126 = por %p124, %p125
      %p127 = scmp.ne.s32.totalorder %s118, %s119
      %p128 = scmp.eq.s32.totalorder %s24, 0
      %p129 = por %p127, %p128
      %p130 = scmp.ne.s32.totalorder %s118, %s119
      %p131 = scmp.eq.s32.totalorder %s25, 1
      %p132 = por %p130, %p131
      %p134 = scmp.ne.s32.totalorder %s119, %s133
      %p135 = scmp.eq.s32.totalorder %s25, 0
      %p136 = por %p134, %p135
      %s138 = sadd.s32 %s137, 1
      %p141 = scmp.eq.s32.totalorder %s19, 1
      %p142 = scmp.ne.s32.totalorder %s137, %s139
      %p143 = scmp.eq.s32.totalorder %s19, 0
      %p144 = por %p142, %p143
      %p145 = scmp.ne.s32.totalorder %s137, %s139
      %p146 = scmp.eq.s32.totalorder %s24, 1
      %p147 = por %p145, %p146
      %p148 = scmp.ne.s32.totalorder %s139, %s140
      %p149 = scmp.eq.s32.totalorder %s24, 0
      %p150 = por %p148, %p149
      %p151 = scmp.ne.s32.totalorder %s139, %s140
      %p152 = scmp.eq.s32.totalorder %s25, 1
      %p153 = por %p151, %p152
      %p155 = scmp.ne.s32.totalorder %s140, %s154
      %p156 = scmp.eq.s32.totalorder %s25, 0
      %p157 = por %p155, %p156
      %s158 = ssub.s32 %s19, %s26
      %p159 = scmp.eq.s32.totalorder %s158, 0
      %s161 = sadd.s32 %s160, 1
      %s162 = scalar_select %p159, %s160, %s161
      %p165 = pneg %p159
      %p166 = scmp.eq.s32.totalorder %s19, 1
      %p167 = por %p165, %p166
      %p168 = scmp.ne.s32.totalorder %s160, %s163
      %p169 = scmp.eq.s32.totalorder %s19, 0
      %p170 = por %p168, %p169
      %p171 = scmp.ne.s32.totalorder %s160, %s163
      %p172 = scmp.eq.s32.totalorder %s24, 1
      %p173 = por %p171, %p172
      %p174 = scmp.ne.s32.totalorder %s163, %s164
      %p175 = scmp.eq.s32.totalorder %s24, 0
      %p176 = por %p174, %p175
      %p177 = scmp.ne.s32.totalorder %s163, %s164
      %p178 = scmp.eq.s32.totalorder %s25, 1
      %p179 = por %p177, %p178
      %p181 = scmp.ne.s32.totalorder %s164, %s180
      %p182 = scmp.eq.s32.totalorder %s25, 0
      %p183 = por %p181, %p182
      %p184 = scmp.le.s32.totalorder 1, %s19
      %p185 = scmp.lt.s32.totalorder %s19, 3
      %p186 = pnand %p184, %p185
      %p187 = pneg %p186
      // Predicated region
      $region9: #{sepconv.1} parent=5 // pred_check
        _
      $region10: #{sepconv.1} parent=5 // pred_check_branch
        %189 = sbr.rel (%p186) target = $region12
      $region11: #{sepconv.1} parent=5 // pred_region
        %s190 = ssub.s32 %s19, 1
        // Predicated region
        $region13: #{sepconv.1} parent=11 // pred_check
          %p191 = pneg %p66
        $region14: #{sepconv.1} parent=11 // pred_check_branch
          %193 = sbr.rel (%p191) target = $region16
        $region15: #{sepconv.1} parent=11 // pred_region
          _
        $region16: #{sepconv.1} parent=11 // pred_fallthru
          _
        // Predicated region
        $region17: #{sepconv.1} parent=11 // pred_check
          %p194 = pneg %p87
        $region18: #{sepconv.1} parent=11 // pred_check_branch
          %196 = sbr.rel (%p194) target = $region20
        $region19: #{sepconv.1} parent=11 // pred_region
          _
        $region20: #{sepconv.1} parent=11 // pred_fallthru
          _
        // Predicated region
        $region21: #{sepconv.1} parent=11 // pred_check
          %p197 = pneg %p108
        $region22: #{sepconv.1} parent=11 // pred_check_branch
          %199 = sbr.rel (%p197) target = $region24
        $region23: #{sepconv.1} parent=11 // pred_region
          _
        $region24: #{sepconv.1} parent=11 // pred_fallthru
          _
        // Predicated region
        $region25: #{sepconv.1} parent=11 // pred_check
          %p200 = pneg %p129
        $region26: #{sepconv.1} parent=11 // pred_check_branch
          %202 = sbr.rel (%p200) target = $region28
        $region27: #{sepconv.1} parent=11 // pred_region
          _
        $region28: #{sepconv.1} parent=11 // pred_fallthru
          _
        // Predicated region
        $region29: #{sepconv.1} parent=11 // pred_check
          %p203 = pneg %p150
        $region30: #{sepconv.1} parent=11 // pred_check_branch
          %205 = sbr.rel (%p203) target = $region32
        $region31: #{sepconv.1} parent=11 // pred_region
          _
        $region32: #{sepconv.1} parent=11 // pred_fallthru
          _
      $region12: #{sepconv.1} parent=5 // pred_fallthru
        _
      %p206 = scmp.lt.s32.totalorder %s19, 2
      // Predicated region
      $region33: #{sepconv.1} parent=5 // pred_check
        %p207 = pneg %p206
      $region34: #{sepconv.1} parent=5 // pred_check_branch
        %209 = sbr.rel (%p207) target = $region36
      $region35: #{sepconv.1} parent=5 // pred_region
        // Predicated region
        $region37: #{sepconv.1} parent=35 // pred_check
          %p210 = pneg %p39
        $region38: #{sepconv.1} parent=35 // pred_check_branch
          %212 = sbr.rel (%p210) target = $region40
        $region39: #{sepconv.1} parent=35 // pred_region
          %p213 = scmp.lt.s32.totalorder %s19, 1
          %s214 = scalar_select %p213, %s19, 1
          %s215 = smul.addr %s214, 28
          %s216 = smul.addr %s215, 4
          %s217 = scalar_lea.vmem %s0, %s216
        $region40: #{sepconv.1} parent=35 // pred_fallthru
          _
      $region36: #{sepconv.1} parent=5 // pred_fallthru
        _
      %p218 = scmp.le.s32.totalorder 1, %s19
      %p219 = scmp.lt.s32.totalorder %s19, 3
      %p220 = pnand %p218, %p219
      %p221 = pneg %p220
      // Predicated region
      $region41: #{sepconv.1} parent=5 // pred_check
        _
      $region42: #{sepconv.1} parent=5 // pred_check_branch
        %223 = sbr.rel (%p220) target = $region44
      $region43: #{sepconv.1} parent=5 // pred_region
        %s224 = ssub.s32 %s19, 1
        %p225 = scmp.lt.s32.totalorder %s24, 1
        %s226 = scalar_select %p225, %s24, 1
        %s227 = smul.addr %s226, 28
        %s228 = smul.addr %s227, 4
        %s229 = scalar_lea.vmem %s0, %s228
        %p230 = pneg %p45
        %p231 = pneg %p42
        %p232 = pneg %p66
        %p233 = pneg %p63
        %p234 = pneg %p87
        %p235 = pneg %p84
        %p236 = pneg %p108
        %p237 = pneg %p105
        %p238 = pneg %p129
        %p239 = pneg %p126
        %p240 = pneg %p150
        %p241 = pneg %p147
        %p242 = pneg %p176
        %p243 = pneg %p173
        %s244 = sand.u32 %s163, 1
        %s245 = scalar_lea.sflag [#allocation6], %s244
        %s246 = sand.u32 %s163, 1
        %s247 = smul.addr %s246, 128
        %s248 = scalar_lea.vmem [#allocation5], %s247
        %p249 = scmp.lt.s32.totalorder %s24, 1
        %s250 = scalar_select %p249, %s24, 1
        %s251 = smul.addr %s250, 28
        %s252 = smul.addr %s251, 4
        %s253 = scalar_lea.vmem %s0, %s252
        %s254 = smul.u32 8, %s24
        %v256 = vld [vmem:[%s253] sm:$0xf]
        %v257 = vld [vmem:[%s253 + $0x4] sm:$0xf]
        %v258 = vld [vmem:[%s253 + $0x8] sm:$0xf]
        %v259 = vld [vmem:[%s253 + $0xc] sm:$0xf]
        %v260 = vld [vmem:[%s253 + $0x10] sm:$0xf]
        %v261 = vld [vmem:[%s253 + $0x14] sm:$0xf]
        %v262 = vld [vmem:[%s253 + $0x18] sm:$0xf]
        %v263 = vld [vmem:[%s253 + $0x1c] sm:$0xf]
        %v264 = vld [vmem:[%s253 + $0x20] sm:$0xf]
        %v265 = vld [vmem:[%s253 + $0x24] sm:$0xf]
        %v266 = vld [vmem:[%s253 + $0x28] sm:$0xf]
        %v267 = vld [vmem:[%s253 + $0x2c] sm:$0xf]
        %v268 = vld [vmem:[%s253 + $0x30] sm:$0xf]
        %v269 = vld [vmem:[%s253 + $0x34] sm:$0xf]
        %v270 = vld [vmem:[%s253 + $0x38] sm:$0xf]
        %v271 = vld [vmem:[%s253 + $0x3c] sm:$0xf]
        %v272 = vld [vmem:[%s253 + $0x40] sm:$0xf]
        %v273 = vld [vmem:[%s253 + $0x44] sm:$0xf]
        %v274 = vld [vmem:[%s253 + $0x48] sm:$0xf]
        %v275 = vld [vmem:[%s253 + $0x4c] sm:$0xf]
        %v276 = vld [vmem:[%s253 + $0x50] sm:$0xf]
        %v277 = vld [vmem:[%s253 + $0x54] sm:$0xf]
        %v278 = vld [vmem:[%s253 + $0x58] sm:$0xf]
        %v279 = vld [vmem:[%s253 + $0x5c] sm:$0xf]
        %v280 = vld [vmem:[%s253 + $0x60] sm:$0xf]
        %v281 = vld [vmem:[%s253 + $0x64] sm:$0xf]
        %v282 = vld [vmem:[%s253 + $0x68] sm:$0xf]
        %v283 = vld [vmem:[%s253 + $0x6c] sm:$0xf]
        %v284 = vld [vmem:[%s1] sm:$0xf]
        %v285 = vld [vmem:[%s1 + $0x4] sm:$0xf]
        %v314 = vunpack.c.l.b16 %v256
        %v315 = vunpack.c.l.b16 %v257
        %v316 = vunpack.c.l.b16 %v258
        %v317 = vunpack.c.l.b16 %v259
        %v318 = vunpack.c.l.b16 %v260
        %v319 = vunpack.c.l.b16 %v261
        %v320 = vunpack.c.l.b16 %v262
        %v321 = vunpack.c.l.b16 %v263
        %v322 = vunpack.c.l.b16 %v264
        %v323 = vunpack.c.l.b16 %v265
        %v324 = vunpack.c.l.b16 %v266
        %v325 = vunpack.c.l.b16 %v267
        %v326 = vunpack.c.l.b16 %v268
        %v327 = vunpack.c.l.b16 %v269
        %v328 = vunpack.c.l.b16 %v270
        %v329 = vunpack.c.l.b16 %v271
        %v330 = vunpack.c.l.b16 %v272
        %v331 = vunpack.c.l.b16 %v273
        %v332 = vunpack.c.l.b16 %v274
        %v333 = vunpack.c.l.b16 %v275
        %v334 = vunpack.c.l.b16 %v276
        %v335 = vunpack.c.l.b16 %v277
        %v336 = vunpack.c.l.b16 %v278
        %v337 = vunpack.c.l.b16 %v279
        %v338 = vunpack.c.l.b16 %v280
        %v339 = vunpack.c.l.b16 %v281
        %v340 = vunpack.c.l.b16 %v282
        %v341 = vunpack.c.l.b16 %v283
        %v342 = vpack.c.b16 %v315, %v314
        %v343 = vpack.c.b16 %v317, %v316
        %v344 = vpack.c.b16 %v319, %v318
        %v345 = vpack.c.b16 %v321, %v320
        %v346 = vpack.c.b16 %v323, %v322
        %v347 = vpack.c.b16 %v325, %v324
        %v348 = vpack.c.b16 %v327, %v326
        %v349 = vpack.c.b16 %v329, %v328
        %v350 = vpack.c.b16 %v331, %v330
        %v351 = vpack.c.b16 %v333, %v332
        %v352 = vpack.c.b16 %v335, %v334
        %v353 = vpack.c.b16 %v337, %v336
        %v354 = vpack.c.b16 %v339, %v338
        %v355 = vpack.c.b16 %v341, %v340
        %v358 = vunpack.c.l.b16 %v284
        %v359 = vunpack.c.l.b16 %v285
        %v360 = vpack.c.b16 %v359, %v358
        %vm362 = vcmask 130048
        %v364 = vsel %vm362, %v342, 0
        %v367 = vsel %vm362, %v343, 0
        %v370 = vsel %vm362, %v344, 0
        %v373 = vsel %vm362, %v345, 0
        %v376 = vsel %vm362, %v346, 0
        %v379 = vsel %vm362, %v347, 0
        %v382 = vsel %vm362, %v348, 0
        %v385 = vsel %vm362, %v349, 0
        %v388 = vsel %vm362, %v350, 0
        %v391 = vsel %vm362, %v351, 0
        %v394 = vsel %vm362, %v352, 0
        %v397 = vsel %vm362, %v353, 0
        %v400 = vsel %vm362, %v354, 0
        %v403 = vsel %vm362, %v355, 0
        %405 = vmatprep.subr.bf16.mxu0 0
        %406 = vmatpush1.bf16.msra.mxu0 %v360
        %407 = vmatprep.subr.bf16.mxu0 0
        %408 = vmatpush1.bf16.msra.mxu0 0
        %409 = vmatprep.subr.bf16.mxu0 0
        %410 = vmatpush1.bf16.msra.mxu0 0
        %411 = vmatprep.subr.bf16.mxu0 0
        %412 = vmatpush1.bf16.msra.mxu0 0
        %413 = vmatprep.subr.bf16.mxu0 0
        %414 = vmatpush1.bf16.msra.mxu0 0
        %415 = vmatprep.subr.bf16.mxu0 0
        %416 = vmatpush1.bf16.msra.mxu0 0
        %417 = vmatprep.subr.bf16.mxu0 0
        %418 = vmatpush1.bf16.msra.mxu0 0
        %419 = vmatprep.subr.bf16.mxu0 0
        %420 = vmatpush1.bf16.msra.mxu0 0
        %421 = vmatprep.subr.bf16.mxu0 0
        %422 = vmatpush1.bf16.msra.mxu0 0
        %423 = vmatprep.subr.bf16.mxu0 0
        %424 = vmatpush1.bf16.msra.mxu0 0
        %425 = vmatprep.subr.bf16.mxu0 0
        %426 = vmatpush1.bf16.msra.mxu0 0
        %427 = vmatprep.subr.bf16.mxu0 0
        %428 = vmatpush1.bf16.msra.mxu0 0
        %429 = vmatprep.subr.bf16.mxu0 0
        %430 = vmatpush1.bf16.msra.mxu0 0
        %431 = vmatprep.subr.bf16.mxu0 0
        %432 = vmatpush1.bf16.msra.mxu0 0
        %433 = vmatprep.subr.bf16.mxu0 0
        %434 = vmatpush1.bf16.msra.mxu0 0
        %435 = vmatprep.subr.bf16.mxu0 0
        %436 = vmatpush1.bf16.msra.mxu0 0
        %437 = vmatprep.mubr.bf16.mxu0 0
        %438 = vmatmul.mubr.bf16.gmra.mrb[0].mxu0 %v364
        %v439 = vpop.f32.mrb[0].mxu0
        %v440 = vadd.f32 0.0, %v439
        %v441 = vpop.f32.mrb[0].mxu0
        %v442 = vpop.f32.mrb[0].mxu0
        %v443 = vadd.f32 0.0, %v442
        %v444 = vpop.f32.mrb[0].mxu0
        %445 = vmatprep.mubr.bf16.mxu0 0
        %446 = vmatmul.mubr.bf16.gmra.mrb[0].mxu0 %v367
        %v447 = vpop.f32.mrb[0].mxu0
        %v448 = vadd.f32 0.0, %v447
        %v449 = vpop.f32.mrb[0].mxu0
        %v450 = vpop.f32.mrb[0].mxu0
        %v451 = vadd.f32 0.0, %v450
        %v452 = vpop.f32.mrb[0].mxu0
        %453 = vmatprep.mubr.bf16.mxu0 0
        %454 = vmatmul.mubr.bf16.gmra.mrb[0].mxu0 %v370
        %v455 = vpop.f32.mrb[0].mxu0
        %v456 = vadd.f32 0.0, %v455
        %v457 = vpop.f32.mrb[0].mxu0
        %v458 = vpop.f32.mrb[0].mxu0
        %v459 = vadd.f32 0.0, %v458
        %v460 = vpop.f32.mrb[0].mxu0
        %461 = vmatprep.mubr.bf16.mxu0 0
        %462 = vmatmul.mubr.bf16.gmra.mrb[0].mxu0 %v373
        %v463 = vpop.f32.mrb[0].mxu0
        %v464 = vadd.f32 0.0, %v463
        %v465 = vpop.f32.mrb[0].mxu0
        %v466 = vpop.f32.mrb[0].mxu0
        %v467 = vadd.f32 0.0, %v466
        %v468 = vpop.f32.mrb[0].mxu0
        %469 = vmatprep.mubr.bf16.mxu0 0
        %470 = vmatmul.mubr.bf16.gmra.mrb[0].mxu0 %v376
        %v471 = vpop.f32.mrb[0].mxu0
        %v472 = vadd.f32 0.0, %v471
        %v473 = vpop.f32.mrb[0].mxu0
        %v474 = vpop.f32.mrb[0].mxu0
        %v475 = vadd.f32 0.0, %v474
        %v476 = vpop.f32.mrb[0].mxu0
        %477 = vmatprep.mubr.bf16.mxu0 0
        %478 = vmatmul.mubr.bf16.gmra.mrb[0].mxu0 %v379
        %v479 = vpop.f32.mrb[0].mxu0
        %v480 = vadd.f32 0.0, %v479
        %v481 = vpop.f32.mrb[0].mxu0
        %v482 = vpop.f32.mrb[0].mxu0
        %v483 = vadd.f32 0.0, %v482
        %v484 = vpop.f32.mrb[0].mxu0
        %485 = vmatprep.mubr.bf16.mxu0 0
        %486 = vmatmul.mubr.bf16.gmra.mrb[0].mxu0 %v382
        %v487 = vpop.f32.mrb[0].mxu0
        %v488 = vadd.f32 0.0, %v487
        %v489 = vpop.f32.mrb[0].mxu0
        %v490 = vpop.f32.mrb[0].mxu0
        %v491 = vadd.f32 0.0, %v490
        %v492 = vpop.f32.mrb[0].mxu0
        %493 = vmatprep.mubr.bf16.mxu0 0
        %494 = vmatmul.mubr.bf16.gmra.mrb[0].mxu0 %v385
        %v495 = vpop.f32.mrb[0].mxu0
        %v496 = vadd.f32 0.0, %v495
        %v497 = vpop.f32.mrb[0].mxu0
        %v498 = vpop.f32.mrb[0].mxu0
        %v499 = vadd.f32 0.0, %v498
        %v500 = vpop.f32.mrb[0].mxu0
        %501 = vmatprep.mubr.bf16.mxu0 0
        %502 = vmatmul.mubr.bf16.gmra.mrb[0].mxu0 %v388
        %v503 = vpop.f32.mrb[0].mxu0
        %v504 = vadd.f32 0.0, %v503
        %v505 = vpop.f32.mrb[0].mxu0
        %v506 = vpop.f32.mrb[0].mxu0
        %v507 = vadd.f32 0.0, %v506
        %v508 = vpop.f32.mrb[0].mxu0
        %509 = vmatprep.mubr.bf16.mxu0 0
        %510 = vmatmul.mubr.bf16.gmra.mrb[0].mxu0 %v391
        %v511 = vpop.f32.mrb[0].mxu0
        %v512 = vadd.f32 0.0, %v511
        %v513 = vpop.f32.mrb[0].mxu0
        %v514 = vpop.f32.mrb[0].mxu0
        %v515 = vadd.f32 0.0, %v514
        %v516 = vpop.f32.mrb[0].mxu0
        %517 = vmatprep.mubr.bf16.mxu0 0
        %518 = vmatmul.mubr.bf16.gmra.mrb[0].mxu0 %v394
        %v519 = vpop.f32.mrb[0].mxu0
        %v520 = vadd.f32 0.0, %v519
        %v521 = vpop.f32.mrb[0].mxu0
        %v522 = vpop.f32.mrb[0].mxu0
        %v523 = vadd.f32 0.0, %v522
        %v524 = vpop.f32.mrb[0].mxu0
        %525 = vmatprep.mubr.bf16.mxu0 0
        %526 = vmatmul.mubr.bf16.gmra.mrb[0].mxu0 %v397
        %v527 = vpop.f32.mrb[0].mxu0
        %v528 = vadd.f32 0.0, %v527
        %v529 = vpop.f32.mrb[0].mxu0
        %v530 = vpop.f32.mrb[0].mxu0
        %v531 = vadd.f32 0.0, %v530
        %v532 = vpop.f32.mrb[0].mxu0
        %533 = vmatprep.mubr.bf16.mxu0 0
        %534 = vmatmul.mubr.bf16.gmra.mrb[0].mxu0 %v400
        %v535 = vpop.f32.mrb[0].mxu0
        %v536 = vadd.f32 0.0, %v535
        %v537 = vpop.f32.mrb[0].mxu0
        %v538 = vpop.f32.mrb[0].mxu0
        %v539 = vadd.f32 0.0, %v538
        %v540 = vpop.f32.mrb[0].mxu0
        %541 = vmatprep.mubr.bf16.mxu0 0
        %542 = vmatmul.mubr.bf16.gmra.mrb[0].mxu0 %v403
        %v543 = vpop.f32.mrb[0].mxu0
        %v544 = vadd.f32 0.0, %v543
        %v545 = vpop.f32.mrb[0].mxu0
        %v546 = vpop.f32.mrb[0].mxu0
        %v547 = vadd.f32 0.0, %v546
        %v548 = vpop.f32.mrb[0].mxu0
        %549 = vdwg.mxu0
        %v550 = vld [vmem:[#allocation3] sm:$0x1]
        %v551 = vmax.f32 %v440, 0.0
        %v552 = vmax.f32 %v443, 0.0
        %v553 = vmax.f32 %v448, 0.0
        %v554 = vmax.f32 %v451, 0.0
        %v555 = vmax.f32 %v456, 0.0
        %v556 = vmax.f32 %v459, 0.0
        %v557 = vmax.f32 %v464, 0.0
        %v558 = vmax.f32 %v467, 0.0
        %v559 = vmax.f32 %v472, 0.0
        %v560 = vmax.f32 %v475, 0.0
        %v561 = vmax.f32 %v480, 0.0
        %v562 = vmax.f32 %v483, 0.0
        %v563 = vmax.f32 %v488, 0.0
        %v564 = vmax.f32 %v491, 0.0
        %v565 = vmax.f32 %v496, 0.0
        %v566 = vmax.f32 %v499, 0.0
        %v567 = vmax.f32 %v504, 0.0
        %v568 = vmax.f32 %v507, 0.0
        %v569 = vmax.f32 %v512, 0.0
        %v570 = vmax.f32 %v515, 0.0
        %v571 = vmax.f32 %v520, 0.0
        %v572 = vmax.f32 %v523, 0.0
        %v573 = vmax.f32 %v528, 0.0
        %v574 = vmax.f32 %v531, 0.0
        %v575 = vmax.f32 %v536, 0.0
        %v576 = vmax.f32 %v539, 0.0
        %v577 = vmax.f32 %v544, 0.0
        %v578 = vmax.f32 %v547, 0.0
        %v579 = vmul.f32 %v551, %v551
        %v580 = vmul.f32 %v552, %v552
        %v581 = vmul.f32 %v553, %v553
        %v582 = vmul.f32 %v554, %v554
        %v583 = vmul.f32 %v555, %v555
        %v584 = vmul.f32 %v556, %v556
        %v585 = vmul.f32 %v557, %v557
        %v586 = vmul.f32 %v558, %v558
        %v587 = vmul.f32 %v559, %v559
        %v588 = vmul.f32 %v560, %v560
        %v589 = vmul.f32 %v561, %v561
        %v590 = vmul.f32 %v562, %v562
        %v591 = vmul.f32 %v563, %v563
        %v592 = vmul.f32 %v564, %v564
        %v593 = vmul.f32 %v565, %v565
        %v594 = vmul.f32 %v566, %v566
        %v595 = vmul.f32 %v567, %v567
        %v596 = vmul.f32 %v568, %v568
        %v597 = vmul.f32 %v569, %v569
        %v598 = vmul.f32 %v570, %v570
        %v599 = vmul.f32 %v571, %v571
        %v600 = vmul.f32 %v572, %v572
        %v601 = vmul.f32 %v573, %v573
        %v602 = vmul.f32 %v574, %v574
        %v603 = vmul.f32 %v575, %v575
        %v604 = vmul.f32 %v576, %v576
        %v605 = vmul.f32 %v577, %v577
        %v606 = vmul.f32 %v578, %v578
        %v608 = vlaneseq
        %v609 = vshrl.u32 %v608, 7
        %v610 = vsub.s32 0, %v609
        %v611 = vrot.slane %v550, %v610
        %612 = vset.pattern.permute.xlu0 0
        %613 = vperm.xlu0 %612, %v611
        %v614 = vpop.permute.xlu0 %613
        %v616 = vmul.f32 %v614, %v579
        %v617 = vmul.f32 %v614, %v580
        %v618 = vmul.f32 %v614, %v581
        %v619 = vmul.f32 %v614, %v582
        %v620 = vmul.f32 %v614, %v583
        %v621 = vmul.f32 %v614, %v584
        %v622 = vmul.f32 %v614, %v585
        %v623 = vmul.f32 %v614, %v586
        %v624 = vmul.f32 %v614, %v587
        %v625 = vmul.f32 %v614, %v588
        %v626 = vmul.f32 %v614, %v589
        %v627 = vmul.f32 %v614, %v590
        %v628 = vmul.f32 %v614, %v591
        %v629 = vmul.f32 %v614, %v592
        %v630 = vmul.f32 %v614, %v593
        %v631 = vmul.f32 %v614, %v594
        %v632 = vmul.f32 %v614, %v595
        %v633 = vmul.f32 %v614, %v596
        %v634 = vmul.f32 %v614, %v597
        %v635 = vmul.f32 %v614, %v598
        %v636 = vmul.f32 %v614, %v599
        %v637 = vmul.f32 %v614, %v600
        %v638 = vmul.f32 %v614, %v601
        %v639 = vmul.f32 %v614, %v602
        %v640 = vmul.f32 %v614, %v603
        %v641 = vmul.f32 %v614, %v604
        %v642 = vmul.f32 %v614, %v605
        %v643 = vmul.f32 %v614, %v606
        %v644 = vld [vmem:[#allocation4] sm:$0x1]
        %v646 = vlaneseq
        %v647 = vshrl.u32 %v646, 7
        %v648 = vsub.s32 0, %v647
        %v649 = vrot.slane %v644, %v648
        %650 = vset.pattern.permute.xlu0 0
        %651 = vperm.xlu0 %650, %v649
        %v652 = vpop.permute.xlu0 %651
        %v654 = vadd.f32 %v616, %v652
        %v655 = vadd.f32 %v617, %v652
        %v656 = vadd.f32 %v618, %v652
        %v657 = vadd.f32 %v619, %v652
        %v658 = vadd.f32 %v620, %v652
        %v659 = vadd.f32 %v621, %v652
        %v660 = vadd.f32 %v622, %v652
        %v661 = vadd.f32 %v623, %v652
        %v662 = vadd.f32 %v624, %v652
        %v663 = vadd.f32 %v625, %v652
        %v664 = vadd.f32 %v626, %v652
        %v665 = vadd.f32 %v627, %v652
        %v666 = vadd.f32 %v628, %v652
        %v667 = vadd.f32 %v629, %v652
        %v668 = vadd.f32 %v630, %v652
        %v669 = vadd.f32 %v631, %v652
        %v670 = vadd.f32 %v632, %v652
        %v671 = vadd.f32 %v633, %v652
        %v672 = vadd.f32 %v634, %v652
        %v673 = vadd.f32 %v635, %v652
        %v674 = vadd.f32 %v636, %v652
        %v675 = vadd.f32 %v637, %v652
        %v676 = vadd.f32 %v638, %v652
        %v677 = vadd.f32 %v639, %v652
        %v678 = vadd.f32 %v640, %v652
        %v679 = vadd.f32 %v641, %v652
        %v680 = vadd.f32 %v642, %v652
        %v681 = vadd.f32 %v643, %v652
        %vm682 = vcmask 261120
        %683 = vst.msk [vmem:[#allocation2 + $0x8] sm:$0xff] %vm682, %v654
        %684 = vst.msk [vmem:[#allocation2 + $0x10] sm:$0xff] %vm682, %v655
        %685 = vst.msk [vmem:[#allocation2 + $0x28] sm:$0xff] %vm682, %v656
        %686 = vst.msk [vmem:[#allocation2 + $0x30] sm:$0xff] %vm682, %v657
        %687 = vst.msk [vmem:[#allocation2 + $0x48] sm:$0xff] %vm682, %v658
        %688 = vst.msk [vmem:[#allocation2 + $0x50] sm:$0xff] %vm682, %v659
        %689 = vst.msk [vmem:[#allocation2 + $0x68] sm:$0xff] %vm682, %v660
        %690 = vst.msk [vmem:[#allocation2 + $0x70] sm:$0xff] %vm682, %v661
        %691 = vst.msk [vmem:[#allocation2 + $0x88] sm:$0xff] %vm682, %v662
        %692 = vst.msk [vmem:[#allocation2 + $0x90] sm:$0xff] %vm682, %v663
        %693 = vst.msk [vmem:[#allocation2 + $0xa8] sm:$0xff] %vm682, %v664
        %694 = vst.msk [vmem:[#allocation2 + $0xb0] sm:$0xff] %vm682, %v665
        %695 = vst.msk [vmem:[#allocation2 + $0xc8] sm:$0xff] %vm682, %v666
        %696 = vst.msk [vmem:[#allocation2 + $0xd0] sm:$0xff] %vm682, %v667
        %697 = vst.msk [vmem:[#allocation2 + $0xe8] sm:$0xff] %vm682, %v668
        %698 = vst.msk [vmem:[#allocation2 + $0xf0] sm:$0xff] %vm682, %v669
        %699 = vst.msk [vmem:[#allocation2 + $0x108] sm:$0xff] %vm682, %v670
        %700 = vst.msk [vmem:[#allocation2 + $0x110] sm:$0xff] %vm682, %v671
        %701 = vst.msk [vmem:[#allocation2 + $0x128] sm:$0xff] %vm682, %v672
        %702 = vst.msk [vmem:[#allocation2 + $0x130] sm:$0xff] %vm682, %v673
        %703 = vst.msk [vmem:[#allocation2 + $0x148] sm:$0xff] %vm682, %v674
        %704 = vst.msk [vmem:[#allocation2 + $0x150] sm:$0xff] %vm682, %v675
        %705 = vst.msk [vmem:[#allocation2 + $0x168] sm:$0xff] %vm682, %v676
        %706 = vst.msk [vmem:[#allocation2 + $0x170] sm:$0xff] %vm682, %v677
        %707 = vst.msk [vmem:[#allocation2 + $0x188] sm:$0xff] %vm682, %v678
        %708 = vst.msk [vmem:[#allocation2 + $0x190] sm:$0xff] %vm682, %v679
        %709 = vst.msk [vmem:[#allocation2 + $0x1a8] sm:$0xff] %vm682, %v680
        %710 = vst.msk [vmem:[#allocation2 + $0x1b0] sm:$0xff] %vm682, %v681
        %711 = vst.msk [vmem:[#allocation2] sm:$0xff] %vm682, 0.0
        %712 = vst.msk [vmem:[#allocation2 + $0x20] sm:$0xff] %vm682, 0.0
        %713 = vst.msk [vmem:[#allocation2 + $0x40] sm:$0xff] %vm682, 0.0
        %714 = vst.msk [vmem:[#allocation2 + $0x60] sm:$0xff] %vm682, 0.0
        %715 = vst.msk [vmem:[#allocation2 + $0x80] sm:$0xff] %vm682, 0.0
        %716 = vst.msk [vmem:[#allocation2 + $0xa0] sm:$0xff] %vm682, 0.0
        %717 = vst.msk [vmem:[#allocation2 + $0xc0] sm:$0xff] %vm682, 0.0
        %718 = vst.msk [vmem:[#allocation2 + $0xe0] sm:$0xff] %vm682, 0.0
        %719 = vst.msk [vmem:[#allocation2 + $0x100] sm:$0xff] %vm682, 0.0
        %720 = vst.msk [vmem:[#allocation2 + $0x120] sm:$0xff] %vm682, 0.0
        %721 = vst.msk [vmem:[#allocation2 + $0x140] sm:$0xff] %vm682, 0.0
        %722 = vst.msk [vmem:[#allocation2 + $0x160] sm:$0xff] %vm682, 0.0
        %723 = vst.msk [vmem:[#allocation2 + $0x180] sm:$0xff] %vm682, 0.0
        %724 = vst.msk [vmem:[#allocation2 + $0x1a0] sm:$0xff] %vm682, 0.0
        %725 = vst.msk [vmem:[#allocation2 + $0x18] sm:$0xff] %vm682, 0.0
        %726 = vst.msk [vmem:[#allocation2 + $0x38] sm:$0xff] %vm682, 0.0
        %727 = vst.msk [vmem:[#allocation2 + $0x58] sm:$0xff] %vm682, 0.0
        %728 = vst.msk [vmem:[#allocation2 + $0x78] sm:$0xff] %vm682, 0.0
        %729 = vst.msk [vmem:[#allocation2 + $0x98] sm:$0xff] %vm682, 0.0
        %730 = vst.msk [vmem:[#allocation2 + $0xb8] sm:$0xff] %vm682, 0.0
        %731 = vst.msk [vmem:[#allocation2 + $0xd8] sm:$0xff] %vm682, 0.0
        %732 = vst.msk [vmem:[#allocation2 + $0xf8] sm:$0xff] %vm682, 0.0
        %733 = vst.msk [vmem:[#allocation2 + $0x118] sm:$0xff] %vm682, 0.0
        %734 = vst.msk [vmem:[#allocation2 + $0x138] sm:$0xff] %vm682, 0.0
        %735 = vst.msk [vmem:[#allocation2 + $0x158] sm:$0xff] %vm682, 0.0
        %736 = vst.msk [vmem:[#allocation2 + $0x178] sm:$0xff] %vm682, 0.0
        %737 = vst.msk [vmem:[#allocation2 + $0x198] sm:$0xff] %vm682, 0.0
        %738 = vst.msk [vmem:[#allocation2 + $0x1b8] sm:$0xff] %vm682, 0.0
        %p739 = scmp.eq.s32.totalorder %s24, 0
        // Predicated region
        $region45: #{sepconv.1} parent=43 // pred_check
          %p740 = pneg %p739
        $region46: #{sepconv.1} parent=43 // pred_check_branch
          %742 = sbr.rel (%p740) target = $region48
        $region47: #{sepconv.1} parent=43 // pred_region
          %743 = vst.msk [vmem:[#allocation2] sm:$0xff] %vm682, 0.0
          %744 = vst.msk [vmem:[#allocation2 + $0x8] sm:$0xff] %vm682, 0.0
          %745 = vst.msk [vmem:[#allocation2 + $0x10] sm:$0xff] %vm682, 0.0
          %746 = vst.msk [vmem:[#allocation2 + $0x18] sm:$0xff] %vm682, 0.0
          %747 = vst.msk [vmem:[#allocation2 + $0x20] sm:$0xff] %vm682, 0.0
          %748 = vst.msk [vmem:[#allocation2 + $0x28] sm:$0xff] %vm682, 0.0
          %749 = vst.msk [vmem:[#allocation2 + $0x30] sm:$0xff] %vm682, 0.0
          %750 = vst.msk [vmem:[#allocation2 + $0x38] sm:$0xff] %vm682, 0.0
          %751 = vst.msk [vmem:[#allocation2 + $0x40] sm:$0xff] %vm682, 0.0
          %752 = vst.msk [vmem:[#allocation2 + $0x48] sm:$0xff] %vm682, 0.0
          %753 = vst.msk [vmem:[#allocation2 + $0x50] sm:$0xff] %vm682, 0.0
          %754 = vst.msk [vmem:[#allocation2 + $0x58] sm:$0xff] %vm682, 0.0
        $region48: #{sepconv.1} parent=43 // pred_fallthru
          _
        %p755 = scmp.eq.s32.totalorder %s24, 1
        // Predicated region
        $region49: #{sepconv.1} parent=43 // pred_check
          %p756 = pneg %p755
        $region50: #{sepconv.1} parent=43 // pred_check_branch
          %758 = sbr.rel (%p756) target = $region52
        $region51: #{sepconv.1} parent=43 // pred_region
          %s759 = scalar_lea.vmem [#allocation2], 352
          %760 = vst.msk [vmem:[%s759] sm:$0xff] %vm682, 0.0
          %761 = vst.msk [vmem:[%s759 + $0x8] sm:$0xff] %vm682, 0.0
          %762 = vst.msk [vmem:[%s759 + $0x10] sm:$0xff] %vm682, 0.0
          %763 = vst.msk [vmem:[%s759 + $0x18] sm:$0xff] %vm682, 0.0
          %764 = vst.msk [vmem:[%s759 + $0x20] sm:$0xff] %vm682, 0.0
          %765 = vst.msk [vmem:[%s759 + $0x28] sm:$0xff] %vm682, 0.0
          %766 = vst.msk [vmem:[%s759 + $0x30] sm:$0xff] %vm682, 0.0
          %767 = vst.msk [vmem:[%s759 + $0x38] sm:$0xff] %vm682, 0.0
          %768 = vst.msk [vmem:[%s759 + $0x40] sm:$0xff] %vm682, 0.0
          %769 = vst.msk [vmem:[%s759 + $0x48] sm:$0xff] %vm682, 0.0
          %770 = vst.msk [vmem:[%s759 + $0x50] sm:$0xff] %vm682, 0.0
          %771 = vst.msk [vmem:[%s759 + $0x58] sm:$0xff] %vm682, 0.0
        $region52: #{sepconv.1} parent=43 // pred_fallthru
          _
        %v772 = vld [vmem:[%s4] sm:$0xff]
        %v773 = vld [vmem:[%s4 + $0x8] sm:$0xff]
        %v774 = vld [vmem:[%s4 + $0x10] sm:$0xff]
        %v775 = vld [vmem:[%s4 + $0x18] sm:$0xff]
        %v776 = vld [vmem:[%s4 + $0x20] sm:$0xff]
        %v777 = vld [vmem:[%s4 + $0x28] sm:$0xff]
        %v778 = vld [vmem:[%s4 + $0x30] sm:$0x1]
        %v779 = vld [vmem:[#allocation2] sm:$0xff]
        %v780 = vld [vmem:[#allocation2 + $0x8] sm:$0xff]
        %v781 = vld [vmem:[#allocation2 + $0x10] sm:$0xff]
        %v782 = vld [vmem:[#allocation2 + $0x18] sm:$0xff]
        %v783 = vld [vmem:[#allocation2 + $0x20] sm:$0xff]
        %v784 = vld [vmem:[#allocation2 + $0x28] sm:$0xff]
        %v785 = vld [vmem:[#allocation2 + $0x30] sm:$0xff]
        %v786 = vld [vmem:[#allocation2 + $0x38] sm:$0xff]
        %v787 = vld [vmem:[#allocation2 + $0x40] sm:$0xff]
        %v788 = vld [vmem:[#allocation2 + $0x48] sm:$0xff]
        %v789 = vld [vmem:[#allocation2 + $0x50] sm:$0xff]
        %v790 = vld [vmem:[#allocation2 + $0x58] sm:$0xff]
        %v791 = vld [vmem:[#allocation2 + $0x60] sm:$0xff]
        %v792 = vld [vmem:[#allocation2 + $0x68] sm:$0xff]
        %v793 = vld [vmem:[#allocation2 + $0x70] sm:$0xff]
        %v794 = vld [vmem:[#allocation2 + $0x78] sm:$0xff]
        %v795 = vld [vmem:[#allocation2 + $0x80] sm:$0xff]
        %v796 = vld [vmem:[#allocation2 + $0x88] sm:$0xff]
        %v797 = vld [vmem:[#allocation2 + $0x90] sm:$0xff]
        %v798 = vld [vmem:[#allocation2 + $0x98] sm:$0xff]
        %v799 = vld [vmem:[#allocation2 + $0xa0] sm:$0xff]
        %v800 = vld [vmem:[#allocation2 + $0xa8] sm:$0xff]
        %v801 = vld [vmem:[#allocation2 + $0xb0] sm:$0xff]
        %v802 = vld [vmem:[#allocation2 + $0xb8] sm:$0xff]
        %v803 = vld [vmem:[#allocation2 + $0xc0] sm:$0xff]
        %v804 = vld [vmem:[#allocation2 + $0xc8] sm:$0xff]
        %v805 = vld [vmem:[#allocation2 + $0xd0] sm:$0xff]
        %v806 = vld [vmem:[#allocation2 + $0xd8] sm:$0xff]
        %v807 = vld [vmem:[#allocation2 + $0xe0] sm:$0xff]
        %v808 = vld [vmem:[#allocation2 + $0xe8] sm:$0xff]
        %v809 = vld [vmem:[#allocation2 + $0xf0] sm:$0xff]
        %v810 = vld [vmem:[#allocation2 + $0xf8] sm:$0xff]
        %v811 = vlaneseq
        %v812 = vshrl.u32 %v811, 7
        %v813 = vsub.s32 0, %v812
        %v814 = vrot.slane %v772, %v813
        %v815 = vmul.f32 %v779, %v814
        %v816 = vmul.f32 %v780, %v814
        %v817 = vmul.f32 %v781, %v814
        %v818 = vmul.f32 %v783, %v814
        %v819 = vmul.f32 %v784, %v814
        %v820 = vmul.f32 %v785, %v814
        %v821 = vmul.f32 %v787, %v814
        %v822 = vmul.f32 %v788, %v814
        %v823 = vmul.f32 %v789, %v814
        %v824 = vmul.f32 %v791, %v814
        %v825 = vmul.f32 %v792, %v814
        %v826 = vmul.f32 %v793, %v814
        %v827 = vmul.f32 %v795, %v814
        %v828 = vmul.f32 %v796, %v814
        %v829 = vmul.f32 %v797, %v814
        %v830 = vmul.f32 %v799, %v814
        %v831 = vmul.f32 %v800, %v814
        %v832 = vmul.f32 %v801, %v814
        %v833 = vmul.f32 %v803, %v814
        %v834 = vmul.f32 %v804, %v814
        %v835 = vmul.f32 %v805, %v814
        %v836 = vmul.f32 %v807, %v814
        %v837 = vmul.f32 %v808, %v814
        %v838 = vmul.f32 %v809, %v814
        %v839 = vadd.f32 %v815, 0.0
        %v840 = vadd.f32 %v816, 0.0
        %v841 = vadd.f32 %v817, 0.0
        %v842 = vadd.f32 %v818, 0.0
        %v843 = vadd.f32 %v819, 0.0
        %v844 = vadd.f32 %v820, 0.0
        %v845 = vadd.f32 %v821, 0.0
        %v846 = vadd.f32 %v822, 0.0
        %v847 = vadd.f32 %v823, 0.0
        %v848 = vadd.f32 %v824, 0.0
        %v849 = vadd.f32 %v825, 0.0
        %v850 = vadd.f32 %v826, 0.0
        %v851 = vadd.f32 %v827, 0.0
        %v852 = vadd.f32 %v828, 0.0
        %v853 = vadd.f32 %v829, 0.0
        %v854 = vadd.f32 %v830, 0.0
        %v855 = vadd.f32 %v831, 0.0
        %v856 = vadd.f32 %v832, 0.0
        %v857 = vadd.f32 %v833, 0.0
        %v858 = vadd.f32 %v834, 0.0
        %v859 = vadd.f32 %v835, 0.0
        %v860 = vadd.f32 %v836, 0.0
        %v861 = vadd.f32 %v837, 0.0
        %v862 = vadd.f32 %v838, 0.0
        %v863 = vlaneseq
        %v864 = vshrl.u32 %v863, 7
        %v865 = vsub.s32 1, %v864
        %v866 = vrot.slane %v772, %v865
        %v867 = vmul.f32 %v779, %v866
        %v868 = vmul.f32 %v780, %v866
        %v869 = vmul.f32 %v781, %v866
        %v870 = vmul.f32 %v783, %v866
        %v871 = vmul.f32 %v784, %v866
        %v872 = vmul.f32 %v785, %v866
        %v873 = vmul.f32 %v787, %v866
        %v874 = vmul.f32 %v788, %v866
        %v875 = vmul.f32 %v789, %v866
        %v876 = vmul.f32 %v791, %v866
        %v877 = vmul.f32 %v792, %v866
        %v878 = vmul.f32 %v793, %v866
        %v879 = vmul.f32 %v795, %v866
        %v880 = vmul.f32 %v796, %v866
        %v881 = vmul.f32 %v797, %v866
        %v882 = vmul.f32 %v799, %v866
        %v883 = vmul.f32 %v800, %v866
        %v884 = vmul.f32 %v801, %v866
        %v885 = vmul.f32 %v803, %v866
        %v886 = vmul.f32 %v804, %v866
        %v887 = vmul.f32 %v805, %v866
        %v888 = vmul.f32 %v807, %v866
        %v889 = vmul.f32 %v808, %v866
        %v890 = vmul.f32 %v809, %v866
        %vm915 = vcmask 1046528
        %v916 = vrot.slane %v867, 1
        %v917 = vrot.slane %v868, 1
        %v918 = vsel %vm915, %v916, %v917
        %v919 = vrot.slane %v869, 1
        %v920 = vsel %vm915, %v917, %v919
        %v921 = vrot.slane %v870, 1
        %v922 = vrot.slane %v871, 1
        %v923 = vsel %vm915, %v921, %v922
        %v924 = vrot.slane %v872, 1
        %v925 = vsel %vm915, %v922, %v924
        %v926 = vrot.slane %v873, 1
        %v927 = vrot.slane %v874, 1
        %v928 = vsel %vm915, %v926, %v927
        %v929 = vrot.slane %v875, 1
        %v930 = vsel %vm915, %v927, %v929
        %v931 = vrot.slane %v876, 1
        %v932 = vrot.slane %v877, 1
        %v933 = vsel %vm915, %v931, %v932
        %v934 = vrot.slane %v878, 1
        %v935 = vsel %vm915, %v932, %v934
        %v936 = vrot.slane %v879, 1
        %v937 = vrot.slane %v880, 1
        %v938 = vsel %vm915, %v936, %v937
        %v939 = vrot.slane %v881, 1
        %v940 = vsel %vm915, %v937, %v939
        %v941 = vrot.slane %v882, 1
        %v942 = vrot.slane %v883, 1
        %v943 = vsel %vm915, %v941, %v942
        %v944 = vrot.slane %v884, 1
        %v945 = vsel %vm915, %v942, %v944
        %v946 = vrot.slane %v885, 1
        %v947 = vrot.slane %v886, 1
        %v948 = vsel %vm915, %v946, %v947
        %v949 = vrot.slane %v887, 1
        %v950 = vsel %vm915, %v947, %v949
        %v951 = vrot.slane %v888, 1
        %v952 = vrot.slane %v889, 1
        %v953 = vsel %vm915, %v951, %v952
        %v954 = vrot.slane %v890, 1
        %v955 = vsel %vm915, %v952, %v954
        %v980 = vadd.f32 %v839, %v918
        %v981 = vadd.f32 %v840, %v920
        %v982 = vadd.f32 %v841, %v919
        %v983 = vadd.f32 %v842, %v923
        %v984 = vadd.f32 %v843, %v925
        %v985 = vadd.f32 %v844, %v924
        %v986 = vadd.f32 %v845, %v928
        %v987 = vadd.f32 %v846, %v930
        %v988 = vadd.f32 %v847, %v929
        %v989 = vadd.f32 %v848, %v933
        %v990 = vadd.f32 %v849, %v935
        %v991 = vadd.f32 %v850, %v934
        %v992 = vadd.f32 %v851, %v938
        %v993 = vadd.f32 %v852, %v940
        %v994 = vadd.f32 %v853, %v939
        %v995 = vadd.f32 %v854, %v943
        %v996 = vadd.f32 %v855, %v945
        %v997 = vadd.f32 %v856, %v944
        %v998 = vadd.f32 %v857, %v948
        %v999 = vadd.f32 %v858, %v950
        %v1000 = vadd.f32 %v859, %v949
        %v1001 = vadd.f32 %v860, %v953
        %v1002 = vadd.f32 %v861, %v955
        %v1003 = vadd.f32 %v862, %v954
        %v1004 = vlaneseq
        %v1005 = vshrl.u32 %v1004, 7
        %v1006 = vsub.s32 2, %v1005
        %v1007 = vrot.slane %v772, %v1006
        %v1008 = vmul.f32 %v779, %v1007
        %v1009 = vmul.f32 %v780, %v1007
        %v1010 = vmul.f32 %v781, %v1007
        %v1011 = vmul.f32 %v783, %v1007
        %v1012 = vmul.f32 %v784, %v1007
        %v1013 = vmul.f32 %v785, %v1007
        %v1014 = vmul.f32 %v787, %v1007
        %v1015 = vmul.f32 %v788, %v1007
        %v1016 = vmul.f32 %v789, %v1007
        %v1017 = vmul.f32 %v791, %v1007
        %v1018 = vmul.f32 %v792, %v1007
        %v1019 = vmul.f32 %v793, %v1007
        %v1020 = vmul.f32 %v795, %v1007
        %v1021 = vmul.f32 %v796, %v1007
        %v1022 = vmul.f32 %v797, %v1007
        %v1023 = vmul.f32 %v799, %v1007
        %v1024 = vmul.f32 %v800, %v1007
        %v1025 = vmul.f32 %v801, %v1007
        %v1026 = vmul.f32 %v803, %v1007
        %v1027 = vmul.f32 %v804, %v1007
        %v1028 = vmul.f32 %v805, %v1007
        %v1029 = vmul.f32 %v807, %v1007
        %v1030 = vmul.f32 %v808, %v1007
        %v1031 = vmul.f32 %v809, %v1007
        %vm1056 = vcmask 1045504
        %v1057 = vrot.slane %v1008, 2
        %v1058 = vrot.slane %v1009, 2
        %v1059 = vsel %vm1056, %v1057, %v1058
        %v1060 = vrot.slane %v1010, 2
        %v1061 = vsel %vm1056, %v1058, %v1060
        %v1062 = vrot.slane %v1011, 2
        %v1063 = vrot.slane %v1012, 2
        %v1064 = vsel %vm1056, %v1062, %v1063
        %v1065 = vrot.slane %v1013, 2
        %v1066 = vsel %vm1056, %v1063, %v1065
        %v1067 = vrot.slane %v1014, 2
        %v1068 = vrot.slane %v1015, 2
        %v1069 = vsel %vm1056, %v1067, %v1068
        %v1070 = vrot.slane %v1016, 2
        %v1071 = vsel %vm1056, %v1068, %v1070
        %v1072 = vrot.slane %v1017, 2
        %v1073 = vrot.slane %v1018, 2
        %v1074 = vsel %vm1056, %v1072, %v1073
        %v1075 = vrot.slane %v1019, 2
        %v1076 = vsel %vm1056, %v1073, %v1075
        %v1077 = vrot.slane %v1020, 2
        %v1078 = vrot.slane %v1021, 2
        %v1079 = vsel %vm1056, %v1077, %v1078
        %v1080 = vrot.slane %v1022, 2
        %v1081 = vsel %vm1056, %v1078, %v1080
        %v1082 = vrot.slane %v1023, 2
        %v1083 = vrot.slane %v1024, 2
        %v1084 = vsel %vm1056, %v1082, %v1083
        %v1085 = vrot.slane %v1025, 2
        %v1086 = vsel %vm1056, %v1083, %v1085
        %v1087 = vrot.slane %v1026, 2
        %v1088 = vrot.slane %v1027, 2
        %v1089 = vsel %vm1056, %v1087, %v1088
        %v1090 = vrot.slane %v1028, 2
        %v1091 = vsel %vm1056, %v1088, %v1090
        %v1092 = vrot.slane %v1029, 2
        %v1093 = vrot.slane %v1030, 2
        %v1094 = vsel %vm1056, %v1092, %v1093
        %v1095 = vrot.slane %v1031, 2
        %v1096 = vsel %vm1056, %v1093, %v1095
        %v1121 = vadd.f32 %v980, %v1059
        %v1122 = vadd.f32 %v981, %v1061
        %v1123 = vadd.f32 %v982, %v1060
        %v1124 = vadd.f32 %v983, %v1064
        %v1125 = vadd.f32 %v984, %v1066
        %v1126 = vadd.f32 %v985, %v1065
        %v1127 = vadd.f32 %v986, %v1069
        %v1128 = vadd.f32 %v987, %v1071
        %v1129 = vadd.f32 %v988, %v1070
        %v1130 = vadd.f32 %v989, %v1074
        %v1131 = vadd.f32 %v990, %v1076
        %v1132 = vadd.f32 %v991, %v1075
        %v1133 = vadd.f32 %v992, %v1079
        %v1134 = vadd.f32 %v993, %v1081
        %v1135 = vadd.f32 %v994, %v1080
        %v1136 = vadd.f32 %v995, %v1084
        %v1137 = vadd.f32 %v996, %v1086
        %v1138 = vadd.f32 %v997, %v1085
        %v1139 = vadd.f32 %v998, %v1089
        %v1140 = vadd.f32 %v999, %v1091
        %v1141 = vadd.f32 %v1000, %v1090
        %v1142 = vadd.f32 %v1001, %v1094
        %v1143 = vadd.f32 %v1002, %v1096
        %v1144 = vadd.f32 %v1003, %v1095
        %v1145 = vlaneseq
        %v1146 = vshrl.u32 %v1145, 7
        %v1147 = vsub.s32 3, %v1146
        %v1148 = vrot.slane %v772, %v1147
        %v1149 = vmul.f32 %v780, %v1148
        %v1150 = vmul.f32 %v781, %v1148
        %v1151 = vmul.f32 %v784, %v1148
        %v1152 = vmul.f32 %v785, %v1148
        %v1153 = vmul.f32 %v788, %v1148
        %v1154 = vmul.f32 %v789, %v1148
        %v1155 = vmul.f32 %v792, %v1148
        %v1156 = vmul.f32 %v793, %v1148
        %v1157 = vmul.f32 %v796, %v1148
        %v1158 = vmul.f32 %v797, %v1148
        %v1159 = vmul.f32 %v800, %v1148
        %v1160 = vmul.f32 %v801, %v1148
        %v1161 = vmul.f32 %v804, %v1148
        %v1162 = vmul.f32 %v805, %v1148
        %v1163 = vmul.f32 %v808, %v1148
        %v1164 = vmul.f32 %v809, %v1148
        %vm1181 = vcmask 1044480
        %v1182 = vrot.slane %v1149, 3
        %v1183 = vrot.slane %v1150, 3
        %v1184 = vsel %vm1181, %v1182, %v1183
        %v1185 = vrot.slane %v1151, 3
        %v1186 = vrot.slane %v1152, 3
        %v1187 = vsel %vm1181, %v1185, %v1186
        %v1188 = vrot.slane %v1153, 3
        %v1189 = vrot.slane %v1154, 3
        %v1190 = vsel %vm1181, %v1188, %v1189
        %v1191 = vrot.slane %v1155, 3
        %v1192 = vrot.slane %v1156, 3
        %v1193 = vsel %vm1181, %v1191, %v1192
        %v1194 = vrot.slane %v1157, 3
        %v1195 = vrot.slane %v1158, 3
        %v1196 = vsel %vm1181, %v1194, %v1195
        %v1197 = vrot.slane %v1159, 3
        %v1198 = vrot.slane %v1160, 3
        %v1199 = vsel %vm1181, %v1197, %v1198
        %v1200 = vrot.slane %v1161, 3
        %v1201 = vrot.slane %v1162, 3
        %v1202 = vsel %vm1181, %v1200, %v1201
        %v1203 = vrot.slane %v1163, 3
        %v1204 = vrot.slane %v1164, 3
        %v1205 = vsel %vm1181, %v1203, %v1204
        %v1230 = vadd.f32 %v1121, %v1182
        %v1231 = vadd.f32 %v1122, %v1184
        %v1232 = vadd.f32 %v1123, %v1183
        %v1233 = vadd.f32 %v1124, %v1185
        %v1234 = vadd.f32 %v1125, %v1187
        %v1235 = vadd.f32 %v1126, %v1186
        %v1236 = vadd.f32 %v1127, %v1188
        %v1237 = vadd.f32 %v1128, %v1190
        %v1238 = vadd.f32 %v1129, %v1189
        %v1239 = vadd.f32 %v1130, %v1191
        %v1240 = vadd.f32 %v1131, %v1193
        %v1241 = vadd.f32 %v1132, %v1192
        %v1242 = vadd.f32 %v1133, %v1194
        %v1243 = vadd.f32 %v1134, %v1196
        %v1244 = vadd.f32 %v1135, %v1195
        %v1245 = vadd.f32 %v1136, %v1197
        %v1246 = vadd.f32 %v1137, %v1199
        %v1247 = vadd.f32 %v1138, %v1198
        %v1248 = vadd.f32 %v1139, %v1200
        %v1249 = vadd.f32 %v1140, %v1202
        %v1250 = vadd.f32 %v1141, %v1201
        %v1251 = vadd.f32 %v1142, %v1203
        %v1252 = vadd.f32 %v1143, %v1205
        %v1253 = vadd.f32 %v1144, %v1204
        %v1254 = vlaneseq
        %v1255 = vshrl.u32 %v1254, 7
        %v1256 = vsub.s32 4, %v1255
        %v1257 = vrot.slane %v772, %v1256
        %v1258 = vmul.f32 %v780, %v1257
        %v1259 = vmul.f32 %v781, %v1257
        %v1260 = vmul.f32 %v782, %v1257
        %v1261 = vmul.f32 %v784, %v1257
        %v1262 = vmul.f32 %v785, %v1257
        %v1263 = vmul.f32 %v786, %v1257
        %v1264 = vmul.f32 %v788, %v1257
        %v1265 = vmul.f32 %v789, %v1257
        %v1266 = vmul.f32 %v790, %v1257
        %v1267 = vmul.f32 %v792, %v1257
        %v1268 = vmul.f32 %v793, %v1257
        %v1269 = vmul.f32 %v794, %v1257
        %v1270 = vmul.f32 %v796, %v1257
        %v1271 = vmul.f32 %v797, %v1257
        %v1272 = vmul.f32 %v798, %v1257
        %v1273 = vmul.f32 %v800, %v1257
        %v1274 = vmul.f32 %v801, %v1257
        %v1275 = vmul.f32 %v802, %v1257
        %v1276 = vmul.f32 %v804, %v1257
        %v1277 = vmul.f32 %v805, %v1257
        %v1278 = vmul.f32 %v806, %v1257
        %v1279 = vmul.f32 %v808, %v1257
        %v1280 = vmul.f32 %v809, %v1257
        %v1281 = vmul.f32 %v810, %v1257
        %vm1306 = vcmask 1043456
        %v1307 = vrot.slane %v1258, 4
        %v1308 = vrot.slane %v1259, 4
        %v1309 = vsel %vm1306, %v1307, %v1308
        %v1310 = vrot.slane %v1260, 4
        %v1311 = vsel %vm1306, %v1308, %v1310
        %v1312 = vrot.slane %v1261, 4
        %v1313 = vrot.slane %v1262, 4
        %v1314 = vsel %vm1306, %v1312, %v1313
        %v1315 = vrot.slane %v1263, 4
        %v1316 = vsel %vm1306, %v1313, %v1315
        %v1317 = vrot.slane %v1264, 4
        %v1318 = vrot.slane %v1265, 4
        %v1319 = vsel %vm1306, %v1317, %v1318
        %v1320 = vrot.slane %v1266, 4
        %v1321 = vsel %vm1306, %v1318, %v1320
        %v1322 = vrot.slane %v1267, 4
        %v1323 = vrot.slane %v1268, 4
        %v1324 = vsel %vm1306, %v1322, %v1323
        %v1325 = vrot.slane %v1269, 4
        %v1326 = vsel %vm1306, %v1323, %v1325
        %v1327 = vrot.slane %v1270, 4
        %v1328 = vrot.slane %v1271, 4
        %v1329 = vsel %vm1306, %v1327, %v1328
        %v1330 = vrot.slane %v1272, 4
        %v1331 = vsel %vm1306, %v1328, %v1330
        %v1332 = vrot.slane %v1273, 4
        %v1333 = vrot.slane %v1274, 4
        %v1334 = vsel %vm1306, %v1332, %v1333
        %v1335 = vrot.slane %v1275, 4
        %v1336 = vsel %vm1306, %v1333, %v1335
        %v1337 = vrot.slane %v1276, 4
        %v1338 = vrot.slane %v1277, 4
        %v1339 = vsel %vm1306, %v1337, %v1338
        %v1340 = vrot.slane %v1278, 4
        %v1341 = vsel %vm1306, %v1338, %v1340
        %v1342 = vrot.slane %v1279, 4
        %v1343 = vrot.slane %v1280, 4
        %v1344 = vsel %vm1306, %v1342, %v1343
        %v1345 = vrot.slane %v1281, 4
        %v1346 = vsel %vm1306, %v1343, %v1345
        %v1371 = vadd.f32 %v1230, %v1307
        %v1372 = vadd.f32 %v1231, %v1309
        %v1373 = vadd.f32 %v1232, %v1311
        %v1374 = vadd.f32 %v1233, %v1312
        %v1375 = vadd.f32 %v1234, %v1314
        %v1376 = vadd.f32 %v1235, %v1316
        %v1377 = vadd.f32 %v1236, %v1317
        %v1378 = vadd.f32 %v1237, %v1319
        %v1379 = vadd.f32 %v1238, %v1321
        %v1380 = vadd.f32 %v1239, %v1322
        %v1381 = vadd.f32 %v1240, %v1324
        %v1382 = vadd.f32 %v1241, %v1326
        %v1383 = vadd.f32 %v1242, %v1327
        %v1384 = vadd.f32 %v1243, %v1329
        %v1385 = vadd.f32 %v1244, %v1331
        %v1386 = vadd.f32 %v1245, %v1332
        %v1387 = vadd.f32 %v1246, %v1334
        %v1388 = vadd.f32 %v1247, %v1336
        %v1389 = vadd.f32 %v1248, %v1337
        %v1390 = vadd.f32 %v1249, %v1339
        %v1391 = vadd.f32 %v1250, %v1341
        %v1392 = vadd.f32 %v1251, %v1342
        %v1393 = vadd.f32 %v1252, %v1344
        %v1394 = vadd.f32 %v1253, %v1346
        %v1395 = vlaneseq
        %v1396 = vshrl.u32 %v1395, 7
        %v1397 = vsub.s32 5, %v1396
        %v1398 = vrot.slane %v772, %v1397
        %v1399 = vmul.f32 %v780, %v1398
        %v1400 = vmul.f32 %v781, %v1398
        %v1401 = vmul.f32 %v782, %v1398
        %v1402 = vmul.f32 %v784, %v1398
        %v1403 = vmul.f32 %v785, %v1398
        %v1404 = vmul.f32 %v786, %v1398
        %v1405 = vmul.f32 %v788, %v1398
        %v1406 = vmul.f32 %v789, %v1398
        %v1407 = vmul.f32 %v790, %v1398
        %v1408 = vmul.f32 %v792, %v1398
        %v1409 = vmul.f32 %v793, %v1398
        %v1410 = vmul.f32 %v794, %v1398
        %v1411 = vmul.f32 %v796, %v1398
        %v1412 = vmul.f32 %v797, %v1398
        %v1413 = vmul.f32 %v798, %v1398
        %v1414 = vmul.f32 %v800, %v1398
        %v1415 = vmul.f32 %v801, %v1398
        %v1416 = vmul.f32 %v802, %v1398
        %v1417 = vmul.f32 %v804, %v1398
        %v1418 = vmul.f32 %v805, %v1398
        %v1419 = vmul.f32 %v806, %v1398
        %v1420 = vmul.f32 %v808, %v1398
        %v1421 = vmul.f32 %v809, %v1398
        %v1422 = vmul.f32 %v810, %v1398
        %vm1447 = vcmask 1042432
        %v1448 = vrot.slane %v1399, 5
        %v1449 = vrot.slane %v1400, 5
        %v1450 = vsel %vm1447, %v1448, %v1449
        %v1451 = vrot.slane %v1401, 5
        %v1452 = vsel %vm1447, %v1449, %v1451
        %v1453 = vrot.slane %v1402, 5
        %v1454 = vrot.slane %v1403, 5
        %v1455 = vsel %vm1447, %v1453, %v1454
        %v1456 = vrot.slane %v1404, 5
        %v1457 = vsel %vm1447, %v1454, %v1456
        %v1458 = vrot.slane %v1405, 5
        %v1459 = vrot.slane %v1406, 5
        %v1460 = vsel %vm1447, %v1458, %v1459
        %v1461 = vrot.slane %v1407, 5
        %v1462 = vsel %vm1447, %v1459, %v1461
        %v1463 = vrot.slane %v1408, 5
        %v1464 = vrot.slane %v1409, 5
        %v1465 = vsel %vm1447, %v1463, %v1464
        %v1466 = vrot.slane %v1410, 5
        %v1467 = vsel %vm1447, %v1464, %v1466
        %v1468 = vrot.slane %v1411, 5
        %v1469 = vrot.slane %v1412, 5
        %v1470 = vsel %vm1447, %v1468, %v1469
        %v1471 = vrot.slane %v1413, 5
        %v1472 = vsel %vm1447, %v1469, %v1471
        %v1473 = vrot.slane %v1414, 5
        %v1474 = vrot.slane %v1415, 5
        %v1475 = vsel %vm1447, %v1473, %v1474
        %v1476 = vrot.slane %v1416, 5
        %v1477 = vsel %vm1447, %v1474, %v1476
        %v1478 = vrot.slane %v1417, 5
        %v1479 = vrot.slane %v1418, 5
        %v1480 = vsel %vm1447, %v1478, %v1479
        %v1481 = vrot.slane %v1419, 5
        %v1482 = vsel %vm1447, %v1479, %v1481
        %v1483 = vrot.slane %v1420, 5
        %v1484 = vrot.slane %v1421, 5
        %v1485 = vsel %vm1447, %v1483, %v1484
        %v1486 = vrot.slane %v1422, 5
        %v1487 = vsel %vm1447, %v1484, %v1486
        %v1512 = vadd.f32 %v1371, %v1448
        %v1513 = vadd.f32 %v1372, %v1450
        %v1514 = vadd.f32 %v1373, %v1452
        %v1515 = vadd.f32 %v1374, %v1453
        %v1516 = vadd.f32 %v1375, %v1455
        %v1517 = vadd.f32 %v1376, %v1457
        %v1518 = vadd.f32 %v1377, %v1458
        %v1519 = vadd.f32 %v1378, %v1460
        %v1520 = vadd.f32 %v1379, %v1462
        %v1521 = vadd.f32 %v1380, %v1463
        %v1522 = vadd.f32 %v1381, %v1465
        %v1523 = vadd.f32 %v1382, %v1467
        %v1524 = vadd.f32 %v1383, %v1468
        %v1525 = vadd.f32 %v1384, %v1470
        %v1526 = vadd.f32 %v1385, %v1472
        %v1527 = vadd.f32 %v1386, %v1473
        %v1528 = vadd.f32 %v1387, %v1475
        %v1529 = vadd.f32 %v1388, %v1477
        %v1530 = vadd.f32 %v1389, %v1478
        %v1531 = vadd.f32 %v1390, %v1480
        %v1532 = vadd.f32 %v1391, %v1482
        %v1533 = vadd.f32 %v1392, %v1483
        %v1534 = vadd.f32 %v1393, %v1485
        %v1535 = vadd.f32 %v1394, %v1487
        %v1536 = vlaneseq
        %v1537 = vshrl.u32 %v1536, 7
        %v1538 = vsub.s32 6, %v1537
        %v1539 = vrot.slane %v772, %v1538
        %v1540 = vmul.f32 %v780, %v1539
        %v1541 = vmul.f32 %v781, %v1539
        %v1542 = vmul.f32 %v782, %v1539
        %v1543 = vmul.f32 %v784, %v1539
        %v1544 = vmul.f32 %v785, %v1539
        %v1545 = vmul.f32 %v786, %v1539
        %v1546 = vmul.f32 %v788, %v1539
        %v1547 = vmul.f32 %v789, %v1539
        %v1548 = vmul.f32 %v790, %v1539
        %v1549 = vmul.f32 %v792, %v1539
        %v1550 = vmul.f32 %v793, %v1539
        %v1551 = vmul.f32 %v794, %v1539
        %v1552 = vmul.f32 %v796, %v1539
        %v1553 = vmul.f32 %v797, %v1539
        %v1554 = vmul.f32 %v798, %v1539
        %v1555 = vmul.f32 %v800, %v1539
        %v1556 = vmul.f32 %v801, %v1539
        %v1557 = vmul.f32 %v802, %v1539
        %v1558 = vmul.f32 %v804, %v1539
        %v1559 = vmul.f32 %v805, %v1539
        %v1560 = vmul.f32 %v806, %v1539
        %v1561 = vmul.f32 %v808, %v1539
        %v1562 = vmul.f32 %v809, %v1539
        %v1563 = vmul.f32 %v810, %v1539
        %vm1588 = vcmask 1041408
        %v1589 = vrot.slane %v1540, 6
        %v1590 = vrot.slane %v1541, 6
        %v1591 = vsel %vm1588, %v1589, %v1590
        %v1592 = vrot.slane %v1542, 6
        %v1593 = vsel %vm1588, %v1590, %v1592
        %v1594 = vrot.slane %v1543, 6
        %v1595 = vrot.slane %v1544, 6
        %v1596 = vsel %vm1588, %v1594, %v1595
        %v1597 = vrot.slane %v1545, 6
        %v1598 = vsel %vm1588, %v1595, %v1597
        %v1599 = vrot.slane %v1546, 6
        %v1600 = vrot.slane %v1547, 6
        %v1601 = vsel %vm1588, %v1599, %v1600
        %v1602 = vrot.slane %v1548, 6
        %v1603 = vsel %vm1588, %v1600, %v1602
        %v1604 = vrot.slane %v1549, 6
        %v1605 = vrot.slane %v1550, 6
        %v1606 = vsel %vm1588, %v1604, %v1605
        %v1607 = vrot.slane %v1551, 6
        %v1608 = vsel %vm1588, %v1605, %v1607
        %v1609 = vrot.slane %v1552, 6
        %v1610 = vrot.slane %v1553, 6
        %v1611 = vsel %vm1588, %v1609, %v1610
        %v1612 = vrot.slane %v1554, 6
        %v1613 = vsel %vm1588, %v1610, %v1612
        %v1614 = vrot.slane %v1555, 6
        %v1615 = vrot.slane %v1556, 6
        %v1616 = vsel %vm1588, %v1614, %v1615
        %v1617 = vrot.slane %v1557, 6
        %v1618 = vsel %vm1588, %v1615, %v1617
        %v1619 = vrot.slane %v1558, 6
        %v1620 = vrot.slane %v1559, 6
        %v1621 = vsel %vm1588, %v1619, %v1620
        %v1622 = vrot.slane %v1560, 6
        %v1623 = vsel %vm1588, %v1620, %v1622
        %v1624 = vrot.slane %v1561, 6
        %v1625 = vrot.slane %v1562, 6
        %v1626 = vsel %vm1588, %v1624, %v1625
        %v1627 = vrot.slane %v1563, 6
        %v1628 = vsel %vm1588, %v1625, %v1627
        %v1653 = vadd.f32 %v1512, %v1589
        %v1654 = vadd.f32 %v1513, %v1591
        %v1655 = vadd.f32 %v1514, %v1593
        %v1656 = vadd.f32 %v1515, %v1594
        %v1657 = vadd.f32 %v1516, %v1596
        %v1658 = vadd.f32 %v1517, %v1598
        %v1659 = vadd.f32 %v1518, %v1599
        %v1660 = vadd.f32 %v1519, %v1601
        %v1661 = vadd.f32 %v1520, %v1603
        %v1662 = vadd.f32 %v1521, %v1604
        %v1663 = vadd.f32 %v1522, %v1606
        %v1664 = vadd.f32 %v1523, %v1608
        %v1665 = vadd.f32 %v1524, %v1609
        %v1666 = vadd.f32 %v1525, %v1611
        %v1667 = vadd.f32 %v1526, %v1613
        %v1668 = vadd.f32 %v1527, %v1614
        %v1669 = vadd.f32 %v1528, %v1616
        %v1670 = vadd.f32 %v1529, %v1618
        %v1671 = vadd.f32 %v1530, %v1619
        %v1672 = vadd.f32 %v1531, %v1621
        %v1673 = vadd.f32 %v1532, %v1623
        %v1674 = vadd.f32 %v1533, %v1624
        %v1675 = vadd.f32 %v1534, %v1626
        %v1676 = vadd.f32 %v1535, %v1628
        %s1677 = scalar_lea.vmem [#allocation2], 32
        %v1678 = vld [vmem:[%s1677] sm:$0xff]
        %v1679 = vld [vmem:[%s1677 + $0x8] sm:$0xff]
        %v1680 = vld [vmem:[%s1677 + $0x10] sm:$0xff]
        %v1681 = vld [vmem:[%s1677 + $0x18] sm:$0xff]
        %v1682 = vld [vmem:[%s1677 + $0x20] sm:$0xff]
        %v1683 = vld [vmem:[%s1677 + $0x28] sm:$0xff]
        %v1684 = vld [vmem:[%s1677 + $0x30] sm:$0xff]
        %v1685 = vld [vmem:[%s1677 + $0x38] sm:$0xff]
        %v1686 = vld [vmem:[%s1677 + $0x40] sm:$0xff]
        %v1687 = vld [vmem:[%s1677 + $0x48] sm:$0xff]
        %v1688 = vld [vmem:[%s1677 + $0x50] sm:$0xff]
        %v1689 = vld [vmem:[%s1677 + $0x58] sm:$0xff]
        %v1690 = vld [vmem:[%s1677 + $0x60] sm:$0xff]
        %v1691 = vld [vmem:[%s1677 + $0x68] sm:$0xff]
        %v1692 = vld [vmem:[%s1677 + $0x70] sm:$0xff]
        %v1693 = vld [vmem:[%s1677 + $0x78] sm:$0xff]
        %v1694 = vld [vmem:[%s1677 + $0x80] sm:$0xff]
        %v1695 = vld [vmem:[%s1677 + $0x88] sm:$0xff]
        %v1696 = vld [vmem:[%s1677 + $0x90] sm:$0xff]
        %v1697 = vld [vmem:[%s1677 + $0x98] sm:$0xff]
        %v1698 = vld [vmem:[%s1677 + $0xa0] sm:$0xff]
        %v1699 = vld [vmem:[%s1677 + $0xa8] sm:$0xff]
        %v1700 = vld [vmem:[%s1677 + $0xb0] sm:$0xff]
        %v1701 = vld [vmem:[%s1677 + $0xb8] sm:$0xff]
        %v1702 = vld [vmem:[%s1677 + $0xc0] sm:$0xff]
        %v1703 = vld [vmem:[%s1677 + $0xc8] sm:$0xff]
        %v1704 = vld [vmem:[%s1677 + $0xd0] sm:$0xff]
        %v1705 = vld [vmem:[%s1677 + $0xd8] sm:$0xff]
        %v1706 = vld [vmem:[%s1677 + $0xe0] sm:$0xff]
        %v1707 = vld [vmem:[%s1677 + $0xe8] sm:$0xff]
        %v1708 = vld [vmem:[%s1677 + $0xf0] sm:$0xff]
        %v1709 = vld [vmem:[%s1677 + $0xf8] sm:$0xff]
        %v1710 = vlaneseq
        %v1711 = vshrl.u32 %v1710, 7
        %v1712 = vsub.s32 7, %v1711
        %v1713 = vrot.slane %v772, %v1712
        %v1714 = vmul.f32 %v1678, %v1713
        %v1715 = vmul.f32 %v1679, %v1713
        %v1716 = vmul.f32 %v1680, %v1713
        %v1717 = vmul.f32 %v1682, %v1713
        %v1718 = vmul.f32 %v1683, %v1713
        %v1719 = vmul.f32 %v1684, %v1713
        %v1720 = vmul.f32 %v1686, %v1713
        %v1721 = vmul.f32 %v1687, %v1713
        %v1722 = vmul.f32 %v1688, %v1713
        %v1723 = vmul.f32 %v1690, %v1713
        %v1724 = vmul.f32 %v1691, %v1713
        %v1725 = vmul.f32 %v1692, %v1713
        %v1726 = vmul.f32 %v1694, %v1713
        %v1727 = vmul.f32 %v1695, %v1713
        %v1728 = vmul.f32 %v1696, %v1713
        %v1729 = vmul.f32 %v1698, %v1713
        %v1730 = vmul.f32 %v1699, %v1713
        %v1731 = vmul.f32 %v1700, %v1713
        %v1732 = vmul.f32 %v1702, %v1713
        %v1733 = vmul.f32 %v1703, %v1713
        %v1734 = vmul.f32 %v1704, %v1713
        %v1735 = vmul.f32 %v1706, %v1713
        %v1736 = vmul.f32 %v1707, %v1713
        %v1737 = vmul.f32 %v1708, %v1713
        %v1738 = vadd.f32 %v1653, %v1714
        %v1739 = vadd.f32 %v1654, %v1715
        %v1740 = vadd.f32 %v1655, %v1716
        %v1741 = vadd.f32 %v1656, %v1717
        %v1742 = vadd.f32 %v1657, %v1718
        %v1743 = vadd.f32 %v1658, %v1719
        %v1744 = vadd.f32 %v1659, %v1720
        %v1745 = vadd.f32 %v1660, %v1721
        %v1746 = vadd.f32 %v1661, %v1722
        %v1747 = vadd.f32 %v1662, %v1723
        %v1748 = vadd.f32 %v1663, %v1724
        %v1749 = vadd.f32 %v1664, %v1725
        %v1750 = vadd.f32 %v1665, %v1726
        %v1751 = vadd.f32 %v1666, %v1727
        %v1752 = vadd.f32 %v1667, %v1728
        %v1753 = vadd.f32 %v1668, %v1729
        %v1754 = vadd.f32 %v1669, %v1730
        %v1755 = vadd.f32 %v1670, %v1731
        %v1756 = vadd.f32 %v1671, %v1732
        %v1757 = vadd.f32 %v1672, %v1733
        %v1758 = vadd.f32 %v1673, %v1734
        %v1759 = vadd.f32 %v1674, %v1735
        %v1760 = vadd.f32 %v1675, %v1736
        %v1761 = vadd.f32 %v1676, %v1737
        %v1762 = vlaneseq
        %v1763 = vshrl.u32 %v1762, 7
        %v1764 = vsub.s32 0, %v1763
        %v1765 = vrot.slane %v773, %v1764
        %v1766 = vmul.f32 %v1678, %v1765
        %v1767 = vmul.f32 %v1679, %v1765
        %v1768 = vmul.f32 %v1680, %v1765
        %v1769 = vmul.f32 %v1682, %v1765
        %v1770 = vmul.f32 %v1683, %v1765
        %v1771 = vmul.f32 %v1684, %v1765
        %v1772 = vmul.f32 %v1686, %v1765
        %v1773 = vmul.f32 %v1687, %v1765
        %v1774 = vmul.f32 %v1688, %v1765
        %v1775 = vmul.f32 %v1690, %v1765
        %v1776 = vmul.f32 %v1691, %v1765
        %v1777 = vmul.f32 %v1692, %v1765
        %v1778 = vmul.f32 %v1694, %v1765
        %v1779 = vmul.f32 %v1695, %v1765
        %v1780 = vmul.f32 %v1696, %v1765
        %v1781 = vmul.f32 %v1698, %v1765
        %v1782 = vmul.f32 %v1699, %v1765
        %v1783 = vmul.f32 %v1700, %v1765
        %v1784 = vmul.f32 %v1702, %v1765
        %v1785 = vmul.f32 %v1703, %v1765
        %v1786 = vmul.f32 %v1704, %v1765
        %v1787 = vmul.f32 %v1706, %v1765
        %v1788 = vmul.f32 %v1707, %v1765
        %v1789 = vmul.f32 %v1708, %v1765
        %v1814 = vrot.slane %v1766, 1
        %v1815 = vrot.slane %v1767, 1
        %v1816 = vsel %vm915, %v1814, %v1815
        %v1817 = vrot.slane %v1768, 1
        %v1818 = vsel %vm915, %v1815, %v1817
        %v1819 = vrot.slane %v1769, 1
        %v1820 = vrot.slane %v1770, 1
        %v1821 = vsel %vm915, %v1819, %v1820
        %v1822 = vrot.slane %v1771, 1
        %v1823 = vsel %vm915, %v1820, %v1822
        %v1824 = vrot.slane %v1772, 1
        %v1825 = vrot.slane %v1773, 1
        %v1826 = vsel %vm915, %v1824, %v1825
        %v1827 = vrot.slane %v1774, 1
        %v1828 = vsel %vm915, %v1825, %v1827
        %v1829 = vrot.slane %v1775, 1
        %v1830 = vrot.slane %v1776, 1
        %v1831 = vsel %vm915, %v1829, %v1830
        %v1832 = vrot.slane %v1777, 1
        %v1833 = vsel %vm915, %v1830, %v1832
        %v1834 = vrot.slane %v1778, 1
        %v1835 = vrot.slane %v1779, 1
        %v1836 = vsel %vm915, %v1834, %v1835
        %v1837 = vrot.slane %v1780, 1
        %v1838 = vsel %vm915, %v1835, %v1837
        %v1839 = vrot.slane %v1781, 1
        %v1840 = vrot.slane %v1782, 1
        %v1841 = vsel %vm915, %v1839, %v1840
        %v1842 = vrot.slane %v1783, 1
        %v1843 = vsel %vm915, %v1840, %v1842
        %v1844 = vrot.slane %v1784, 1
        %v1845 = vrot.slane %v1785, 1
        %v1846 = vsel %vm915, %v1844, %v1845
        %v1847 = vrot.slane %v1786, 1
        %v1848 = vsel %vm915, %v1845, %v1847
        %v1849 = vrot.slane %v1787, 1
        %v1850 = vrot.slane %v1788, 1
        %v1851 = vsel %vm915, %v1849, %v1850
        %v1852 = vrot.slane %v1789, 1
        %v1853 = vsel %vm915, %v1850, %v1852
        %v1878 = vadd.f32 %v1738, %v1816
        %v1879 = vadd.f32 %v1739, %v1818
        %v1880 = vadd.f32 %v1740, %v1817
        %v1881 = vadd.f32 %v1741, %v1821
        %v1882 = vadd.f32 %v1742, %v1823
        %v1883 = vadd.f32 %v1743, %v1822
        %v1884 = vadd.f32 %v1744, %v1826
        %v1885 = vadd.f32 %v1745, %v1828
        %v1886 = vadd.f32 %v1746, %v1827
        %v1887 = vadd.f32 %v1747, %v1831
        %v1888 = vadd.f32 %v1748, %v1833
        %v1889 = vadd.f32 %v1749, %v1832
        %v1890 = vadd.f32 %v1750, %v1836
        %v1891 = vadd.f32 %v1751, %v1838
        %v1892 = vadd.f32 %v1752, %v1837
        %v1893 = vadd.f32 %v1753, %v1841
        %v1894 = vadd.f32 %v1754, %v1843
        %v1895 = vadd.f32 %v1755, %v1842
        %v1896 = vadd.f32 %v1756, %v1846
        %v1897 = vadd.f32 %v1757, %v1848
        %v1898 = vadd.f32 %v1758, %v1847
        %v1899 = vadd.f32 %v1759, %v1851
        %v1900 = vadd.f32 %v1760, %v1853
        %v1901 = vadd.f32 %v1761, %v1852
        %v1902 = vlaneseq
        %v1903 = vshrl.u32 %v1902, 7
        %v1904 = vsub.s32 1, %v1903
        %v1905 = vrot.slane %v773, %v1904
        %v1906 = vmul.f32 %v1678, %v1905
        %v1907 = vmul.f32 %v1679, %v1905
        %v1908 = vmul.f32 %v1680, %v1905
        %v1909 = vmul.f32 %v1682, %v1905
        %v1910 = vmul.f32 %v1683, %v1905
        %v1911 = vmul.f32 %v1684, %v1905
        %v1912 = vmul.f32 %v1686, %v1905
        %v1913 = vmul.f32 %v1687, %v1905
        %v1914 = vmul.f32 %v1688, %v1905
        %v1915 = vmul.f32 %v1690, %v1905
        %v1916 = vmul.f32 %v1691, %v1905
        %v1917 = vmul.f32 %v1692, %v1905
        %v1918 = vmul.f32 %v1694, %v1905
        %v1919 = vmul.f32 %v1695, %v1905
        %v1920 = vmul.f32 %v1696, %v1905
        %v1921 = vmul.f32 %v1698, %v1905
        %v1922 = vmul.f32 %v1699, %v1905
        %v1923 = vmul.f32 %v1700, %v1905
        %v1924 = vmul.f32 %v1702, %v1905
        %v1925 = vmul.f32 %v1703, %v1905
        %v1926 = vmul.f32 %v1704, %v1905
        %v1927 = vmul.f32 %v1706, %v1905
        %v1928 = vmul.f32 %v1707, %v1905
        %v1929 = vmul.f32 %v1708, %v1905
        %v1954 = vrot.slane %v1906, 2
        %v1955 = vrot.slane %v1907, 2
        %v1956 = vsel %vm1056, %v1954, %v1955
        %v1957 = vrot.slane %v1908, 2
        %v1958 = vsel %vm1056, %v1955, %v1957
        %v1959 = vrot.slane %v1909, 2
        %v1960 = vrot.slane %v1910, 2
        %v1961 = vsel %vm1056, %v1959, %v1960
        %v1962 = vrot.slane %v1911, 2
        %v1963 = vsel %vm1056, %v1960, %v1962
        %v1964 = vrot.slane %v1912, 2
        %v1965 = vrot.slane %v1913, 2
        %v1966 = vsel %vm1056, %v1964, %v1965
        %v1967 = vrot.slane %v1914, 2
        %v1968 = vsel %vm1056, %v1965, %v1967
        %v1969 = vrot.slane %v1915, 2
        %v1970 = vrot.slane %v1916, 2
        %v1971 = vsel %vm1056, %v1969, %v1970
        %v1972 = vrot.slane %v1917, 2
        %v1973 = vsel %vm1056, %v1970, %v1972
        %v1974 = vrot.slane %v1918, 2
        %v1975 = vrot.slane %v1919, 2
        %v1976 = vsel %vm1056, %v1974, %v1975
        %v1977 = vrot.slane %v1920, 2
        %v1978 = vsel %vm1056, %v1975, %v1977
        %v1979 = vrot.slane %v1921, 2
        %v1980 = vrot.slane %v1922, 2
        %v1981 = vsel %vm1056, %v1979, %v1980
        %v1982 = vrot.slane %v1923, 2
        %v1983 = vsel %vm1056, %v1980, %v1982
        %v1984 = vrot.slane %v1924, 2
        %v1985 = vrot.slane %v1925, 2
        %v1986 = vsel %vm1056, %v1984, %v1985
        %v1987 = vrot.slane %v1926, 2
        %v1988 = vsel %vm1056, %v1985, %v1987
        %v1989 = vrot.slane %v1927, 2
        %v1990 = vrot.slane %v1928, 2
        %v1991 = vsel %vm1056, %v1989, %v1990
        %v1992 = vrot.slane %v1929, 2
        %v1993 = vsel %vm1056, %v1990, %v1992
        %v2018 = vadd.f32 %v1878, %v1956
        %v2019 = vadd.f32 %v1879, %v1958
        %v2020 = vadd.f32 %v1880, %v1957
        %v2021 = vadd.f32 %v1881, %v1961
        %v2022 = vadd.f32 %v1882, %v1963
        %v2023 = vadd.f32 %v1883, %v1962
        %v2024 = vadd.f32 %v1884, %v1966
        %v2025 = vadd.f32 %v1885, %v1968
        %v2026 = vadd.f32 %v1886, %v1967
        %v2027 = vadd.f32 %v1887, %v1971
        %v2028 = vadd.f32 %v1888, %v1973
        %v2029 = vadd.f32 %v1889, %v1972
        %v2030 = vadd.f32 %v1890, %v1976
        %v2031 = vadd.f32 %v1891, %v1978
        %v2032 = vadd.f32 %v1892, %v1977
        %v2033 = vadd.f32 %v1893, %v1981
        %v2034 = vadd.f32 %v1894, %v1983
        %v2035 = vadd.f32 %v1895, %v1982
        %v2036 = vadd.f32 %v1896, %v1986
        %v2037 = vadd.f32 %v1897, %v1988
        %v2038 = vadd.f32 %v1898, %v1987
        %v2039 = vadd.f32 %v1899, %v1991
        %v2040 = vadd.f32 %v1900, %v1993
        %v2041 = vadd.f32 %v1901, %v1992
        %v2042 = vlaneseq
        %v2043 = vshrl.u32 %v2042, 7
        %v2044 = vsub.s32 2, %v2043
        %v2045 = vrot.slane %v773, %v2044
        %v2046 = vmul.f32 %v1679, %v2045
        %v2047 = vmul.f32 %v1680, %v2045
        %v2048 = vmul.f32 %v1683, %v2045
        %v2049 = vmul.f32 %v1684, %v2045
        %v2050 = vmul.f32 %v1687, %v2045
        %v2051 = vmul.f32 %v1688, %v2045
        %v2052 = vmul.f32 %v1691, %v2045
        %v2053 = vmul.f32 %v1692, %v2045
        %v2054 = vmul.f32 %v1695, %v2045
        %v2055 = vmul.f32 %v1696, %v2045
        %v2056 = vmul.f32 %v1699, %v2045
        %v2057 = vmul.f32 %v1700, %v2045
        %v2058 = vmul.f32 %v1703, %v2045
        %v2059 = vmul.f32 %v1704, %v2045
        %v2060 = vmul.f32 %v1707, %v2045
        %v2061 = vmul.f32 %v1708, %v2045
        %v2078 = vrot.slane %v2046, 3
        %v2079 = vrot.slane %v2047, 3
        %v2080 = vsel %vm1181, %v2078, %v2079
        %v2081 = vrot.slane %v2048, 3
        %v2082 = vrot.slane %v2049, 3
        %v2083 = vsel %vm1181, %v2081, %v2082
        %v2084 = vrot.slane %v2050, 3
        %v2085 = vrot.slane %v2051, 3
        %v2086 = vsel %vm1181, %v2084, %v2085
        %v2087 = vrot.slane %v2052, 3
        %v2088 = vrot.slane %v2053, 3
        %v2089 = vsel %vm1181, %v2087, %v2088
        %v2090 = vrot.slane %v2054, 3
        %v2091 = vrot.slane %v2055, 3
        %v2092 = vsel %vm1181, %v2090, %v2091
        %v2093 = vrot.slane %v2056, 3
        %v2094 = vrot.slane %v2057, 3
        %v2095 = vsel %vm1181, %v2093, %v2094
        %v2096 = vrot.slane %v2058, 3
        %v2097 = vrot.slane %v2059, 3
        %v2098 = vsel %vm1181, %v2096, %v2097
        %v2099 = vrot.slane %v2060, 3
        %v2100 = vrot.slane %v2061, 3
        %v2101 = vsel %vm1181, %v2099, %v2100
        %v2126 = vadd.f32 %v2018, %v2078
        %v2127 = vadd.f32 %v2019, %v2080
        %v2128 = vadd.f32 %v2020, %v2079
        %v2129 = vadd.f32 %v2021, %v2081
        %v2130 = vadd.f32 %v2022, %v2083
        %v2131 = vadd.f32 %v2023, %v2082
        %v2132 = vadd.f32 %v2024, %v2084
        %v2133 = vadd.f32 %v2025, %v2086
        %v2134 = vadd.f32 %v2026, %v2085
        %v2135 = vadd.f32 %v2027, %v2087
        %v2136 = vadd.f32 %v2028, %v2089
        %v2137 = vadd.f32 %v2029, %v2088
        %v2138 = vadd.f32 %v2030, %v2090
        %v2139 = vadd.f32 %v2031, %v2092
        %v2140 = vadd.f32 %v2032, %v2091
        %v2141 = vadd.f32 %v2033, %v2093
        %v2142 = vadd.f32 %v2034, %v2095
        %v2143 = vadd.f32 %v2035, %v2094
        %v2144 = vadd.f32 %v2036, %v2096
        %v2145 = vadd.f32 %v2037, %v2098
        %v2146 = vadd.f32 %v2038, %v2097
        %v2147 = vadd.f32 %v2039, %v2099
        %v2148 = vadd.f32 %v2040, %v2101
        %v2149 = vadd.f32 %v2041, %v2100
        %v2150 = vlaneseq
        %v2151 = vshrl.u32 %v2150, 7
        %v2152 = vsub.s32 3, %v2151
        %v2153 = vrot.slane %v773, %v2152
        %v2154 = vmul.f32 %v1679, %v2153
        %v2155 = vmul.f32 %v1680, %v2153
        %v2156 = vmul.f32 %v1681, %v2153
        %v2157 = vmul.f32 %v1683, %v2153
        %v2158 = vmul.f32 %v1684, %v2153
        %v2159 = vmul.f32 %v1685, %v2153
        %v2160 = vmul.f32 %v1687, %v2153
        %v2161 = vmul.f32 %v1688, %v2153
        %v2162 = vmul.f32 %v1689, %v2153
        %v2163 = vmul.f32 %v1691, %v2153
        %v2164 = vmul.f32 %v1692, %v2153
        %v2165 = vmul.f32 %v1693, %v2153
        %v2166 = vmul.f32 %v1695, %v2153
        %v2167 = vmul.f32 %v1696, %v2153
        %v2168 = vmul.f32 %v1697, %v2153
        %v2169 = vmul.f32 %v1699, %v2153
        %v2170 = vmul.f32 %v1700, %v2153
        %v2171 = vmul.f32 %v1701, %v2153
        %v2172 = vmul.f32 %v1703, %v2153
        %v2173 = vmul.f32 %v1704, %v2153
        %v2174 = vmul.f32 %v1705, %v2153
        %v2175 = vmul.f32 %v1707, %v2153
        %v2176 = vmul.f32 %v1708, %v2153
        %v2177 = vmul.f32 %v1709, %v2153
        %v2202 = vrot.slane %v2154, 4
        %v2203 = vrot.slane %v2155, 4
        %v2204 = vsel %vm1306, %v2202, %v2203
        %v2205 = vrot.slane %v2156, 4
        %v2206 = vsel %vm1306, %v2203, %v2205
        %v2207 = vrot.slane %v2157, 4
        %v2208 = vrot.slane %v2158, 4
        %v2209 = vsel %vm1306, %v2207, %v2208
        %v2210 = vrot.slane %v2159, 4
        %v2211 = vsel %vm1306, %v2208, %v2210
        %v2212 = vrot.slane %v2160, 4
        %v2213 = vrot.slane %v2161, 4
        %v2214 = vsel %vm1306, %v2212, %v2213
        %v2215 = vrot.slane %v2162, 4
        %v2216 = vsel %vm1306, %v2213, %v2215
        %v2217 = vrot.slane %v2163, 4
        %v2218 = vrot.slane %v2164, 4
        %v2219 = vsel %vm1306, %v2217, %v2218
        %v2220 = vrot.slane %v2165, 4
        %v2221 = vsel %vm1306, %v2218, %v2220
        %v2222 = vrot.slane %v2166, 4
        %v2223 = vrot.slane %v2167, 4
        %v2224 = vsel %vm1306, %v2222, %v2223
        %v2225 = vrot.slane %v2168, 4
        %v2226 = vsel %vm1306, %v2223, %v2225
        %v2227 = vrot.slane %v2169, 4
        %v2228 = vrot.slane %v2170, 4
        %v2229 = vsel %vm1306, %v2227, %v2228
        %v2230 = vrot.slane %v2171, 4
        %v2231 = vsel %vm1306, %v2228, %v2230
        %v2232 = vrot.slane %v2172, 4
        %v2233 = vrot.slane %v2173, 4
        %v2234 = vsel %vm1306, %v2232, %v2233
        %v2235 = vrot.slane %v2174, 4
        %v2236 = vsel %vm1306, %v2233, %v2235
        %v2237 = vrot.slane %v2175, 4
        %v2238 = vrot.slane %v2176, 4
        %v2239 = vsel %vm1306, %v2237, %v2238
        %v2240 = vrot.slane %v2177, 4
        %v2241 = vsel %vm1306, %v2238, %v2240
        %v2266 = vadd.f32 %v2126, %v2202
        %v2267 = vadd.f32 %v2127, %v2204
        %v2268 = vadd.f32 %v2128, %v2206
        %v2269 = vadd.f32 %v2129, %v2207
        %v2270 = vadd.f32 %v2130, %v2209
        %v2271 = vadd.f32 %v2131, %v2211
        %v2272 = vadd.f32 %v2132, %v2212
        %v2273 = vadd.f32 %v2133, %v2214
        %v2274 = vadd.f32 %v2134, %v2216
        %v2275 = vadd.f32 %v2135, %v2217
        %v2276 = vadd.f32 %v2136, %v2219
        %v2277 = vadd.f32 %v2137, %v2221
        %v2278 = vadd.f32 %v2138, %v2222
        %v2279 = vadd.f32 %v2139, %v2224
        %v2280 = vadd.f32 %v2140, %v2226
        %v2281 = vadd.f32 %v2141, %v2227
        %v2282 = vadd.f32 %v2142, %v2229
        %v2283 = vadd.f32 %v2143, %v2231
        %v2284 = vadd.f32 %v2144, %v2232
        %v2285 = vadd.f32 %v2145, %v2234
        %v2286 = vadd.f32 %v2146, %v2236
        %v2287 = vadd.f32 %v2147, %v2237
        %v2288 = vadd.f32 %v2148, %v2239
        %v2289 = vadd.f32 %v2149, %v2241
        %v2290 = vlaneseq
        %v2291 = vshrl.u32 %v2290, 7
        %v2292 = vsub.s32 4, %v2291
        %v2293 = vrot.slane %v773, %v2292
        %v2294 = vmul.f32 %v1679, %v2293
        %v2295 = vmul.f32 %v1680, %v2293
        %v2296 = vmul.f32 %v1681, %v2293
        %v2297 = vmul.f32 %v1683, %v2293
        %v2298 = vmul.f32 %v1684, %v2293
        %v2299 = vmul.f32 %v1685, %v2293
        %v2300 = vmul.f32 %v1687, %v2293
        %v2301 = vmul.f32 %v1688, %v2293
        %v2302 = vmul.f32 %v1689, %v2293
        %v2303 = vmul.f32 %v1691, %v2293
        %v2304 = vmul.f32 %v1692, %v2293
        %v2305 = vmul.f32 %v1693, %v2293
        %v2306 = vmul.f32 %v1695, %v2293
        %v2307 = vmul.f32 %v1696, %v2293
        %v2308 = vmul.f32 %v1697, %v2293
        %v2309 = vmul.f32 %v1699, %v2293
        %v2310 = vmul.f32 %v1700, %v2293
        %v2311 = vmul.f32 %v1701, %v2293
        %v2312 = vmul.f32 %v1703, %v2293
        %v2313 = vmul.f32 %v1704, %v2293
        %v2314 = vmul.f32 %v1705, %v2293
        %v2315 = vmul.f32 %v1707, %v2293
        %v2316 = vmul.f32 %v1708, %v2293
        %v2317 = vmul.f32 %v1709, %v2293
        %v2342 = vrot.slane %v2294, 5
        %v2343 = vrot.slane %v2295, 5
        %v2344 = vsel %vm1447, %v2342, %v2343
        %v2345 = vrot.slane %v2296, 5
        %v2346 = vsel %vm1447, %v2343, %v2345
        %v2347 = vrot.slane %v2297, 5
        %v2348 = vrot.slane %v2298, 5
        %v2349 = vsel %vm1447, %v2347, %v2348
        %v2350 = vrot.slane %v2299, 5
        %v2351 = vsel %vm1447, %v2348, %v2350
        %v2352 = vrot.slane %v2300, 5
        %v2353 = vrot.slane %v2301, 5
        %v2354 = vsel %vm1447, %v2352, %v2353
        %v2355 = vrot.slane %v2302, 5
        %v2356 = vsel %vm1447, %v2353, %v2355
        %v2357 = vrot.slane %v2303, 5
        %v2358 = vrot.slane %v2304, 5
        %v2359 = vsel %vm1447, %v2357, %v2358
        %v2360 = vrot.slane %v2305, 5
        %v2361 = vsel %vm1447, %v2358, %v2360
        %v2362 = vrot.slane %v2306, 5
        %v2363 = vrot.slane %v2307, 5
        %v2364 = vsel %vm1447, %v2362, %v2363
        %v2365 = vrot.slane %v2308, 5
        %v2366 = vsel %vm1447, %v2363, %v2365
        %v2367 = vrot.slane %v2309, 5
        %v2368 = vrot.slane %v2310, 5
        %v2369 = vsel %vm1447, %v2367, %v2368
        %v2370 = vrot.slane %v2311, 5
        %v2371 = vsel %vm1447, %v2368, %v2370
        %v2372 = vrot.slane %v2312, 5
        %v2373 = vrot.slane %v2313, 5
        %v2374 = vsel %vm1447, %v2372, %v2373
        %v2375 = vrot.slane %v2314, 5
        %v2376 = vsel %vm1447, %v2373, %v2375
        %v2377 = vrot.slane %v2315, 5
        %v2378 = vrot.slane %v2316, 5
        %v2379 = vsel %vm1447, %v2377, %v2378
        %v2380 = vrot.slane %v2317, 5
        %v2381 = vsel %vm1447, %v2378, %v2380
        %v2406 = vadd.f32 %v2266, %v2342
        %v2407 = vadd.f32 %v2267, %v2344
        %v2408 = vadd.f32 %v2268, %v2346
        %v2409 = vadd.f32 %v2269, %v2347
        %v2410 = vadd.f32 %v2270, %v2349
        %v2411 = vadd.f32 %v2271, %v2351
        %v2412 = vadd.f32 %v2272, %v2352
        %v2413 = vadd.f32 %v2273, %v2354
        %v2414 = vadd.f32 %v2274, %v2356
        %v2415 = vadd.f32 %v2275, %v2357
        %v2416 = vadd.f32 %v2276, %v2359
        %v2417 = vadd.f32 %v2277, %v2361
        %v2418 = vadd.f32 %v2278, %v2362
        %v2419 = vadd.f32 %v2279, %v2364
        %v2420 = vadd.f32 %v2280, %v2366
        %v2421 = vadd.f32 %v2281, %v2367
        %v2422 = vadd.f32 %v2282, %v2369
        %v2423 = vadd.f32 %v2283, %v2371
        %v2424 = vadd.f32 %v2284, %v2372
        %v2425 = vadd.f32 %v2285, %v2374
        %v2426 = vadd.f32 %v2286, %v2376
        %v2427 = vadd.f32 %v2287, %v2377
        %v2428 = vadd.f32 %v2288, %v2379
        %v2429 = vadd.f32 %v2289, %v2381
        %v2430 = vlaneseq
        %v2431 = vshrl.u32 %v2430, 7
        %v2432 = vsub.s32 5, %v2431
        %v2433 = vrot.slane %v773, %v2432
        %v2434 = vmul.f32 %v1679, %v2433
        %v2435 = vmul.f32 %v1680, %v2433
        %v2436 = vmul.f32 %v1681, %v2433
        %v2437 = vmul.f32 %v1683, %v2433
        %v2438 = vmul.f32 %v1684, %v2433
        %v2439 = vmul.f32 %v1685, %v2433
        %v2440 = vmul.f32 %v1687, %v2433
        %v2441 = vmul.f32 %v1688, %v2433
        %v2442 = vmul.f32 %v1689, %v2433
        %v2443 = vmul.f32 %v1691, %v2433
        %v2444 = vmul.f32 %v1692, %v2433
        %v2445 = vmul.f32 %v1693, %v2433
        %v2446 = vmul.f32 %v1695, %v2433
        %v2447 = vmul.f32 %v1696, %v2433
        %v2448 = vmul.f32 %v1697, %v2433
        %v2449 = vmul.f32 %v1699, %v2433
        %v2450 = vmul.f32 %v1700, %v2433
        %v2451 = vmul.f32 %v1701, %v2433
        %v2452 = vmul.f32 %v1703, %v2433
        %v2453 = vmul.f32 %v1704, %v2433
        %v2454 = vmul.f32 %v1705, %v2433
        %v2455 = vmul.f32 %v1707, %v2433
        %v2456 = vmul.f32 %v1708, %v2433
        %v2457 = vmul.f32 %v1709, %v2433
        %v2482 = vrot.slane %v2434, 6
        %v2483 = vrot.slane %v2435, 6
        %v2484 = vsel %vm1588, %v2482, %v2483
        %v2485 = vrot.slane %v2436, 6
        %v2486 = vsel %vm1588, %v2483, %v2485
        %v2487 = vrot.slane %v2437, 6
        %v2488 = vrot.slane %v2438, 6
        %v2489 = vsel %vm1588, %v2487, %v2488
        %v2490 = vrot.slane %v2439, 6
        %v2491 = vsel %vm1588, %v2488, %v2490
        %v2492 = vrot.slane %v2440, 6
        %v2493 = vrot.slane %v2441, 6
        %v2494 = vsel %vm1588, %v2492, %v2493
        %v2495 = vrot.slane %v2442, 6
        %v2496 = vsel %vm1588, %v2493, %v2495
        %v2497 = vrot.slane %v2443, 6
        %v2498 = vrot.slane %v2444, 6
        %v2499 = vsel %vm1588, %v2497, %v2498
        %v2500 = vrot.slane %v2445, 6
        %v2501 = vsel %vm1588, %v2498, %v2500
        %v2502 = vrot.slane %v2446, 6
        %v2503 = vrot.slane %v2447, 6
        %v2504 = vsel %vm1588, %v2502, %v2503
        %v2505 = vrot.slane %v2448, 6
        %v2506 = vsel %vm1588, %v2503, %v2505
        %v2507 = vrot.slane %v2449, 6
        %v2508 = vrot.slane %v2450, 6
        %v2509 = vsel %vm1588, %v2507, %v2508
        %v2510 = vrot.slane %v2451, 6
        %v2511 = vsel %vm1588, %v2508, %v2510
        %v2512 = vrot.slane %v2452, 6
        %v2513 = vrot.slane %v2453, 6
        %v2514 = vsel %vm1588, %v2512, %v2513
        %v2515 = vrot.slane %v2454, 6
        %v2516 = vsel %vm1588, %v2513, %v2515
        %v2517 = vrot.slane %v2455, 6
        %v2518 = vrot.slane %v2456, 6
        %v2519 = vsel %vm1588, %v2517, %v2518
        %v2520 = vrot.slane %v2457, 6
        %v2521 = vsel %vm1588, %v2518, %v2520
        %v2546 = vadd.f32 %v2406, %v2482
        %v2547 = vadd.f32 %v2407, %v2484
        %v2548 = vadd.f32 %v2408, %v2486
        %v2549 = vadd.f32 %v2409, %v2487
        %v2550 = vadd.f32 %v2410, %v2489
        %v2551 = vadd.f32 %v2411, %v2491
        %v2552 = vadd.f32 %v2412, %v2492
        %v2553 = vadd.f32 %v2413, %v2494
        %v2554 = vadd.f32 %v2414, %v2496
        %v2555 = vadd.f32 %v2415, %v2497
        %v2556 = vadd.f32 %v2416, %v2499
        %v2557 = vadd.f32 %v2417, %v2501
        %v2558 = vadd.f32 %v2418, %v2502
        %v2559 = vadd.f32 %v2419, %v2504
        %v2560 = vadd.f32 %v2420, %v2506
        %v2561 = vadd.f32 %v2421, %v2507
        %v2562 = vadd.f32 %v2422, %v2509
        %v2563 = vadd.f32 %v2423, %v2511
        %v2564 = vadd.f32 %v2424, %v2512
        %v2565 = vadd.f32 %v2425, %v2514
        %v2566 = vadd.f32 %v2426, %v2516
        %v2567 = vadd.f32 %v2427, %v2517
        %v2568 = vadd.f32 %v2428, %v2519
        %v2569 = vadd.f32 %v2429, %v2521
        %s2570 = scalar_lea.vmem [#allocation2], 64
        %v2571 = vld [vmem:[%s2570] sm:$0xff]
        %v2572 = vld [vmem:[%s2570 + $0x8] sm:$0xff]
        %v2573 = vld [vmem:[%s2570 + $0x10] sm:$0xff]
        %v2574 = vld [vmem:[%s2570 + $0x18] sm:$0xff]
        %v2575 = vld [vmem:[%s2570 + $0x20] sm:$0xff]
        %v2576 = vld [vmem:[%s2570 + $0x28] sm:$0xff]
        %v2577 = vld [vmem:[%s2570 + $0x30] sm:$0xff]
        %v2578 = vld [vmem:[%s2570 + $0x38] sm:$0xff]
        %v2579 = vld [vmem:[%s2570 + $0x40] sm:$0xff]
        %v2580 = vld [vmem:[%s2570 + $0x48] sm:$0xff]
        %v2581 = vld [vmem:[%s2570 + $0x50] sm:$0xff]
        %v2582 = vld [vmem:[%s2570 + $0x58] sm:$0xff]
        %v2583 = vld [vmem:[%s2570 + $0x60] sm:$0xff]
        %v2584 = vld [vmem:[%s2570 + $0x68] sm:$0xff]
        %v2585 = vld [vmem:[%s2570 + $0x70] sm:$0xff]
        %v2586 = vld [vmem:[%s2570 + $0x78] sm:$0xff]
        %v2587 = vld [vmem:[%s2570 + $0x80] sm:$0xff]
        %v2588 = vld [vmem:[%s2570 + $0x88] sm:$0xff]
        %v2589 = vld [vmem:[%s2570 + $0x90] sm:$0xff]
        %v2590 = vld [vmem:[%s2570 + $0x98] sm:$0xff]
        %v2591 = vld [vmem:[%s2570 + $0xa0] sm:$0xff]
        %v2592 = vld [vmem:[%s2570 + $0xa8] sm:$0xff]
        %v2593 = vld [vmem:[%s2570 + $0xb0] sm:$0xff]
        %v2594 = vld [vmem:[%s2570 + $0xb8] sm:$0xff]
        %v2595 = vld [vmem:[%s2570 + $0xc0] sm:$0xff]
        %v2596 = vld [vmem:[%s2570 + $0xc8] sm:$0xff]
        %v2597 = vld [vmem:[%s2570 + $0xd0] sm:$0xff]
        %v2598 = vld [vmem:[%s2570 + $0xd8] sm:$0xff]
        %v2599 = vld [vmem:[%s2570 + $0xe0] sm:$0xff]
        %v2600 = vld [vmem:[%s2570 + $0xe8] sm:$0xff]
        %v2601 = vld [vmem:[%s2570 + $0xf0] sm:$0xff]
        %v2602 = vld [vmem:[%s2570 + $0xf8] sm:$0xff]
        %v2603 = vlaneseq
        %v2604 = vshrl.u32 %v2603, 7
        %v2605 = vsub.s32 6, %v2604
        %v2606 = vrot.slane %v773, %v2605
        %v2607 = vmul.f32 %v2571, %v2606
        %v2608 = vmul.f32 %v2572, %v2606
        %v2609 = vmul.f32 %v2573, %v2606
        %v2610 = vmul.f32 %v2575, %v2606
        %v2611 = vmul.f32 %v2576, %v2606
        %v2612 = vmul.f32 %v2577, %v2606
        %v2613 = vmul.f32 %v2579, %v2606
        %v2614 = vmul.f32 %v2580, %v2606
        %v2615 = vmul.f32 %v2581, %v2606
        %v2616 = vmul.f32 %v2583, %v2606
        %v2617 = vmul.f32 %v2584, %v2606
        %v2618 = vmul.f32 %v2585, %v2606
        %v2619 = vmul.f32 %v2587, %v2606
        %v2620 = vmul.f32 %v2588, %v2606
        %v2621 = vmul.f32 %v2589, %v2606
        %v2622 = vmul.f32 %v2591, %v2606
        %v2623 = vmul.f32 %v2592, %v2606
        %v2624 = vmul.f32 %v2593, %v2606
        %v2625 = vmul.f32 %v2595, %v2606
        %v2626 = vmul.f32 %v2596, %v2606
        %v2627 = vmul.f32 %v2597, %v2606
        %v2628 = vmul.f32 %v2599, %v2606
        %v2629 = vmul.f32 %v2600, %v2606
        %v2630 = vmul.f32 %v2601, %v2606
        %v2631 = vadd.f32 %v2546, %v2607
        %v2632 = vadd.f32 %v2547, %v2608
        %v2633 = vadd.f32 %v2548, %v2609
        %v2634 = vadd.f32 %v2549, %v2610
        %v2635 = vadd.f32 %v2550, %v2611
        %v2636 = vadd.f32 %v2551, %v2612
        %v2637 = vadd.f32 %v2552, %v2613
        %v2638 = vadd.f32 %v2553, %v2614
        %v2639 = vadd.f32 %v2554, %v2615
        %v2640 = vadd.f32 %v2555, %v2616
        %v2641 = vadd.f32 %v2556, %v2617
        %v2642 = vadd.f32 %v2557, %v2618
        %v2643 = vadd.f32 %v2558, %v2619
        %v2644 = vadd.f32 %v2559, %v2620
        %v2645 = vadd.f32 %v2560, %v2621
        %v2646 = vadd.f32 %v2561, %v2622
        %v2647 = vadd.f32 %v2562, %v2623
        %v2648 = vadd.f32 %v2563, %v2624
        %v2649 = vadd.f32 %v2564, %v2625
        %v2650 = vadd.f32 %v2565, %v2626
        %v2651 = vadd.f32 %v2566, %v2627
        %v2652 = vadd.f32 %v2567, %v2628
        %v2653 = vadd.f32 %v2568, %v2629
        %v2654 = vadd.f32 %v2569, %v2630
        %v2655 = vlaneseq
        %v2656 = vshrl.u32 %v2655, 7
        %v2657 = vsub.s32 7, %v2656
        %v2658 = vrot.slane %v773, %v2657
        %v2659 = vmul.f32 %v2571, %v2658
        %v2660 = vmul.f32 %v2572, %v2658
        %v2661 = vmul.f32 %v2573, %v2658
        %v2662 = vmul.f32 %v2575, %v2658
        %v2663 = vmul.f32 %v2576, %v2658
        %v2664 = vmul.f32 %v2577, %v2658
        %v2665 = vmul.f32 %v2579, %v2658
        %v2666 = vmul.f32 %v2580, %v2658
        %v2667 = vmul.f32 %v2581, %v2658
        %v2668 = vmul.f32 %v2583, %v2658
        %v2669 = vmul.f32 %v2584, %v2658
        %v2670 = vmul.f32 %v2585, %v2658
        %v2671 = vmul.f32 %v2587, %v2658
        %v2672 = vmul.f32 %v2588, %v2658
        %v2673 = vmul.f32 %v2589, %v2658
        %v2674 = vmul.f32 %v2591, %v2658
        %v2675 = vmul.f32 %v2592, %v2658
        %v2676 = vmul.f32 %v2593, %v2658
        %v2677 = vmul.f32 %v2595, %v2658
        %v2678 = vmul.f32 %v2596, %v2658
        %v2679 = vmul.f32 %v2597, %v2658
        %v2680 = vmul.f32 %v2599, %v2658
        %v2681 = vmul.f32 %v2600, %v2658
        %v2682 = vmul.f32 %v2601, %v2658
        %v2707 = vrot.slane %v2659, 1
        %v2708 = vrot.slane %v2660, 1
        %v2709 = vsel %vm915, %v2707, %v2708
        %v2710 = vrot.slane %v2661, 1
        %v2711 = vsel %vm915, %v2708, %v2710
        %v2712 = vrot.slane %v2662, 1
        %v2713 = vrot.slane %v2663, 1
        %v2714 = vsel %vm915, %v2712, %v2713
        %v2715 = vrot.slane %v2664, 1
        %v2716 = vsel %vm915, %v2713, %v2715
        %v2717 = vrot.slane %v2665, 1
        %v2718 = vrot.slane %v2666, 1
        %v2719 = vsel %vm915, %v2717, %v2718
        %v2720 = vrot.slane %v2667, 1
        %v2721 = vsel %vm915, %v2718, %v2720
        %v2722 = vrot.slane %v2668, 1
        %v2723 = vrot.slane %v2669, 1
        %v2724 = vsel %vm915, %v2722, %v2723
        %v2725 = vrot.slane %v2670, 1
        %v2726 = vsel %vm915, %v2723, %v2725
        %v2727 = vrot.slane %v2671, 1
        %v2728 = vrot.slane %v2672, 1
        %v2729 = vsel %vm915, %v2727, %v2728
        %v2730 = vrot.slane %v2673, 1
        %v2731 = vsel %vm915, %v2728, %v2730
        %v2732 = vrot.slane %v2674, 1
        %v2733 = vrot.slane %v2675, 1
        %v2734 = vsel %vm915, %v2732, %v2733
        %v2735 = vrot.slane %v2676, 1
        %v2736 = vsel %vm915, %v2733, %v2735
        %v2737 = vrot.slane %v2677, 1
        %v2738 = vrot.slane %v2678, 1
        %v2739 = vsel %vm915, %v2737, %v2738
        %v2740 = vrot.slane %v2679, 1
        %v2741 = vsel %vm915, %v2738, %v2740
        %v2742 = vrot.slane %v2680, 1
        %v2743 = vrot.slane %v2681, 1
        %v2744 = vsel %vm915, %v2742, %v2743
        %v2745 = vrot.slane %v2682, 1
        %v2746 = vsel %vm915, %v2743, %v2745
        %v2771 = vadd.f32 %v2631, %v2709
        %v2772 = vadd.f32 %v2632, %v2711
        %v2773 = vadd.f32 %v2633, %v2710
        %v2774 = vadd.f32 %v2634, %v2714
        %v2775 = vadd.f32 %v2635, %v2716
        %v2776 = vadd.f32 %v2636, %v2715
        %v2777 = vadd.f32 %v2637, %v2719
        %v2778 = vadd.f32 %v2638, %v2721
        %v2779 = vadd.f32 %v2639, %v2720
        %v2780 = vadd.f32 %v2640, %v2724
        %v2781 = vadd.f32 %v2641, %v2726
        %v2782 = vadd.f32 %v2642, %v2725
        %v2783 = vadd.f32 %v2643, %v2729
        %v2784 = vadd.f32 %v2644, %v2731
        %v2785 = vadd.f32 %v2645, %v2730
        %v2786 = vadd.f32 %v2646, %v2734
        %v2787 = vadd.f32 %v2647, %v2736
        %v2788 = vadd.f32 %v2648, %v2735
        %v2789 = vadd.f32 %v2649, %v2739
        %v2790 = vadd.f32 %v2650, %v2741
        %v2791 = vadd.f32 %v2651, %v2740
        %v2792 = vadd.f32 %v2652, %v2744
        %v2793 = vadd.f32 %v2653, %v2746
        %v2794 = vadd.f32 %v2654, %v2745
        %v2795 = vlaneseq
        %v2796 = vshrl.u32 %v2795, 7
        %v2797 = vsub.s32 0, %v2796
        %v2798 = vrot.slane %v774, %v2797
        %v2799 = vmul.f32 %v2571, %v2798
        %v2800 = vmul.f32 %v2572, %v2798
        %v2801 = vmul.f32 %v2573, %v2798
        %v2802 = vmul.f32 %v2575, %v2798
        %v2803 = vmul.f32 %v2576, %v2798
        %v2804 = vmul.f32 %v2577, %v2798
        %v2805 = vmul.f32 %v2579, %v2798
        %v2806 = vmul.f32 %v2580, %v2798
        %v2807 = vmul.f32 %v2581, %v2798
        %v2808 = vmul.f32 %v2583, %v2798
        %v2809 = vmul.f32 %v2584, %v2798
        %v2810 = vmul.f32 %v2585, %v2798
        %v2811 = vmul.f32 %v2587, %v2798
        %v2812 = vmul.f32 %v2588, %v2798
        %v2813 = vmul.f32 %v2589, %v2798
        %v2814 = vmul.f32 %v2591, %v2798
        %v2815 = vmul.f32 %v2592, %v2798
        %v2816 = vmul.f32 %v2593, %v2798
        %v2817 = vmul.f32 %v2595, %v2798
        %v2818 = vmul.f32 %v2596, %v2798
        %v2819 = vmul.f32 %v2597, %v2798
        %v2820 = vmul.f32 %v2599, %v2798
        %v2821 = vmul.f32 %v2600, %v2798
        %v2822 = vmul.f32 %v2601, %v2798
        %v2847 = vrot.slane %v2799, 2
        %v2848 = vrot.slane %v2800, 2
        %v2849 = vsel %vm1056, %v2847, %v2848
        %v2850 = vrot.slane %v2801, 2
        %v2851 = vsel %vm1056, %v2848, %v2850
        %v2852 = vrot.slane %v2802, 2
        %v2853 = vrot.slane %v2803, 2
        %v2854 = vsel %vm1056, %v2852, %v2853
        %v2855 = vrot.slane %v2804, 2
        %v2856 = vsel %vm1056, %v2853, %v2855
        %v2857 = vrot.slane %v2805, 2
        %v2858 = vrot.slane %v2806, 2
        %v2859 = vsel %vm1056, %v2857, %v2858
        %v2860 = vrot.slane %v2807, 2
        %v2861 = vsel %vm1056, %v2858, %v2860
        %v2862 = vrot.slane %v2808, 2
        %v2863 = vrot.slane %v2809, 2
        %v2864 = vsel %vm1056, %v2862, %v2863
        %v2865 = vrot.slane %v2810, 2
        %v2866 = vsel %vm1056, %v2863, %v2865
        %v2867 = vrot.slane %v2811, 2
        %v2868 = vrot.slane %v2812, 2
        %v2869 = vsel %vm1056, %v2867, %v2868
        %v2870 = vrot.slane %v2813, 2
        %v2871 = vsel %vm1056, %v2868, %v2870
        %v2872 = vrot.slane %v2814, 2
        %v2873 = vrot.slane %v2815, 2
        %v2874 = vsel %vm1056, %v2872, %v2873
        %v2875 = vrot.slane %v2816, 2
        %v2876 = vsel %vm1056, %v2873, %v2875
        %v2877 = vrot.slane %v2817, 2
        %v2878 = vrot.slane %v2818, 2
        %v2879 = vsel %vm1056, %v2877, %v2878
        %v2880 = vrot.slane %v2819, 2
        %v2881 = vsel %vm1056, %v2878, %v2880
        %v2882 = vrot.slane %v2820, 2
        %v2883 = vrot.slane %v2821, 2
        %v2884 = vsel %vm1056, %v2882, %v2883
        %v2885 = vrot.slane %v2822, 2
        %v2886 = vsel %vm1056, %v2883, %v2885
        %v2911 = vadd.f32 %v2771, %v2849
        %v2912 = vadd.f32 %v2772, %v2851
        %v2913 = vadd.f32 %v2773, %v2850
        %v2914 = vadd.f32 %v2774, %v2854
        %v2915 = vadd.f32 %v2775, %v2856
        %v2916 = vadd.f32 %v2776, %v2855
        %v2917 = vadd.f32 %v2777, %v2859
        %v2918 = vadd.f32 %v2778, %v2861
        %v2919 = vadd.f32 %v2779, %v2860
        %v2920 = vadd.f32 %v2780, %v2864
        %v2921 = vadd.f32 %v2781, %v2866
        %v2922 = vadd.f32 %v2782, %v2865
        %v2923 = vadd.f32 %v2783, %v2869
        %v2924 = vadd.f32 %v2784, %v2871
        %v2925 = vadd.f32 %v2785, %v2870
        %v2926 = vadd.f32 %v2786, %v2874
        %v2927 = vadd.f32 %v2787, %v2876
        %v2928 = vadd.f32 %v2788, %v2875
        %v2929 = vadd.f32 %v2789, %v2879
        %v2930 = vadd.f32 %v2790, %v2881
        %v2931 = vadd.f32 %v2791, %v2880
        %v2932 = vadd.f32 %v2792, %v2884
        %v2933 = vadd.f32 %v2793, %v2886
        %v2934 = vadd.f32 %v2794, %v2885
        %v2935 = vlaneseq
        %v2936 = vshrl.u32 %v2935, 7
        %v2937 = vsub.s32 1, %v2936
        %v2938 = vrot.slane %v774, %v2937
        %v2939 = vmul.f32 %v2572, %v2938
        %v2940 = vmul.f32 %v2573, %v2938
        %v2941 = vmul.f32 %v2576, %v2938
        %v2942 = vmul.f32 %v2577, %v2938
        %v2943 = vmul.f32 %v2580, %v2938
        %v2944 = vmul.f32 %v2581, %v2938
        %v2945 = vmul.f32 %v2584, %v2938
        %v2946 = vmul.f32 %v2585, %v2938
        %v2947 = vmul.f32 %v2588, %v2938
        %v2948 = vmul.f32 %v2589, %v2938
        %v2949 = vmul.f32 %v2592, %v2938
        %v2950 = vmul.f32 %v2593, %v2938
        %v2951 = vmul.f32 %v2596, %v2938
        %v2952 = vmul.f32 %v2597, %v2938
        %v2953 = vmul.f32 %v2600, %v2938
        %v2954 = vmul.f32 %v2601, %v2938
        %v2971 = vrot.slane %v2939, 3
        %v2972 = vrot.slane %v2940, 3
        %v2973 = vsel %vm1181, %v2971, %v2972
        %v2974 = vrot.slane %v2941, 3
        %v2975 = vrot.slane %v2942, 3
        %v2976 = vsel %vm1181, %v2974, %v2975
        %v2977 = vrot.slane %v2943, 3
        %v2978 = vrot.slane %v2944, 3
        %v2979 = vsel %vm1181, %v2977, %v2978
        %v2980 = vrot.slane %v2945, 3
        %v2981 = vrot.slane %v2946, 3
        %v2982 = vsel %vm1181, %v2980, %v2981
        %v2983 = vrot.slane %v2947, 3
        %v2984 = vrot.slane %v2948, 3
        %v2985 = vsel %vm1181, %v2983, %v2984
        %v2986 = vrot.slane %v2949, 3
        %v2987 = vrot.slane %v2950, 3
        %v2988 = vsel %vm1181, %v2986, %v2987
        %v2989 = vrot.slane %v2951, 3
        %v2990 = vrot.slane %v2952, 3
        %v2991 = vsel %vm1181, %v2989, %v2990
        %v2992 = vrot.slane %v2953, 3
        %v2993 = vrot.slane %v2954, 3
        %v2994 = vsel %vm1181, %v2992, %v2993
        %v3019 = vadd.f32 %v2911, %v2971
        %v3020 = vadd.f32 %v2912, %v2973
        %v3021 = vadd.f32 %v2913, %v2972
        %v3022 = vadd.f32 %v2914, %v2974
        %v3023 = vadd.f32 %v2915, %v2976
        %v3024 = vadd.f32 %v2916, %v2975
        %v3025 = vadd.f32 %v2917, %v2977
        %v3026 = vadd.f32 %v2918, %v2979
        %v3027 = vadd.f32 %v2919, %v2978
        %v3028 = vadd.f32 %v2920, %v2980
        %v3029 = vadd.f32 %v2921, %v2982
        %v3030 = vadd.f32 %v2922, %v2981
        %v3031 = vadd.f32 %v2923, %v2983
        %v3032 = vadd.f32 %v2924, %v2985
        %v3033 = vadd.f32 %v2925, %v2984
        %v3034 = vadd.f32 %v2926, %v2986
        %v3035 = vadd.f32 %v2927, %v2988
        %v3036 = vadd.f32 %v2928, %v2987
        %v3037 = vadd.f32 %v2929, %v2989
        %v3038 = vadd.f32 %v2930, %v2991
        %v3039 = vadd.f32 %v2931, %v2990
        %v3040 = vadd.f32 %v2932, %v2992
        %v3041 = vadd.f32 %v2933, %v2994
        %v3042 = vadd.f32 %v2934, %v2993
        %v3043 = vlaneseq
        %v3044 = vshrl.u32 %v3043, 7
        %v3045 = vsub.s32 2, %v3044
        %v3046 = vrot.slane %v774, %v3045
        %v3047 = vmul.f32 %v2572, %v3046
        %v3048 = vmul.f32 %v2573, %v3046
        %v3049 = vmul.f32 %v2574, %v3046
        %v3050 = vmul.f32 %v2576, %v3046
        %v3051 = vmul.f32 %v2577, %v3046
        %v3052 = vmul.f32 %v2578, %v3046
        %v3053 = vmul.f32 %v2580, %v3046
        %v3054 = vmul.f32 %v2581, %v3046
        %v3055 = vmul.f32 %v2582, %v3046
        %v3056 = vmul.f32 %v2584, %v3046
        %v3057 = vmul.f32 %v2585, %v3046
        %v3058 = vmul.f32 %v2586, %v3046
        %v3059 = vmul.f32 %v2588, %v3046
        %v3060 = vmul.f32 %v2589, %v3046
        %v3061 = vmul.f32 %v2590, %v3046
        %v3062 = vmul.f32 %v2592, %v3046
        %v3063 = vmul.f32 %v2593, %v3046
        %v3064 = vmul.f32 %v2594, %v3046
        %v3065 = vmul.f32 %v2596, %v3046
        %v3066 = vmul.f32 %v2597, %v3046
        %v3067 = vmul.f32 %v2598, %v3046
        %v3068 = vmul.f32 %v2600, %v3046
        %v3069 = vmul.f32 %v2601, %v3046
        %v3070 = vmul.f32 %v2602, %v3046
        %v3095 = vrot.slane %v3047, 4
        %v3096 = vrot.slane %v3048, 4
        %v3097 = vsel %vm1306, %v3095, %v3096
        %v3098 = vrot.slane %v3049, 4
        %v3099 = vsel %vm1306, %v3096, %v3098
        %v3100 = vrot.slane %v3050, 4
        %v3101 = vrot.slane %v3051, 4
        %v3102 = vsel %vm1306, %v3100, %v3101
        %v3103 = vrot.slane %v3052, 4
        %v3104 = vsel %vm1306, %v3101, %v3103
        %v3105 = vrot.slane %v3053, 4
        %v3106 = vrot.slane %v3054, 4
        %v3107 = vsel %vm1306, %v3105, %v3106
        %v3108 = vrot.slane %v3055, 4
        %v3109 = vsel %vm1306, %v3106, %v3108
        %v3110 = vrot.slane %v3056, 4
        %v3111 = vrot.slane %v3057, 4
        %v3112 = vsel %vm1306, %v3110, %v3111
        %v3113 = vrot.slane %v3058, 4
        %v3114 = vsel %vm1306, %v3111, %v3113
        %v3115 = vrot.slane %v3059, 4
        %v3116 = vrot.slane %v3060, 4
        %v3117 = vsel %vm1306, %v3115, %v3116
        %v3118 = vrot.slane %v3061, 4
        %v3119 = vsel %vm1306, %v3116, %v3118
        %v3120 = vrot.slane %v3062, 4
        %v3121 = vrot.slane %v3063, 4
        %v3122 = vsel %vm1306, %v3120, %v3121
        %v3123 = vrot.slane %v3064, 4
        %v3124 = vsel %vm1306, %v3121, %v3123
        %v3125 = vrot.slane %v3065, 4
        %v3126 = vrot.slane %v3066, 4
        %v3127 = vsel %vm1306, %v3125, %v3126
        %v3128 = vrot.slane %v3067, 4
        %v3129 = vsel %vm1306, %v3126, %v3128
        %v3130 = vrot.slane %v3068, 4
        %v3131 = vrot.slane %v3069, 4
        %v3132 = vsel %vm1306, %v3130, %v3131
        %v3133 = vrot.slane %v3070, 4
        %v3134 = vsel %vm1306, %v3131, %v3133
        %v3159 = vadd.f32 %v3019, %v3095
        %v3160 = vadd.f32 %v3020, %v3097
        %v3161 = vadd.f32 %v3021, %v3099
        %v3162 = vadd.f32 %v3022, %v3100
        %v3163 = vadd.f32 %v3023, %v3102
        %v3164 = vadd.f32 %v3024, %v3104
        %v3165 = vadd.f32 %v3025, %v3105
        %v3166 = vadd.f32 %v3026, %v3107
        %v3167 = vadd.f32 %v3027, %v3109
        %v3168 = vadd.f32 %v3028, %v3110
        %v3169 = vadd.f32 %v3029, %v3112
        %v3170 = vadd.f32 %v3030, %v3114
        %v3171 = vadd.f32 %v3031, %v3115
        %v3172 = vadd.f32 %v3032, %v3117
        %v3173 = vadd.f32 %v3033, %v3119
        %v3174 = vadd.f32 %v3034, %v3120
        %v3175 = vadd.f32 %v3035, %v3122
        %v3176 = vadd.f32 %v3036, %v3124
        %v3177 = vadd.f32 %v3037, %v3125
        %v3178 = vadd.f32 %v3038, %v3127
        %v3179 = vadd.f32 %v3039, %v3129
        %v3180 = vadd.f32 %v3040, %v3130
        %v3181 = vadd.f32 %v3041, %v3132
        %v3182 = vadd.f32 %v3042, %v3134
        %v3183 = vlaneseq
        %v3184 = vshrl.u32 %v3183, 7
        %v3185 = vsub.s32 3, %v3184
        %v3186 = vrot.slane %v774, %v3185
        %v3187 = vmul.f32 %v2572, %v3186
        %v3188 = vmul.f32 %v2573, %v3186
        %v3189 = vmul.f32 %v2574, %v3186
        %v3190 = vmul.f32 %v2576, %v3186
        %v3191 = vmul.f32 %v2577, %v3186
        %v3192 = vmul.f32 %v2578, %v3186
        %v3193 = vmul.f32 %v2580, %v3186
        %v3194 = vmul.f32 %v2581, %v3186
        %v3195 = vmul.f32 %v2582, %v3186
        %v3196 = vmul.f32 %v2584, %v3186
        %v3197 = vmul.f32 %v2585, %v3186
        %v3198 = vmul.f32 %v2586, %v3186
        %v3199 = vmul.f32 %v2588, %v3186
        %v3200 = vmul.f32 %v2589, %v3186
        %v3201 = vmul.f32 %v2590, %v3186
        %v3202 = vmul.f32 %v2592, %v3186
        %v3203 = vmul.f32 %v2593, %v3186
        %v3204 = vmul.f32 %v2594, %v3186
        %v3205 = vmul.f32 %v2596, %v3186
        %v3206 = vmul.f32 %v2597, %v3186
        %v3207 = vmul.f32 %v2598, %v3186
        %v3208 = vmul.f32 %v2600, %v3186
        %v3209 = vmul.f32 %v2601, %v3186
        %v3210 = vmul.f32 %v2602, %v3186
        %v3235 = vrot.slane %v3187, 5
        %v3236 = vrot.slane %v3188, 5
        %v3237 = vsel %vm1447, %v3235, %v3236
        %v3238 = vrot.slane %v3189, 5
        %v3239 = vsel %vm1447, %v3236, %v3238
        %v3240 = vrot.slane %v3190, 5
        %v3241 = vrot.slane %v3191, 5
        %v3242 = vsel %vm1447, %v3240, %v3241
        %v3243 = vrot.slane %v3192, 5
        %v3244 = vsel %vm1447, %v3241, %v3243
        %v3245 = vrot.slane %v3193, 5
        %v3246 = vrot.slane %v3194, 5
        %v3247 = vsel %vm1447, %v3245, %v3246
        %v3248 = vrot.slane %v3195, 5
        %v3249 = vsel %vm1447, %v3246, %v3248
        %v3250 = vrot.slane %v3196, 5
        %v3251 = vrot.slane %v3197, 5
        %v3252 = vsel %vm1447, %v3250, %v3251
        %v3253 = vrot.slane %v3198, 5
        %v3254 = vsel %vm1447, %v3251, %v3253
        %v3255 = vrot.slane %v3199, 5
        %v3256 = vrot.slane %v3200, 5
        %v3257 = vsel %vm1447, %v3255, %v3256
        %v3258 = vrot.slane %v3201, 5
        %v3259 = vsel %vm1447, %v3256, %v3258
        %v3260 = vrot.slane %v3202, 5
        %v3261 = vrot.slane %v3203, 5
        %v3262 = vsel %vm1447, %v3260, %v3261
        %v3263 = vrot.slane %v3204, 5
        %v3264 = vsel %vm1447, %v3261, %v3263
        %v3265 = vrot.slane %v3205, 5
        %v3266 = vrot.slane %v3206, 5
        %v3267 = vsel %vm1447, %v3265, %v3266
        %v3268 = vrot.slane %v3207, 5
        %v3269 = vsel %vm1447, %v3266, %v3268
        %v3270 = vrot.slane %v3208, 5
        %v3271 = vrot.slane %v3209, 5
        %v3272 = vsel %vm1447, %v3270, %v3271
        %v3273 = vrot.slane %v3210, 5
        %v3274 = vsel %vm1447, %v3271, %v3273
        %v3299 = vadd.f32 %v3159, %v3235
        %v3300 = vadd.f32 %v3160, %v3237
        %v3301 = vadd.f32 %v3161, %v3239
        %v3302 = vadd.f32 %v3162, %v3240
        %v3303 = vadd.f32 %v3163, %v3242
        %v3304 = vadd.f32 %v3164, %v3244
        %v3305 = vadd.f32 %v3165, %v3245
        %v3306 = vadd.f32 %v3166, %v3247
        %v3307 = vadd.f32 %v3167, %v3249
        %v3308 = vadd.f32 %v3168, %v3250
        %v3309 = vadd.f32 %v3169, %v3252
        %v3310 = vadd.f32 %v3170, %v3254
        %v3311 = vadd.f32 %v3171, %v3255
        %v3312 = vadd.f32 %v3172, %v3257
        %v3313 = vadd.f32 %v3173, %v3259
        %v3314 = vadd.f32 %v3174, %v3260
        %v3315 = vadd.f32 %v3175, %v3262
        %v3316 = vadd.f32 %v3176, %v3264
        %v3317 = vadd.f32 %v3177, %v3265
        %v3318 = vadd.f32 %v3178, %v3267
        %v3319 = vadd.f32 %v3179, %v3269
        %v3320 = vadd.f32 %v3180, %v3270
        %v3321 = vadd.f32 %v3181, %v3272
        %v3322 = vadd.f32 %v3182, %v3274
        %v3323 = vlaneseq
        %v3324 = vshrl.u32 %v3323, 7
        %v3325 = vsub.s32 4, %v3324
        %v3326 = vrot.slane %v774, %v3325
        %v3327 = vmul.f32 %v2572, %v3326
        %v3328 = vmul.f32 %v2573, %v3326
        %v3329 = vmul.f32 %v2574, %v3326
        %v3330 = vmul.f32 %v2576, %v3326
        %v3331 = vmul.f32 %v2577, %v3326
        %v3332 = vmul.f32 %v2578, %v3326
        %v3333 = vmul.f32 %v2580, %v3326
        %v3334 = vmul.f32 %v2581, %v3326
        %v3335 = vmul.f32 %v2582, %v3326
        %v3336 = vmul.f32 %v2584, %v3326
        %v3337 = vmul.f32 %v2585, %v3326
        %v3338 = vmul.f32 %v2586, %v3326
        %v3339 = vmul.f32 %v2588, %v3326
        %v3340 = vmul.f32 %v2589, %v3326
        %v3341 = vmul.f32 %v2590, %v3326
        %v3342 = vmul.f32 %v2592, %v3326
        %v3343 = vmul.f32 %v2593, %v3326
        %v3344 = vmul.f32 %v2594, %v3326
        %v3345 = vmul.f32 %v2596, %v3326
        %v3346 = vmul.f32 %v2597, %v3326
        %v3347 = vmul.f32 %v2598, %v3326
        %v3348 = vmul.f32 %v2600, %v3326
        %v3349 = vmul.f32 %v2601, %v3326
        %v3350 = vmul.f32 %v2602, %v3326
        %v3375 = vrot.slane %v3327, 6
        %v3376 = vrot.slane %v3328, 6
        %v3377 = vsel %vm1588, %v3375, %v3376
        %v3378 = vrot.slane %v3329, 6
        %v3379 = vsel %vm1588, %v3376, %v3378
        %v3380 = vrot.slane %v3330, 6
        %v3381 = vrot.slane %v3331, 6
        %v3382 = vsel %vm1588, %v3380, %v3381
        %v3383 = vrot.slane %v3332, 6
        %v3384 = vsel %vm1588, %v3381, %v3383
        %v3385 = vrot.slane %v3333, 6
        %v3386 = vrot.slane %v3334, 6
        %v3387 = vsel %vm1588, %v3385, %v3386
        %v3388 = vrot.slane %v3335, 6
        %v3389 = vsel %vm1588, %v3386, %v3388
        %v3390 = vrot.slane %v3336, 6
        %v3391 = vrot.slane %v3337, 6
        %v3392 = vsel %vm1588, %v3390, %v3391
        %v3393 = vrot.slane %v3338, 6
        %v3394 = vsel %vm1588, %v3391, %v3393
        %v3395 = vrot.slane %v3339, 6
        %v3396 = vrot.slane %v3340, 6
        %v3397 = vsel %vm1588, %v3395, %v3396
        %v3398 = vrot.slane %v3341, 6
        %v3399 = vsel %vm1588, %v3396, %v3398
        %v3400 = vrot.slane %v3342, 6
        %v3401 = vrot.slane %v3343, 6
        %v3402 = vsel %vm1588, %v3400, %v3401
        %v3403 = vrot.slane %v3344, 6
        %v3404 = vsel %vm1588, %v3401, %v3403
        %v3405 = vrot.slane %v3345, 6
        %v3406 = vrot.slane %v3346, 6
        %v3407 = vsel %vm1588, %v3405, %v3406
        %v3408 = vrot.slane %v3347, 6
        %v3409 = vsel %vm1588, %v3406, %v3408
        %v3410 = vrot.slane %v3348, 6
        %v3411 = vrot.slane %v3349, 6
        %v3412 = vsel %vm1588, %v3410, %v3411
        %v3413 = vrot.slane %v3350, 6
        %v3414 = vsel %vm1588, %v3411, %v3413
        %v3439 = vadd.f32 %v3299, %v3375
        %v3440 = vadd.f32 %v3300, %v3377
        %v3441 = vadd.f32 %v3301, %v3379
        %v3442 = vadd.f32 %v3302, %v3380
        %v3443 = vadd.f32 %v3303, %v3382
        %v3444 = vadd.f32 %v3304, %v3384
        %v3445 = vadd.f32 %v3305, %v3385
        %v3446 = vadd.f32 %v3306, %v3387
        %v3447 = vadd.f32 %v3307, %v3389
        %v3448 = vadd.f32 %v3308, %v3390
        %v3449 = vadd.f32 %v3309, %v3392
        %v3450 = vadd.f32 %v3310, %v3394
        %v3451 = vadd.f32 %v3311, %v3395
        %v3452 = vadd.f32 %v3312, %v3397
        %v3453 = vadd.f32 %v3313, %v3399
        %v3454 = vadd.f32 %v3314, %v3400
        %v3455 = vadd.f32 %v3315, %v3402
        %v3456 = vadd.f32 %v3316, %v3404
        %v3457 = vadd.f32 %v3317, %v3405
        %v3458 = vadd.f32 %v3318, %v3407
        %v3459 = vadd.f32 %v3319, %v3409
        %v3460 = vadd.f32 %v3320, %v3410
        %v3461 = vadd.f32 %v3321, %v3412
        %v3462 = vadd.f32 %v3322, %v3414
        %s3463 = scalar_lea.vmem [#allocation2], 96
        %v3464 = vld [vmem:[%s3463] sm:$0xff]
        %v3465 = vld [vmem:[%s3463 + $0x8] sm:$0xff]
        %v3466 = vld [vmem:[%s3463 + $0x10] sm:$0xff]
        %v3467 = vld [vmem:[%s3463 + $0x18] sm:$0xff]
        %v3468 = vld [vmem:[%s3463 + $0x20] sm:$0xff]
        %v3469 = vld [vmem:[%s3463 + $0x28] sm:$0xff]
        %v3470 = vld [vmem:[%s3463 + $0x30] sm:$0xff]
        %v3471 = vld [vmem:[%s3463 + $0x38] sm:$0xff]
        %v3472 = vld [vmem:[%s3463 + $0x40] sm:$0xff]
        %v3473 = vld [vmem:[%s3463 + $0x48] sm:$0xff]
        %v3474 = vld [vmem:[%s3463 + $0x50] sm:$0xff]
        %v3475 = vld [vmem:[%s3463 + $0x58] sm:$0xff]
        %v3476 = vld [vmem:[%s3463 + $0x60] sm:$0xff]
        %v3477 = vld [vmem:[%s3463 + $0x68] sm:$0xff]
        %v3478 = vld [vmem:[%s3463 + $0x70] sm:$0xff]
        %v3479 = vld [vmem:[%s3463 + $0x78] sm:$0xff]
        %v3480 = vld [vmem:[%s3463 + $0x80] sm:$0xff]
        %v3481 = vld [vmem:[%s3463 + $0x88] sm:$0xff]
        %v3482 = vld [vmem:[%s3463 + $0x90] sm:$0xff]
        %v3483 = vld [vmem:[%s3463 + $0x98] sm:$0xff]
        %v3484 = vld [vmem:[%s3463 + $0xa0] sm:$0xff]
        %v3485 = vld [vmem:[%s3463 + $0xa8] sm:$0xff]
        %v3486 = vld [vmem:[%s3463 + $0xb0] sm:$0xff]
        %v3487 = vld [vmem:[%s3463 + $0xb8] sm:$0xff]
        %v3488 = vld [vmem:[%s3463 + $0xc0] sm:$0xff]
        %v3489 = vld [vmem:[%s3463 + $0xc8] sm:$0xff]
        %v3490 = vld [vmem:[%s3463 + $0xd0] sm:$0xff]
        %v3491 = vld [vmem:[%s3463 + $0xd8] sm:$0xff]
        %v3492 = vld [vmem:[%s3463 + $0xe0] sm:$0xff]
        %v3493 = vld [vmem:[%s3463 + $0xe8] sm:$0xff]
        %v3494 = vld [vmem:[%s3463 + $0xf0] sm:$0xff]
        %v3495 = vld [vmem:[%s3463 + $0xf8] sm:$0xff]
        %v3496 = vlaneseq
        %v3497 = vshrl.u32 %v3496, 7
        %v3498 = vsub.s32 5, %v3497
        %v3499 = vrot.slane %v774, %v3498
        %v3500 = vmul.f32 %v3464, %v3499
        %v3501 = vmul.f32 %v3465, %v3499
        %v3502 = vmul.f32 %v3466, %v3499
        %v3503 = vmul.f32 %v3468, %v3499
        %v3504 = vmul.f32 %v3469, %v3499
        %v3505 = vmul.f32 %v3470, %v3499
        %v3506 = vmul.f32 %v3472, %v3499
        %v3507 = vmul.f32 %v3473, %v3499
        %v3508 = vmul.f32 %v3474, %v3499
        %v3509 = vmul.f32 %v3476, %v3499
        %v3510 = vmul.f32 %v3477, %v3499
        %v3511 = vmul.f32 %v3478, %v3499
        %v3512 = vmul.f32 %v3480, %v3499
        %v3513 = vmul.f32 %v3481, %v3499
        %v3514 = vmul.f32 %v3482, %v3499
        %v3515 = vmul.f32 %v3484, %v3499
        %v3516 = vmul.f32 %v3485, %v3499
        %v3517 = vmul.f32 %v3486, %v3499
        %v3518 = vmul.f32 %v3488, %v3499
        %v3519 = vmul.f32 %v3489, %v3499
        %v3520 = vmul.f32 %v3490, %v3499
        %v3521 = vmul.f32 %v3492, %v3499
        %v3522 = vmul.f32 %v3493, %v3499
        %v3523 = vmul.f32 %v3494, %v3499
        %v3524 = vadd.f32 %v3439, %v3500
        %v3525 = vadd.f32 %v3440, %v3501
        %v3526 = vadd.f32 %v3441, %v3502
        %v3527 = vadd.f32 %v3442, %v3503
        %v3528 = vadd.f32 %v3443, %v3504
        %v3529 = vadd.f32 %v3444, %v3505
        %v3530 = vadd.f32 %v3445, %v3506
        %v3531 = vadd.f32 %v3446, %v3507
        %v3532 = vadd.f32 %v3447, %v3508
        %v3533 = vadd.f32 %v3448, %v3509
        %v3534 = vadd.f32 %v3449, %v3510
        %v3535 = vadd.f32 %v3450, %v3511
        %v3536 = vadd.f32 %v3451, %v3512
        %v3537 = vadd.f32 %v3452, %v3513
        %v3538 = vadd.f32 %v3453, %v3514
        %v3539 = vadd.f32 %v3454, %v3515
        %v3540 = vadd.f32 %v3455, %v3516
        %v3541 = vadd.f32 %v3456, %v3517
        %v3542 = vadd.f32 %v3457, %v3518
        %v3543 = vadd.f32 %v3458, %v3519
        %v3544 = vadd.f32 %v3459, %v3520
        %v3545 = vadd.f32 %v3460, %v3521
        %v3546 = vadd.f32 %v3461, %v3522
        %v3547 = vadd.f32 %v3462, %v3523
        %v3548 = vlaneseq
        %v3549 = vshrl.u32 %v3548, 7
        %v3550 = vsub.s32 6, %v3549
        %v3551 = vrot.slane %v774, %v3550
        %v3552 = vmul.f32 %v3464, %v3551
        %v3553 = vmul.f32 %v3465, %v3551
        %v3554 = vmul.f32 %v3466, %v3551
        %v3555 = vmul.f32 %v3468, %v3551
        %v3556 = vmul.f32 %v3469, %v3551
        %v3557 = vmul.f32 %v3470, %v3551
        %v3558 = vmul.f32 %v3472, %v3551
        %v3559 = vmul.f32 %v3473, %v3551
        %v3560 = vmul.f32 %v3474, %v3551
        %v3561 = vmul.f32 %v3476, %v3551
        %v3562 = vmul.f32 %v3477, %v3551
        %v3563 = vmul.f32 %v3478, %v3551
        %v3564 = vmul.f32 %v3480, %v3551
        %v3565 = vmul.f32 %v3481, %v3551
        %v3566 = vmul.f32 %v3482, %v3551
        %v3567 = vmul.f32 %v3484, %v3551
        %v3568 = vmul.f32 %v3485, %v3551
        %v3569 = vmul.f32 %v3486, %v3551
        %v3570 = vmul.f32 %v3488, %v3551
        %v3571 = vmul.f32 %v3489, %v3551
        %v3572 = vmul.f32 %v3490, %v3551
        %v3573 = vmul.f32 %v3492, %v3551
        %v3574 = vmul.f32 %v3493, %v3551
        %v3575 = vmul.f32 %v3494, %v3551
        %v3600 = vrot.slane %v3552, 1
        %v3601 = vrot.slane %v3553, 1
        %v3602 = vsel %vm915, %v3600, %v3601
        %v3603 = vrot.slane %v3554, 1
        %v3604 = vsel %vm915, %v3601, %v3603
        %v3605 = vrot.slane %v3555, 1
        %v3606 = vrot.slane %v3556, 1
        %v3607 = vsel %vm915, %v3605, %v3606
        %v3608 = vrot.slane %v3557, 1
        %v3609 = vsel %vm915, %v3606, %v3608
        %v3610 = vrot.slane %v3558, 1
        %v3611 = vrot.slane %v3559, 1
        %v3612 = vsel %vm915, %v3610, %v3611
        %v3613 = vrot.slane %v3560, 1
        %v3614 = vsel %vm915, %v3611, %v3613
        %v3615 = vrot.slane %v3561, 1
        %v3616 = vrot.slane %v3562, 1
        %v3617 = vsel %vm915, %v3615, %v3616
        %v3618 = vrot.slane %v3563, 1
        %v3619 = vsel %vm915, %v3616, %v3618
        %v3620 = vrot.slane %v3564, 1
        %v3621 = vrot.slane %v3565, 1
        %v3622 = vsel %vm915, %v3620, %v3621
        %v3623 = vrot.slane %v3566, 1
        %v3624 = vsel %vm915, %v3621, %v3623
        %v3625 = vrot.slane %v3567, 1
        %v3626 = vrot.slane %v3568, 1
        %v3627 = vsel %vm915, %v3625, %v3626
        %v3628 = vrot.slane %v3569, 1
        %v3629 = vsel %vm915, %v3626, %v3628
        %v3630 = vrot.slane %v3570, 1
        %v3631 = vrot.slane %v3571, 1
        %v3632 = vsel %vm915, %v3630, %v3631
        %v3633 = vrot.slane %v3572, 1
        %v3634 = vsel %vm915, %v3631, %v3633
        %v3635 = vrot.slane %v3573, 1
        %v3636 = vrot.slane %v3574, 1
        %v3637 = vsel %vm915, %v3635, %v3636
        %v3638 = vrot.slane %v3575, 1
        %v3639 = vsel %vm915, %v3636, %v3638
        %v3664 = vadd.f32 %v3524, %v3602
        %v3665 = vadd.f32 %v3525, %v3604
        %v3666 = vadd.f32 %v3526, %v3603
        %v3667 = vadd.f32 %v3527, %v3607
        %v3668 = vadd.f32 %v3528, %v3609
        %v3669 = vadd.f32 %v3529, %v3608
        %v3670 = vadd.f32 %v3530, %v3612
        %v3671 = vadd.f32 %v3531, %v3614
        %v3672 = vadd.f32 %v3532, %v3613
        %v3673 = vadd.f32 %v3533, %v3617
        %v3674 = vadd.f32 %v3534, %v3619
        %v3675 = vadd.f32 %v3535, %v3618
        %v3676 = vadd.f32 %v3536, %v3622
        %v3677 = vadd.f32 %v3537, %v3624
        %v3678 = vadd.f32 %v3538, %v3623
        %v3679 = vadd.f32 %v3539, %v3627
        %v3680 = vadd.f32 %v3540, %v3629
        %v3681 = vadd.f32 %v3541, %v3628
        %v3682 = vadd.f32 %v3542, %v3632
        %v3683 = vadd.f32 %v3543, %v3634
        %v3684 = vadd.f32 %v3544, %v3633
        %v3685 = vadd.f32 %v3545, %v3637
        %v3686 = vadd.f32 %v3546, %v3639
        %v3687 = vadd.f32 %v3547, %v3638
        %v3688 = vlaneseq
        %v3689 = vshrl.u32 %v3688, 7
        %v3690 = vsub.s32 7, %v3689
        %v3691 = vrot.slane %v774, %v3690
        %v3692 = vmul.f32 %v3464, %v3691
        %v3693 = vmul.f32 %v3465, %v3691
        %v3694 = vmul.f32 %v3466, %v3691
        %v3695 = vmul.f32 %v3468, %v3691
        %v3696 = vmul.f32 %v3469, %v3691
        %v3697 = vmul.f32 %v3470, %v3691
        %v3698 = vmul.f32 %v3472, %v3691
        %v3699 = vmul.f32 %v3473, %v3691
        %v3700 = vmul.f32 %v3474, %v3691
        %v3701 = vmul.f32 %v3476, %v3691
        %v3702 = vmul.f32 %v3477, %v3691
        %v3703 = vmul.f32 %v3478, %v3691
        %v3704 = vmul.f32 %v3480, %v3691
        %v3705 = vmul.f32 %v3481, %v3691
        %v3706 = vmul.f32 %v3482, %v3691
        %v3707 = vmul.f32 %v3484, %v3691
        %v3708 = vmul.f32 %v3485, %v3691
        %v3709 = vmul.f32 %v3486, %v3691
        %v3710 = vmul.f32 %v3488, %v3691
        %v3711 = vmul.f32 %v3489, %v3691
        %v3712 = vmul.f32 %v3490, %v3691
        %v3713 = vmul.f32 %v3492, %v3691
        %v3714 = vmul.f32 %v3493, %v3691
        %v3715 = vmul.f32 %v3494, %v3691
        %v3740 = vrot.slane %v3692, 2
        %v3741 = vrot.slane %v3693, 2
        %v3742 = vsel %vm1056, %v3740, %v3741
        %v3743 = vrot.slane %v3694, 2
        %v3744 = vsel %vm1056, %v3741, %v3743
        %v3745 = vrot.slane %v3695, 2
        %v3746 = vrot.slane %v3696, 2
        %v3747 = vsel %vm1056, %v3745, %v3746
        %v3748 = vrot.slane %v3697, 2
        %v3749 = vsel %vm1056, %v3746, %v3748
        %v3750 = vrot.slane %v3698, 2
        %v3751 = vrot.slane %v3699, 2
        %v3752 = vsel %vm1056, %v3750, %v3751
        %v3753 = vrot.slane %v3700, 2
        %v3754 = vsel %vm1056, %v3751, %v3753
        %v3755 = vrot.slane %v3701, 2
        %v3756 = vrot.slane %v3702, 2
        %v3757 = vsel %vm1056, %v3755, %v3756
        %v3758 = vrot.slane %v3703, 2
        %v3759 = vsel %vm1056, %v3756, %v3758
        %v3760 = vrot.slane %v3704, 2
        %v3761 = vrot.slane %v3705, 2
        %v3762 = vsel %vm1056, %v3760, %v3761
        %v3763 = vrot.slane %v3706, 2
        %v3764 = vsel %vm1056, %v3761, %v3763
        %v3765 = vrot.slane %v3707, 2
        %v3766 = vrot.slane %v3708, 2
        %v3767 = vsel %vm1056, %v3765, %v3766
        %v3768 = vrot.slane %v3709, 2
        %v3769 = vsel %vm1056, %v3766, %v3768
        %v3770 = vrot.slane %v3710, 2
        %v3771 = vrot.slane %v3711, 2
        %v3772 = vsel %vm1056, %v3770, %v3771
        %v3773 = vrot.slane %v3712, 2
        %v3774 = vsel %vm1056, %v3771, %v3773
        %v3775 = vrot.slane %v3713, 2
        %v3776 = vrot.slane %v3714, 2
        %v3777 = vsel %vm1056, %v3775, %v3776
        %v3778 = vrot.slane %v3715, 2
        %v3779 = vsel %vm1056, %v3776, %v3778
        %v3804 = vadd.f32 %v3664, %v3742
        %v3805 = vadd.f32 %v3665, %v3744
        %v3806 = vadd.f32 %v3666, %v3743
        %v3807 = vadd.f32 %v3667, %v3747
        %v3808 = vadd.f32 %v3668, %v3749
        %v3809 = vadd.f32 %v3669, %v3748
        %v3810 = vadd.f32 %v3670, %v3752
        %v3811 = vadd.f32 %v3671, %v3754
        %v3812 = vadd.f32 %v3672, %v3753
        %v3813 = vadd.f32 %v3673, %v3757
        %v3814 = vadd.f32 %v3674, %v3759
        %v3815 = vadd.f32 %v3675, %v3758
        %v3816 = vadd.f32 %v3676, %v3762
        %v3817 = vadd.f32 %v3677, %v3764
        %v3818 = vadd.f32 %v3678, %v3763
        %v3819 = vadd.f32 %v3679, %v3767
        %v3820 = vadd.f32 %v3680, %v3769
        %v3821 = vadd.f32 %v3681, %v3768
        %v3822 = vadd.f32 %v3682, %v3772
        %v3823 = vadd.f32 %v3683, %v3774
        %v3824 = vadd.f32 %v3684, %v3773
        %v3825 = vadd.f32 %v3685, %v3777
        %v3826 = vadd.f32 %v3686, %v3779
        %v3827 = vadd.f32 %v3687, %v3778
        %v3828 = vlaneseq
        %v3829 = vshrl.u32 %v3828, 7
        %v3830 = vsub.s32 0, %v3829
        %v3831 = vrot.slane %v775, %v3830
        %v3832 = vmul.f32 %v3465, %v3831
        %v3833 = vmul.f32 %v3466, %v3831
        %v3834 = vmul.f32 %v3469, %v3831
        %v3835 = vmul.f32 %v3470, %v3831
        %v3836 = vmul.f32 %v3473, %v3831
        %v3837 = vmul.f32 %v3474, %v3831
        %v3838 = vmul.f32 %v3477, %v3831
        %v3839 = vmul.f32 %v3478, %v3831
        %v3840 = vmul.f32 %v3481, %v3831
        %v3841 = vmul.f32 %v3482, %v3831
        %v3842 = vmul.f32 %v3485, %v3831
        %v3843 = vmul.f32 %v3486, %v3831
        %v3844 = vmul.f32 %v3489, %v3831
        %v3845 = vmul.f32 %v3490, %v3831
        %v3846 = vmul.f32 %v3493, %v3831
        %v3847 = vmul.f32 %v3494, %v3831
        %v3864 = vrot.slane %v3832, 3
        %v3865 = vrot.slane %v3833, 3
        %v3866 = vsel %vm1181, %v3864, %v3865
        %v3867 = vrot.slane %v3834, 3
        %v3868 = vrot.slane %v3835, 3
        %v3869 = vsel %vm1181, %v3867, %v3868
        %v3870 = vrot.slane %v3836, 3
        %v3871 = vrot.slane %v3837, 3
        %v3872 = vsel %vm1181, %v3870, %v3871
        %v3873 = vrot.slane %v3838, 3
        %v3874 = vrot.slane %v3839, 3
        %v3875 = vsel %vm1181, %v3873, %v3874
        %v3876 = vrot.slane %v3840, 3
        %v3877 = vrot.slane %v3841, 3
        %v3878 = vsel %vm1181, %v3876, %v3877
        %v3879 = vrot.slane %v3842, 3
        %v3880 = vrot.slane %v3843, 3
        %v3881 = vsel %vm1181, %v3879, %v3880
        %v3882 = vrot.slane %v3844, 3
        %v3883 = vrot.slane %v3845, 3
        %v3884 = vsel %vm1181, %v3882, %v3883
        %v3885 = vrot.slane %v3846, 3
        %v3886 = vrot.slane %v3847, 3
        %v3887 = vsel %vm1181, %v3885, %v3886
        %v3912 = vadd.f32 %v3804, %v3864
        %v3913 = vadd.f32 %v3805, %v3866
        %v3914 = vadd.f32 %v3806, %v3865
        %v3915 = vadd.f32 %v3807, %v3867
        %v3916 = vadd.f32 %v3808, %v3869
        %v3917 = vadd.f32 %v3809, %v3868
        %v3918 = vadd.f32 %v3810, %v3870
        %v3919 = vadd.f32 %v3811, %v3872
        %v3920 = vadd.f32 %v3812, %v3871
        %v3921 = vadd.f32 %v3813, %v3873
        %v3922 = vadd.f32 %v3814, %v3875
        %v3923 = vadd.f32 %v3815, %v3874
        %v3924 = vadd.f32 %v3816, %v3876
        %v3925 = vadd.f32 %v3817, %v3878
        %v3926 = vadd.f32 %v3818, %v3877
        %v3927 = vadd.f32 %v3819, %v3879
        %v3928 = vadd.f32 %v3820, %v3881
        %v3929 = vadd.f32 %v3821, %v3880
        %v3930 = vadd.f32 %v3822, %v3882
        %v3931 = vadd.f32 %v3823, %v3884
        %v3932 = vadd.f32 %v3824, %v3883
        %v3933 = vadd.f32 %v3825, %v3885
        %v3934 = vadd.f32 %v3826, %v3887
        %v3935 = vadd.f32 %v3827, %v3886
        %v3936 = vlaneseq
        %v3937 = vshrl.u32 %v3936, 7
        %v3938 = vsub.s32 1, %v3937
        %v3939 = vrot.slane %v775, %v3938
        %v3940 = vmul.f32 %v3465, %v3939
        %v3941 = vmul.f32 %v3466, %v3939
        %v3942 = vmul.f32 %v3467, %v3939
        %v3943 = vmul.f32 %v3469, %v3939
        %v3944 = vmul.f32 %v3470, %v3939
        %v3945 = vmul.f32 %v3471, %v3939
        %v3946 = vmul.f32 %v3473, %v3939
        %v3947 = vmul.f32 %v3474, %v3939
        %v3948 = vmul.f32 %v3475, %v3939
        %v3949 = vmul.f32 %v3477, %v3939
        %v3950 = vmul.f32 %v3478, %v3939
        %v3951 = vmul.f32 %v3479, %v3939
        %v3952 = vmul.f32 %v3481, %v3939
        %v3953 = vmul.f32 %v3482, %v3939
        %v3954 = vmul.f32 %v3483, %v3939
        %v3955 = vmul.f32 %v3485, %v3939
        %v3956 = vmul.f32 %v3486, %v3939
        %v3957 = vmul.f32 %v3487, %v3939
        %v3958 = vmul.f32 %v3489, %v3939
        %v3959 = vmul.f32 %v3490, %v3939
        %v3960 = vmul.f32 %v3491, %v3939
        %v3961 = vmul.f32 %v3493, %v3939
        %v3962 = vmul.f32 %v3494, %v3939
        %v3963 = vmul.f32 %v3495, %v3939
        %v3988 = vrot.slane %v3940, 4
        %v3989 = vrot.slane %v3941, 4
        %v3990 = vsel %vm1306, %v3988, %v3989
        %v3991 = vrot.slane %v3942, 4
        %v3992 = vsel %vm1306, %v3989, %v3991
        %v3993 = vrot.slane %v3943, 4
        %v3994 = vrot.slane %v3944, 4
        %v3995 = vsel %vm1306, %v3993, %v3994
        %v3996 = vrot.slane %v3945, 4
        %v3997 = vsel %vm1306, %v3994, %v3996
        %v3998 = vrot.slane %v3946, 4
        %v3999 = vrot.slane %v3947, 4
        %v4000 = vsel %vm1306, %v3998, %v3999
        %v4001 = vrot.slane %v3948, 4
        %v4002 = vsel %vm1306, %v3999, %v4001
        %v4003 = vrot.slane %v3949, 4
        %v4004 = vrot.slane %v3950, 4
        %v4005 = vsel %vm1306, %v4003, %v4004
        %v4006 = vrot.slane %v3951, 4
        %v4007 = vsel %vm1306, %v4004, %v4006
        %v4008 = vrot.slane %v3952, 4
        %v4009 = vrot.slane %v3953, 4
        %v4010 = vsel %vm1306, %v4008, %v4009
        %v4011 = vrot.slane %v3954, 4
        %v4012 = vsel %vm1306, %v4009, %v4011
        %v4013 = vrot.slane %v3955, 4
        %v4014 = vrot.slane %v3956, 4
        %v4015 = vsel %vm1306, %v4013, %v4014
        %v4016 = vrot.slane %v3957, 4
        %v4017 = vsel %vm1306, %v4014, %v4016
        %v4018 = vrot.slane %v3958, 4
        %v4019 = vrot.slane %v3959, 4
        %v4020 = vsel %vm1306, %v4018, %v4019
        %v4021 = vrot.slane %v3960, 4
        %v4022 = vsel %vm1306, %v4019, %v4021
        %v4023 = vrot.slane %v3961, 4
        %v4024 = vrot.slane %v3962, 4
        %v4025 = vsel %vm1306, %v4023, %v4024
        %v4026 = vrot.slane %v3963, 4
        %v4027 = vsel %vm1306, %v4024, %v4026
        %v4052 = vadd.f32 %v3912, %v3988
        %v4053 = vadd.f32 %v3913, %v3990
        %v4054 = vadd.f32 %v3914, %v3992
        %v4055 = vadd.f32 %v3915, %v3993
        %v4056 = vadd.f32 %v3916, %v3995
        %v4057 = vadd.f32 %v3917, %v3997
        %v4058 = vadd.f32 %v3918, %v3998
        %v4059 = vadd.f32 %v3919, %v4000
        %v4060 = vadd.f32 %v3920, %v4002
        %v4061 = vadd.f32 %v3921, %v4003
        %v4062 = vadd.f32 %v3922, %v4005
        %v4063 = vadd.f32 %v3923, %v4007
        %v4064 = vadd.f32 %v3924, %v4008
        %v4065 = vadd.f32 %v3925, %v4010
        %v4066 = vadd.f32 %v3926, %v4012
        %v4067 = vadd.f32 %v3927, %v4013
        %v4068 = vadd.f32 %v3928, %v4015
        %v4069 = vadd.f32 %v3929, %v4017
        %v4070 = vadd.f32 %v3930, %v4018
        %v4071 = vadd.f32 %v3931, %v4020
        %v4072 = vadd.f32 %v3932, %v4022
        %v4073 = vadd.f32 %v3933, %v4023
        %v4074 = vadd.f32 %v3934, %v4025
        %v4075 = vadd.f32 %v3935, %v4027
        %v4076 = vlaneseq
        %v4077 = vshrl.u32 %v4076, 7
        %v4078 = vsub.s32 2, %v4077
        %v4079 = vrot.slane %v775, %v4078
        %v4080 = vmul.f32 %v3465, %v4079
        %v4081 = vmul.f32 %v3466, %v4079
        %v4082 = vmul.f32 %v3467, %v4079
        %v4083 = vmul.f32 %v3469, %v4079
        %v4084 = vmul.f32 %v3470, %v4079
        %v4085 = vmul.f32 %v3471, %v4079
        %v4086 = vmul.f32 %v3473, %v4079
        %v4087 = vmul.f32 %v3474, %v4079
        %v4088 = vmul.f32 %v3475, %v4079
        %v4089 = vmul.f32 %v3477, %v4079
        %v4090 = vmul.f32 %v3478, %v4079
        %v4091 = vmul.f32 %v3479, %v4079
        %v4092 = vmul.f32 %v3481, %v4079
        %v4093 = vmul.f32 %v3482, %v4079
        %v4094 = vmul.f32 %v3483, %v4079
        %v4095 = vmul.f32 %v3485, %v4079
        %v4096 = vmul.f32 %v3486, %v4079
        %v4097 = vmul.f32 %v3487, %v4079
        %v4098 = vmul.f32 %v3489, %v4079
        %v4099 = vmul.f32 %v3490, %v4079
        %v4100 = vmul.f32 %v3491, %v4079
        %v4101 = vmul.f32 %v3493, %v4079
        %v4102 = vmul.f32 %v3494, %v4079
        %v4103 = vmul.f32 %v3495, %v4079
        %v4128 = vrot.slane %v4080, 5
        %v4129 = vrot.slane %v4081, 5
        %v4130 = vsel %vm1447, %v4128, %v4129
        %v4131 = vrot.slane %v4082, 5
        %v4132 = vsel %vm1447, %v4129, %v4131
        %v4133 = vrot.slane %v4083, 5
        %v4134 = vrot.slane %v4084, 5
        %v4135 = vsel %vm1447, %v4133, %v4134
        %v4136 = vrot.slane %v4085, 5
        %v4137 = vsel %vm1447, %v4134, %v4136
        %v4138 = vrot.slane %v4086, 5
        %v4139 = vrot.slane %v4087, 5
        %v4140 = vsel %vm1447, %v4138, %v4139
        %v4141 = vrot.slane %v4088, 5
        %v4142 = vsel %vm1447, %v4139, %v4141
        %v4143 = vrot.slane %v4089, 5
        %v4144 = vrot.slane %v4090, 5
        %v4145 = vsel %vm1447, %v4143, %v4144
        %v4146 = vrot.slane %v4091, 5
        %v4147 = vsel %vm1447, %v4144, %v4146
        %v4148 = vrot.slane %v4092, 5
        %v4149 = vrot.slane %v4093, 5
        %v4150 = vsel %vm1447, %v4148, %v4149
        %v4151 = vrot.slane %v4094, 5
        %v4152 = vsel %vm1447, %v4149, %v4151
        %v4153 = vrot.slane %v4095, 5
        %v4154 = vrot.slane %v4096, 5
        %v4155 = vsel %vm1447, %v4153, %v4154
        %v4156 = vrot.slane %v4097, 5
        %v4157 = vsel %vm1447, %v4154, %v4156
        %v4158 = vrot.slane %v4098, 5
        %v4159 = vrot.slane %v4099, 5
        %v4160 = vsel %vm1447, %v4158, %v4159
        %v4161 = vrot.slane %v4100, 5
        %v4162 = vsel %vm1447, %v4159, %v4161
        %v4163 = vrot.slane %v4101, 5
        %v4164 = vrot.slane %v4102, 5
        %v4165 = vsel %vm1447, %v4163, %v4164
        %v4166 = vrot.slane %v4103, 5
        %v4167 = vsel %vm1447, %v4164, %v4166
        %v4192 = vadd.f32 %v4052, %v4128
        %v4193 = vadd.f32 %v4053, %v4130
        %v4194 = vadd.f32 %v4054, %v4132
        %v4195 = vadd.f32 %v4055, %v4133
        %v4196 = vadd.f32 %v4056, %v4135
        %v4197 = vadd.f32 %v4057, %v4137
        %v4198 = vadd.f32 %v4058, %v4138
        %v4199 = vadd.f32 %v4059, %v4140
        %v4200 = vadd.f32 %v4060, %v4142
        %v4201 = vadd.f32 %v4061, %v4143
        %v4202 = vadd.f32 %v4062, %v4145
        %v4203 = vadd.f32 %v4063, %v4147
        %v4204 = vadd.f32 %v4064, %v4148
        %v4205 = vadd.f32 %v4065, %v4150
        %v4206 = vadd.f32 %v4066, %v4152
        %v4207 = vadd.f32 %v4067, %v4153
        %v4208 = vadd.f32 %v4068, %v4155
        %v4209 = vadd.f32 %v4069, %v4157
        %v4210 = vadd.f32 %v4070, %v4158
        %v4211 = vadd.f32 %v4071, %v4160
        %v4212 = vadd.f32 %v4072, %v4162
        %v4213 = vadd.f32 %v4073, %v4163
        %v4214 = vadd.f32 %v4074, %v4165
        %v4215 = vadd.f32 %v4075, %v4167
        %v4216 = vlaneseq
        %v4217 = vshrl.u32 %v4216, 7
        %v4218 = vsub.s32 3, %v4217
        %v4219 = vrot.slane %v775, %v4218
        %v4220 = vmul.f32 %v3465, %v4219
        %v4221 = vmul.f32 %v3466, %v4219
        %v4222 = vmul.f32 %v3467, %v4219
        %v4223 = vmul.f32 %v3469, %v4219
        %v4224 = vmul.f32 %v3470, %v4219
        %v4225 = vmul.f32 %v3471, %v4219
        %v4226 = vmul.f32 %v3473, %v4219
        %v4227 = vmul.f32 %v3474, %v4219
        %v4228 = vmul.f32 %v3475, %v4219
        %v4229 = vmul.f32 %v3477, %v4219
        %v4230 = vmul.f32 %v3478, %v4219
        %v4231 = vmul.f32 %v3479, %v4219
        %v4232 = vmul.f32 %v3481, %v4219
        %v4233 = vmul.f32 %v3482, %v4219
        %v4234 = vmul.f32 %v3483, %v4219
        %v4235 = vmul.f32 %v3485, %v4219
        %v4236 = vmul.f32 %v3486, %v4219
        %v4237 = vmul.f32 %v3487, %v4219
        %v4238 = vmul.f32 %v3489, %v4219
        %v4239 = vmul.f32 %v3490, %v4219
        %v4240 = vmul.f32 %v3491, %v4219
        %v4241 = vmul.f32 %v3493, %v4219
        %v4242 = vmul.f32 %v3494, %v4219
        %v4243 = vmul.f32 %v3495, %v4219
        %v4268 = vrot.slane %v4220, 6
        %v4269 = vrot.slane %v4221, 6
        %v4270 = vsel %vm1588, %v4268, %v4269
        %v4271 = vrot.slane %v4222, 6
        %v4272 = vsel %vm1588, %v4269, %v4271
        %v4273 = vrot.slane %v4223, 6
        %v4274 = vrot.slane %v4224, 6
        %v4275 = vsel %vm1588, %v4273, %v4274
        %v4276 = vrot.slane %v4225, 6
        %v4277 = vsel %vm1588, %v4274, %v4276
        %v4278 = vrot.slane %v4226, 6
        %v4279 = vrot.slane %v4227, 6
        %v4280 = vsel %vm1588, %v4278, %v4279
        %v4281 = vrot.slane %v4228, 6
        %v4282 = vsel %vm1588, %v4279, %v4281
        %v4283 = vrot.slane %v4229, 6
        %v4284 = vrot.slane %v4230, 6
        %v4285 = vsel %vm1588, %v4283, %v4284
        %v4286 = vrot.slane %v4231, 6
        %v4287 = vsel %vm1588, %v4284, %v4286
        %v4288 = vrot.slane %v4232, 6
        %v4289 = vrot.slane %v4233, 6
        %v4290 = vsel %vm1588, %v4288, %v4289
        %v4291 = vrot.slane %v4234, 6
        %v4292 = vsel %vm1588, %v4289, %v4291
        %v4293 = vrot.slane %v4235, 6
        %v4294 = vrot.slane %v4236, 6
        %v4295 = vsel %vm1588, %v4293, %v4294
        %v4296 = vrot.slane %v4237, 6
        %v4297 = vsel %vm1588, %v4294, %v4296
        %v4298 = vrot.slane %v4238, 6
        %v4299 = vrot.slane %v4239, 6
        %v4300 = vsel %vm1588, %v4298, %v4299
        %v4301 = vrot.slane %v4240, 6
        %v4302 = vsel %vm1588, %v4299, %v4301
        %v4303 = vrot.slane %v4241, 6
        %v4304 = vrot.slane %v4242, 6
        %v4305 = vsel %vm1588, %v4303, %v4304
        %v4306 = vrot.slane %v4243, 6
        %v4307 = vsel %vm1588, %v4304, %v4306
        %v4332 = vadd.f32 %v4192, %v4268
        %v4333 = vadd.f32 %v4193, %v4270
        %v4334 = vadd.f32 %v4194, %v4272
        %v4335 = vadd.f32 %v4195, %v4273
        %v4336 = vadd.f32 %v4196, %v4275
        %v4337 = vadd.f32 %v4197, %v4277
        %v4338 = vadd.f32 %v4198, %v4278
        %v4339 = vadd.f32 %v4199, %v4280
        %v4340 = vadd.f32 %v4200, %v4282
        %v4341 = vadd.f32 %v4201, %v4283
        %v4342 = vadd.f32 %v4202, %v4285
        %v4343 = vadd.f32 %v4203, %v4287
        %v4344 = vadd.f32 %v4204, %v4288
        %v4345 = vadd.f32 %v4205, %v4290
        %v4346 = vadd.f32 %v4206, %v4292
        %v4347 = vadd.f32 %v4207, %v4293
        %v4348 = vadd.f32 %v4208, %v4295
        %v4349 = vadd.f32 %v4209, %v4297
        %v4350 = vadd.f32 %v4210, %v4298
        %v4351 = vadd.f32 %v4211, %v4300
        %v4352 = vadd.f32 %v4212, %v4302
        %v4353 = vadd.f32 %v4213, %v4303
        %v4354 = vadd.f32 %v4214, %v4305
        %v4355 = vadd.f32 %v4215, %v4307
        %s4356 = scalar_lea.vmem [#allocation2], 128
        %v4357 = vld [vmem:[%s4356] sm:$0xff]
        %v4358 = vld [vmem:[%s4356 + $0x8] sm:$0xff]
        %v4359 = vld [vmem:[%s4356 + $0x10] sm:$0xff]
        %v4360 = vld [vmem:[%s4356 + $0x18] sm:$0xff]
        %v4361 = vld [vmem:[%s4356 + $0x20] sm:$0xff]
        %v4362 = vld [vmem:[%s4356 + $0x28] sm:$0xff]
        %v4363 = vld [vmem:[%s4356 + $0x30] sm:$0xff]
        %v4364 = vld [vmem:[%s4356 + $0x38] sm:$0xff]
        %v4365 = vld [vmem:[%s4356 + $0x40] sm:$0xff]
        %v4366 = vld [vmem:[%s4356 + $0x48] sm:$0xff]
        %v4367 = vld [vmem:[%s4356 + $0x50] sm:$0xff]
        %v4368 = vld [vmem:[%s4356 + $0x58] sm:$0xff]
        %v4369 = vld [vmem:[%s4356 + $0x60] sm:$0xff]
        %v4370 = vld [vmem:[%s4356 + $0x68] sm:$0xff]
        %v4371 = vld [vmem:[%s4356 + $0x70] sm:$0xff]
        %v4372 = vld [vmem:[%s4356 + $0x78] sm:$0xff]
        %v4373 = vld [vmem:[%s4356 + $0x80] sm:$0xff]
        %v4374 = vld [vmem:[%s4356 + $0x88] sm:$0xff]
        %v4375 = vld [vmem:[%s4356 + $0x90] sm:$0xff]
        %v4376 = vld [vmem:[%s4356 + $0x98] sm:$0xff]
        %v4377 = vld [vmem:[%s4356 + $0xa0] sm:$0xff]
        %v4378 = vld [vmem:[%s4356 + $0xa8] sm:$0xff]
        %v4379 = vld [vmem:[%s4356 + $0xb0] sm:$0xff]
        %v4380 = vld [vmem:[%s4356 + $0xb8] sm:$0xff]
        %v4381 = vld [vmem:[%s4356 + $0xc0] sm:$0xff]
        %v4382 = vld [vmem:[%s4356 + $0xc8] sm:$0xff]
        %v4383 = vld [vmem:[%s4356 + $0xd0] sm:$0xff]
        %v4384 = vld [vmem:[%s4356 + $0xd8] sm:$0xff]
        %v4385 = vld [vmem:[%s4356 + $0xe0] sm:$0xff]
        %v4386 = vld [vmem:[%s4356 + $0xe8] sm:$0xff]
        %v4387 = vld [vmem:[%s4356 + $0xf0] sm:$0xff]
        %v4388 = vld [vmem:[%s4356 + $0xf8] sm:$0xff]
        %v4389 = vlaneseq
        %v4390 = vshrl.u32 %v4389, 7
        %v4391 = vsub.s32 4, %v4390
        %v4392 = vrot.slane %v775, %v4391
        %v4393 = vmul.f32 %v4357, %v4392
        %v4394 = vmul.f32 %v4358, %v4392
        %v4395 = vmul.f32 %v4359, %v4392
        %v4396 = vmul.f32 %v4361, %v4392
        %v4397 = vmul.f32 %v4362, %v4392
        %v4398 = vmul.f32 %v4363, %v4392
        %v4399 = vmul.f32 %v4365, %v4392
        %v4400 = vmul.f32 %v4366, %v4392
        %v4401 = vmul.f32 %v4367, %v4392
        %v4402 = vmul.f32 %v4369, %v4392
        %v4403 = vmul.f32 %v4370, %v4392
        %v4404 = vmul.f32 %v4371, %v4392
        %v4405 = vmul.f32 %v4373, %v4392
        %v4406 = vmul.f32 %v4374, %v4392
        %v4407 = vmul.f32 %v4375, %v4392
        %v4408 = vmul.f32 %v4377, %v4392
        %v4409 = vmul.f32 %v4378, %v4392
        %v4410 = vmul.f32 %v4379, %v4392
        %v4411 = vmul.f32 %v4381, %v4392
        %v4412 = vmul.f32 %v4382, %v4392
        %v4413 = vmul.f32 %v4383, %v4392
        %v4414 = vmul.f32 %v4385, %v4392
        %v4415 = vmul.f32 %v4386, %v4392
        %v4416 = vmul.f32 %v4387, %v4392
        %v4417 = vadd.f32 %v4332, %v4393
        %v4418 = vadd.f32 %v4333, %v4394
        %v4419 = vadd.f32 %v4334, %v4395
        %v4420 = vadd.f32 %v4335, %v4396
        %v4421 = vadd.f32 %v4336, %v4397
        %v4422 = vadd.f32 %v4337, %v4398
        %v4423 = vadd.f32 %v4338, %v4399
        %v4424 = vadd.f32 %v4339, %v4400
        %v4425 = vadd.f32 %v4340, %v4401
        %v4426 = vadd.f32 %v4341, %v4402
        %v4427 = vadd.f32 %v4342, %v4403
        %v4428 = vadd.f32 %v4343, %v4404
        %v4429 = vadd.f32 %v4344, %v4405
        %v4430 = vadd.f32 %v4345, %v4406
        %v4431 = vadd.f32 %v4346, %v4407
        %v4432 = vadd.f32 %v4347, %v4408
        %v4433 = vadd.f32 %v4348, %v4409
        %v4434 = vadd.f32 %v4349, %v4410
        %v4435 = vadd.f32 %v4350, %v4411
        %v4436 = vadd.f32 %v4351, %v4412
        %v4437 = vadd.f32 %v4352, %v4413
        %v4438 = vadd.f32 %v4353, %v4414
        %v4439 = vadd.f32 %v4354, %v4415
        %v4440 = vadd.f32 %v4355, %v4416
        %v4441 = vlaneseq
        %v4442 = vshrl.u32 %v4441, 7
        %v4443 = vsub.s32 5, %v4442
        %v4444 = vrot.slane %v775, %v4443
        %v4445 = vmul.f32 %v4357, %v4444
        %v4446 = vmul.f32 %v4358, %v4444
        %v4447 = vmul.f32 %v4359, %v4444
        %v4448 = vmul.f32 %v4361, %v4444
        %v4449 = vmul.f32 %v4362, %v4444
        %v4450 = vmul.f32 %v4363, %v4444
        %v4451 = vmul.f32 %v4365, %v4444
        %v4452 = vmul.f32 %v4366, %v4444
        %v4453 = vmul.f32 %v4367, %v4444
        %v4454 = vmul.f32 %v4369, %v4444
        %v4455 = vmul.f32 %v4370, %v4444
        %v4456 = vmul.f32 %v4371, %v4444
        %v4457 = vmul.f32 %v4373, %v4444
        %v4458 = vmul.f32 %v4374, %v4444
        %v4459 = vmul.f32 %v4375, %v4444
        %v4460 = vmul.f32 %v4377, %v4444
        %v4461 = vmul.f32 %v4378, %v4444
        %v4462 = vmul.f32 %v4379, %v4444
        %v4463 = vmul.f32 %v4381, %v4444
        %v4464 = vmul.f32 %v4382, %v4444
        %v4465 = vmul.f32 %v4383, %v4444
        %v4466 = vmul.f32 %v4385, %v4444
        %v4467 = vmul.f32 %v4386, %v4444
        %v4468 = vmul.f32 %v4387, %v4444
        %v4493 = vrot.slane %v4445, 1
        %v4494 = vrot.slane %v4446, 1
        %v4495 = vsel %vm915, %v4493, %v4494
        %v4496 = vrot.slane %v4447, 1
        %v4497 = vsel %vm915, %v4494, %v4496
        %v4498 = vrot.slane %v4448, 1
        %v4499 = vrot.slane %v4449, 1
        %v4500 = vsel %vm915, %v4498, %v4499
        %v4501 = vrot.slane %v4450, 1
        %v4502 = vsel %vm915, %v4499, %v4501
        %v4503 = vrot.slane %v4451, 1
        %v4504 = vrot.slane %v4452, 1
        %v4505 = vsel %vm915, %v4503, %v4504
        %v4506 = vrot.slane %v4453, 1
        %v4507 = vsel %vm915, %v4504, %v4506
        %v4508 = vrot.slane %v4454, 1
        %v4509 = vrot.slane %v4455, 1
        %v4510 = vsel %vm915, %v4508, %v4509
        %v4511 = vrot.slane %v4456, 1
        %v4512 = vsel %vm915, %v4509, %v4511
        %v4513 = vrot.slane %v4457, 1
        %v4514 = vrot.slane %v4458, 1
        %v4515 = vsel %vm915, %v4513, %v4514
        %v4516 = vrot.slane %v4459, 1
        %v4517 = vsel %vm915, %v4514, %v4516
        %v4518 = vrot.slane %v4460, 1
        %v4519 = vrot.slane %v4461, 1
        %v4520 = vsel %vm915, %v4518, %v4519
        %v4521 = vrot.slane %v4462, 1
        %v4522 = vsel %vm915, %v4519, %v4521
        %v4523 = vrot.slane %v4463, 1
        %v4524 = vrot.slane %v4464, 1
        %v4525 = vsel %vm915, %v4523, %v4524
        %v4526 = vrot.slane %v4465, 1
        %v4527 = vsel %vm915, %v4524, %v4526
        %v4528 = vrot.slane %v4466, 1
        %v4529 = vrot.slane %v4467, 1
        %v4530 = vsel %vm915, %v4528, %v4529
        %v4531 = vrot.slane %v4468, 1
        %v4532 = vsel %vm915, %v4529, %v4531
        %v4557 = vadd.f32 %v4417, %v4495
        %v4558 = vadd.f32 %v4418, %v4497
        %v4559 = vadd.f32 %v4419, %v4496
        %v4560 = vadd.f32 %v4420, %v4500
        %v4561 = vadd.f32 %v4421, %v4502
        %v4562 = vadd.f32 %v4422, %v4501
        %v4563 = vadd.f32 %v4423, %v4505
        %v4564 = vadd.f32 %v4424, %v4507
        %v4565 = vadd.f32 %v4425, %v4506
        %v4566 = vadd.f32 %v4426, %v4510
        %v4567 = vadd.f32 %v4427, %v4512
        %v4568 = vadd.f32 %v4428, %v4511
        %v4569 = vadd.f32 %v4429, %v4515
        %v4570 = vadd.f32 %v4430, %v4517
        %v4571 = vadd.f32 %v4431, %v4516
        %v4572 = vadd.f32 %v4432, %v4520
        %v4573 = vadd.f32 %v4433, %v4522
        %v4574 = vadd.f32 %v4434, %v4521
        %v4575 = vadd.f32 %v4435, %v4525
        %v4576 = vadd.f32 %v4436, %v4527
        %v4577 = vadd.f32 %v4437, %v4526
        %v4578 = vadd.f32 %v4438, %v4530
        %v4579 = vadd.f32 %v4439, %v4532
        %v4580 = vadd.f32 %v4440, %v4531
        %v4581 = vlaneseq
        %v4582 = vshrl.u32 %v4581, 7
        %v4583 = vsub.s32 6, %v4582
        %v4584 = vrot.slane %v775, %v4583
        %v4585 = vmul.f32 %v4357, %v4584
        %v4586 = vmul.f32 %v4358, %v4584
        %v4587 = vmul.f32 %v4359, %v4584
        %v4588 = vmul.f32 %v4361, %v4584
        %v4589 = vmul.f32 %v4362, %v4584
        %v4590 = vmul.f32 %v4363, %v4584
        %v4591 = vmul.f32 %v4365, %v4584
        %v4592 = vmul.f32 %v4366, %v4584
        %v4593 = vmul.f32 %v4367, %v4584
        %v4594 = vmul.f32 %v4369, %v4584
        %v4595 = vmul.f32 %v4370, %v4584
        %v4596 = vmul.f32 %v4371, %v4584
        %v4597 = vmul.f32 %v4373, %v4584
        %v4598 = vmul.f32 %v4374, %v4584
        %v4599 = vmul.f32 %v4375, %v4584
        %v4600 = vmul.f32 %v4377, %v4584
        %v4601 = vmul.f32 %v4378, %v4584
        %v4602 = vmul.f32 %v4379, %v4584
        %v4603 = vmul.f32 %v4381, %v4584
        %v4604 = vmul.f32 %v4382, %v4584
        %v4605 = vmul.f32 %v4383, %v4584
        %v4606 = vmul.f32 %v4385, %v4584
        %v4607 = vmul.f32 %v4386, %v4584
        %v4608 = vmul.f32 %v4387, %v4584
        %v4633 = vrot.slane %v4585, 2
        %v4634 = vrot.slane %v4586, 2
        %v4635 = vsel %vm1056, %v4633, %v4634
        %v4636 = vrot.slane %v4587, 2
        %v4637 = vsel %vm1056, %v4634, %v4636
        %v4638 = vrot.slane %v4588, 2
        %v4639 = vrot.slane %v4589, 2
        %v4640 = vsel %vm1056, %v4638, %v4639
        %v4641 = vrot.slane %v4590, 2
        %v4642 = vsel %vm1056, %v4639, %v4641
        %v4643 = vrot.slane %v4591, 2
        %v4644 = vrot.slane %v4592, 2
        %v4645 = vsel %vm1056, %v4643, %v4644
        %v4646 = vrot.slane %v4593, 2
        %v4647 = vsel %vm1056, %v4644, %v4646
        %v4648 = vrot.slane %v4594, 2
        %v4649 = vrot.slane %v4595, 2
        %v4650 = vsel %vm1056, %v4648, %v4649
        %v4651 = vrot.slane %v4596, 2
        %v4652 = vsel %vm1056, %v4649, %v4651
        %v4653 = vrot.slane %v4597, 2
        %v4654 = vrot.slane %v4598, 2
        %v4655 = vsel %vm1056, %v4653, %v4654
        %v4656 = vrot.slane %v4599, 2
        %v4657 = vsel %vm1056, %v4654, %v4656
        %v4658 = vrot.slane %v4600, 2
        %v4659 = vrot.slane %v4601, 2
        %v4660 = vsel %vm1056, %v4658, %v4659
        %v4661 = vrot.slane %v4602, 2
        %v4662 = vsel %vm1056, %v4659, %v4661
        %v4663 = vrot.slane %v4603, 2
        %v4664 = vrot.slane %v4604, 2
        %v4665 = vsel %vm1056, %v4663, %v4664
        %v4666 = vrot.slane %v4605, 2
        %v4667 = vsel %vm1056, %v4664, %v4666
        %v4668 = vrot.slane %v4606, 2
        %v4669 = vrot.slane %v4607, 2
        %v4670 = vsel %vm1056, %v4668, %v4669
        %v4671 = vrot.slane %v4608, 2
        %v4672 = vsel %vm1056, %v4669, %v4671
        %v4697 = vadd.f32 %v4557, %v4635
        %v4698 = vadd.f32 %v4558, %v4637
        %v4699 = vadd.f32 %v4559, %v4636
        %v4700 = vadd.f32 %v4560, %v4640
        %v4701 = vadd.f32 %v4561, %v4642
        %v4702 = vadd.f32 %v4562, %v4641
        %v4703 = vadd.f32 %v4563, %v4645
        %v4704 = vadd.f32 %v4564, %v4647
        %v4705 = vadd.f32 %v4565, %v4646
        %v4706 = vadd.f32 %v4566, %v4650
        %v4707 = vadd.f32 %v4567, %v4652
        %v4708 = vadd.f32 %v4568, %v4651
        %v4709 = vadd.f32 %v4569, %v4655
        %v4710 = vadd.f32 %v4570, %v4657
        %v4711 = vadd.f32 %v4571, %v4656
        %v4712 = vadd.f32 %v4572, %v4660
        %v4713 = vadd.f32 %v4573, %v4662
        %v4714 = vadd.f32 %v4574, %v4661
        %v4715 = vadd.f32 %v4575, %v4665
        %v4716 = vadd.f32 %v4576, %v4667
        %v4717 = vadd.f32 %v4577, %v4666
        %v4718 = vadd.f32 %v4578, %v4670
        %v4719 = vadd.f32 %v4579, %v4672
        %v4720 = vadd.f32 %v4580, %v4671
        %v4721 = vlaneseq
        %v4722 = vshrl.u32 %v4721, 7
        %v4723 = vsub.s32 7, %v4722
        %v4724 = vrot.slane %v775, %v4723
        %v4725 = vmul.f32 %v4358, %v4724
        %v4726 = vmul.f32 %v4359, %v4724
        %v4727 = vmul.f32 %v4362, %v4724
        %v4728 = vmul.f32 %v4363, %v4724
        %v4729 = vmul.f32 %v4366, %v4724
        %v4730 = vmul.f32 %v4367, %v4724
        %v4731 = vmul.f32 %v4370, %v4724
        %v4732 = vmul.f32 %v4371, %v4724
        %v4733 = vmul.f32 %v4374, %v4724
        %v4734 = vmul.f32 %v4375, %v4724
        %v4735 = vmul.f32 %v4378, %v4724
        %v4736 = vmul.f32 %v4379, %v4724
        %v4737 = vmul.f32 %v4382, %v4724
        %v4738 = vmul.f32 %v4383, %v4724
        %v4739 = vmul.f32 %v4386, %v4724
        %v4740 = vmul.f32 %v4387, %v4724
        %v4757 = vrot.slane %v4725, 3
        %v4758 = vrot.slane %v4726, 3
        %v4759 = vsel %vm1181, %v4757, %v4758
        %v4760 = vrot.slane %v4727, 3
        %v4761 = vrot.slane %v4728, 3
        %v4762 = vsel %vm1181, %v4760, %v4761
        %v4763 = vrot.slane %v4729, 3
        %v4764 = vrot.slane %v4730, 3
        %v4765 = vsel %vm1181, %v4763, %v4764
        %v4766 = vrot.slane %v4731, 3
        %v4767 = vrot.slane %v4732, 3
        %v4768 = vsel %vm1181, %v4766, %v4767
        %v4769 = vrot.slane %v4733, 3
        %v4770 = vrot.slane %v4734, 3
        %v4771 = vsel %vm1181, %v4769, %v4770
        %v4772 = vrot.slane %v4735, 3
        %v4773 = vrot.slane %v4736, 3
        %v4774 = vsel %vm1181, %v4772, %v4773
        %v4775 = vrot.slane %v4737, 3
        %v4776 = vrot.slane %v4738, 3
        %v4777 = vsel %vm1181, %v4775, %v4776
        %v4778 = vrot.slane %v4739, 3
        %v4779 = vrot.slane %v4740, 3
        %v4780 = vsel %vm1181, %v4778, %v4779
        %v4805 = vadd.f32 %v4697, %v4757
        %v4806 = vadd.f32 %v4698, %v4759
        %v4807 = vadd.f32 %v4699, %v4758
        %v4808 = vadd.f32 %v4700, %v4760
        %v4809 = vadd.f32 %v4701, %v4762
        %v4810 = vadd.f32 %v4702, %v4761
        %v4811 = vadd.f32 %v4703, %v4763
        %v4812 = vadd.f32 %v4704, %v4765
        %v4813 = vadd.f32 %v4705, %v4764
        %v4814 = vadd.f32 %v4706, %v4766
        %v4815 = vadd.f32 %v4707, %v4768
        %v4816 = vadd.f32 %v4708, %v4767
        %v4817 = vadd.f32 %v4709, %v4769
        %v4818 = vadd.f32 %v4710, %v4771
        %v4819 = vadd.f32 %v4711, %v4770
        %v4820 = vadd.f32 %v4712, %v4772
        %v4821 = vadd.f32 %v4713, %v4774
        %v4822 = vadd.f32 %v4714, %v4773
        %v4823 = vadd.f32 %v4715, %v4775
        %v4824 = vadd.f32 %v4716, %v4777
        %v4825 = vadd.f32 %v4717, %v4776
        %v4826 = vadd.f32 %v4718, %v4778
        %v4827 = vadd.f32 %v4719, %v4780
        %v4828 = vadd.f32 %v4720, %v4779
        %v4829 = vlaneseq
        %v4830 = vshrl.u32 %v4829, 7
        %v4831 = vsub.s32 0, %v4830
        %v4832 = vrot.slane %v776, %v4831
        %v4833 = vmul.f32 %v4358, %v4832
        %v4834 = vmul.f32 %v4359, %v4832
        %v4835 = vmul.f32 %v4360, %v4832
        %v4836 = vmul.f32 %v4362, %v4832
        %v4837 = vmul.f32 %v4363, %v4832
        %v4838 = vmul.f32 %v4364, %v4832
        %v4839 = vmul.f32 %v4366, %v4832
        %v4840 = vmul.f32 %v4367, %v4832
        %v4841 = vmul.f32 %v4368, %v4832
        %v4842 = vmul.f32 %v4370, %v4832
        %v4843 = vmul.f32 %v4371, %v4832
        %v4844 = vmul.f32 %v4372, %v4832
        %v4845 = vmul.f32 %v4374, %v4832
        %v4846 = vmul.f32 %v4375, %v4832
        %v4847 = vmul.f32 %v4376, %v4832
        %v4848 = vmul.f32 %v4378, %v4832
        %v4849 = vmul.f32 %v4379, %v4832
        %v4850 = vmul.f32 %v4380, %v4832
        %v4851 = vmul.f32 %v4382, %v4832
        %v4852 = vmul.f32 %v4383, %v4832
        %v4853 = vmul.f32 %v4384, %v4832
        %v4854 = vmul.f32 %v4386, %v4832
        %v4855 = vmul.f32 %v4387, %v4832
        %v4856 = vmul.f32 %v4388, %v4832
        %v4881 = vrot.slane %v4833, 4
        %v4882 = vrot.slane %v4834, 4
        %v4883 = vsel %vm1306, %v4881, %v4882
        %v4884 = vrot.slane %v4835, 4
        %v4885 = vsel %vm1306, %v4882, %v4884
        %v4886 = vrot.slane %v4836, 4
        %v4887 = vrot.slane %v4837, 4
        %v4888 = vsel %vm1306, %v4886, %v4887
        %v4889 = vrot.slane %v4838, 4
        %v4890 = vsel %vm1306, %v4887, %v4889
        %v4891 = vrot.slane %v4839, 4
        %v4892 = vrot.slane %v4840, 4
        %v4893 = vsel %vm1306, %v4891, %v4892
        %v4894 = vrot.slane %v4841, 4
        %v4895 = vsel %vm1306, %v4892, %v4894
        %v4896 = vrot.slane %v4842, 4
        %v4897 = vrot.slane %v4843, 4
        %v4898 = vsel %vm1306, %v4896, %v4897
        %v4899 = vrot.slane %v4844, 4
        %v4900 = vsel %vm1306, %v4897, %v4899
        %v4901 = vrot.slane %v4845, 4
        %v4902 = vrot.slane %v4846, 4
        %v4903 = vsel %vm1306, %v4901, %v4902
        %v4904 = vrot.slane %v4847, 4
        %v4905 = vsel %vm1306, %v4902, %v4904
        %v4906 = vrot.slane %v4848, 4
        %v4907 = vrot.slane %v4849, 4
        %v4908 = vsel %vm1306, %v4906, %v4907
        %v4909 = vrot.slane %v4850, 4
        %v4910 = vsel %vm1306, %v4907, %v4909
        %v4911 = vrot.slane %v4851, 4
        %v4912 = vrot.slane %v4852, 4
        %v4913 = vsel %vm1306, %v4911, %v4912
        %v4914 = vrot.slane %v4853, 4
        %v4915 = vsel %vm1306, %v4912, %v4914
        %v4916 = vrot.slane %v4854, 4
        %v4917 = vrot.slane %v4855, 4
        %v4918 = vsel %vm1306, %v4916, %v4917
        %v4919 = vrot.slane %v4856, 4
        %v4920 = vsel %vm1306, %v4917, %v4919
        %v4945 = vadd.f32 %v4805, %v4881
        %v4946 = vadd.f32 %v4806, %v4883
        %v4947 = vadd.f32 %v4807, %v4885
        %v4948 = vadd.f32 %v4808, %v4886
        %v4949 = vadd.f32 %v4809, %v4888
        %v4950 = vadd.f32 %v4810, %v4890
        %v4951 = vadd.f32 %v4811, %v4891
        %v4952 = vadd.f32 %v4812, %v4893
        %v4953 = vadd.f32 %v4813, %v4895
        %v4954 = vadd.f32 %v4814, %v4896
        %v4955 = vadd.f32 %v4815, %v4898
        %v4956 = vadd.f32 %v4816, %v4900
        %v4957 = vadd.f32 %v4817, %v4901
        %v4958 = vadd.f32 %v4818, %v4903
        %v4959 = vadd.f32 %v4819, %v4905
        %v4960 = vadd.f32 %v4820, %v4906
        %v4961 = vadd.f32 %v4821, %v4908
        %v4962 = vadd.f32 %v4822, %v4910
        %v4963 = vadd.f32 %v4823, %v4911
        %v4964 = vadd.f32 %v4824, %v4913
        %v4965 = vadd.f32 %v4825, %v4915
        %v4966 = vadd.f32 %v4826, %v4916
        %v4967 = vadd.f32 %v4827, %v4918
        %v4968 = vadd.f32 %v4828, %v4920
        %v4969 = vlaneseq
        %v4970 = vshrl.u32 %v4969, 7
        %v4971 = vsub.s32 1, %v4970
        %v4972 = vrot.slane %v776, %v4971
        %v4973 = vmul.f32 %v4358, %v4972
        %v4974 = vmul.f32 %v4359, %v4972
        %v4975 = vmul.f32 %v4360, %v4972
        %v4976 = vmul.f32 %v4362, %v4972
        %v4977 = vmul.f32 %v4363, %v4972
        %v4978 = vmul.f32 %v4364, %v4972
        %v4979 = vmul.f32 %v4366, %v4972
        %v4980 = vmul.f32 %v4367, %v4972
        %v4981 = vmul.f32 %v4368, %v4972
        %v4982 = vmul.f32 %v4370, %v4972
        %v4983 = vmul.f32 %v4371, %v4972
        %v4984 = vmul.f32 %v4372, %v4972
        %v4985 = vmul.f32 %v4374, %v4972
        %v4986 = vmul.f32 %v4375, %v4972
        %v4987 = vmul.f32 %v4376, %v4972
        %v4988 = vmul.f32 %v4378, %v4972
        %v4989 = vmul.f32 %v4379, %v4972
        %v4990 = vmul.f32 %v4380, %v4972
        %v4991 = vmul.f32 %v4382, %v4972
        %v4992 = vmul.f32 %v4383, %v4972
        %v4993 = vmul.f32 %v4384, %v4972
        %v4994 = vmul.f32 %v4386, %v4972
        %v4995 = vmul.f32 %v4387, %v4972
        %v4996 = vmul.f32 %v4388, %v4972
        %v5021 = vrot.slane %v4973, 5
        %v5022 = vrot.slane %v4974, 5
        %v5023 = vsel %vm1447, %v5021, %v5022
        %v5024 = vrot.slane %v4975, 5
        %v5025 = vsel %vm1447, %v5022, %v5024
        %v5026 = vrot.slane %v4976, 5
        %v5027 = vrot.slane %v4977, 5
        %v5028 = vsel %vm1447, %v5026, %v5027
        %v5029 = vrot.slane %v4978, 5
        %v5030 = vsel %vm1447, %v5027, %v5029
        %v5031 = vrot.slane %v4979, 5
        %v5032 = vrot.slane %v4980, 5
        %v5033 = vsel %vm1447, %v5031, %v5032
        %v5034 = vrot.slane %v4981, 5
        %v5035 = vsel %vm1447, %v5032, %v5034
        %v5036 = vrot.slane %v4982, 5
        %v5037 = vrot.slane %v4983, 5
        %v5038 = vsel %vm1447, %v5036, %v5037
        %v5039 = vrot.slane %v4984, 5
        %v5040 = vsel %vm1447, %v5037, %v5039
        %v5041 = vrot.slane %v4985, 5
        %v5042 = vrot.slane %v4986, 5
        %v5043 = vsel %vm1447, %v5041, %v5042
        %v5044 = vrot.slane %v4987, 5
        %v5045 = vsel %vm1447, %v5042, %v5044
        %v5046 = vrot.slane %v4988, 5
        %v5047 = vrot.slane %v4989, 5
        %v5048 = vsel %vm1447, %v5046, %v5047
        %v5049 = vrot.slane %v4990, 5
        %v5050 = vsel %vm1447, %v5047, %v5049
        %v5051 = vrot.slane %v4991, 5
        %v5052 = vrot.slane %v4992, 5
        %v5053 = vsel %vm1447, %v5051, %v5052
        %v5054 = vrot.slane %v4993, 5
        %v5055 = vsel %vm1447, %v5052, %v5054
        %v5056 = vrot.slane %v4994, 5
        %v5057 = vrot.slane %v4995, 5
        %v5058 = vsel %vm1447, %v5056, %v5057
        %v5059 = vrot.slane %v4996, 5
        %v5060 = vsel %vm1447, %v5057, %v5059
        %v5085 = vadd.f32 %v4945, %v5021
        %v5086 = vadd.f32 %v4946, %v5023
        %v5087 = vadd.f32 %v4947, %v5025
        %v5088 = vadd.f32 %v4948, %v5026
        %v5089 = vadd.f32 %v4949, %v5028
        %v5090 = vadd.f32 %v4950, %v5030
        %v5091 = vadd.f32 %v4951, %v5031
        %v5092 = vadd.f32 %v4952, %v5033
        %v5093 = vadd.f32 %v4953, %v5035
        %v5094 = vadd.f32 %v4954, %v5036
        %v5095 = vadd.f32 %v4955, %v5038
        %v5096 = vadd.f32 %v4956, %v5040
        %v5097 = vadd.f32 %v4957, %v5041
        %v5098 = vadd.f32 %v4958, %v5043
        %v5099 = vadd.f32 %v4959, %v5045
        %v5100 = vadd.f32 %v4960, %v5046
        %v5101 = vadd.f32 %v4961, %v5048
        %v5102 = vadd.f32 %v4962, %v5050
        %v5103 = vadd.f32 %v4963, %v5051
        %v5104 = vadd.f32 %v4964, %v5053
        %v5105 = vadd.f32 %v4965, %v5055
        %v5106 = vadd.f32 %v4966, %v5056
        %v5107 = vadd.f32 %v4967, %v5058
        %v5108 = vadd.f32 %v4968, %v5060
        %v5109 = vlaneseq
        %v5110 = vshrl.u32 %v5109, 7
        %v5111 = vsub.s32 2, %v5110
        %v5112 = vrot.slane %v776, %v5111
        %v5113 = vmul.f32 %v4358, %v5112
        %v5114 = vmul.f32 %v4359, %v5112
        %v5115 = vmul.f32 %v4360, %v5112
        %v5116 = vmul.f32 %v4362, %v5112
        %v5117 = vmul.f32 %v4363, %v5112
        %v5118 = vmul.f32 %v4364, %v5112
        %v5119 = vmul.f32 %v4366, %v5112
        %v5120 = vmul.f32 %v4367, %v5112
        %v5121 = vmul.f32 %v4368, %v5112
        %v5122 = vmul.f32 %v4370, %v5112
        %v5123 = vmul.f32 %v4371, %v5112
        %v5124 = vmul.f32 %v4372, %v5112
        %v5125 = vmul.f32 %v4374, %v5112
        %v5126 = vmul.f32 %v4375, %v5112
        %v5127 = vmul.f32 %v4376, %v5112
        %v5128 = vmul.f32 %v4378, %v5112
        %v5129 = vmul.f32 %v4379, %v5112
        %v5130 = vmul.f32 %v4380, %v5112
        %v5131 = vmul.f32 %v4382, %v5112
        %v5132 = vmul.f32 %v4383, %v5112
        %v5133 = vmul.f32 %v4384, %v5112
        %v5134 = vmul.f32 %v4386, %v5112
        %v5135 = vmul.f32 %v4387, %v5112
        %v5136 = vmul.f32 %v4388, %v5112
        %v5161 = vrot.slane %v5113, 6
        %v5162 = vrot.slane %v5114, 6
        %v5163 = vsel %vm1588, %v5161, %v5162
        %v5164 = vrot.slane %v5115, 6
        %v5165 = vsel %vm1588, %v5162, %v5164
        %v5166 = vrot.slane %v5116, 6
        %v5167 = vrot.slane %v5117, 6
        %v5168 = vsel %vm1588, %v5166, %v5167
        %v5169 = vrot.slane %v5118, 6
        %v5170 = vsel %vm1588, %v5167, %v5169
        %v5171 = vrot.slane %v5119, 6
        %v5172 = vrot.slane %v5120, 6
        %v5173 = vsel %vm1588, %v5171, %v5172
        %v5174 = vrot.slane %v5121, 6
        %v5175 = vsel %vm1588, %v5172, %v5174
        %v5176 = vrot.slane %v5122, 6
        %v5177 = vrot.slane %v5123, 6
        %v5178 = vsel %vm1588, %v5176, %v5177
        %v5179 = vrot.slane %v5124, 6
        %v5180 = vsel %vm1588, %v5177, %v5179
        %v5181 = vrot.slane %v5125, 6
        %v5182 = vrot.slane %v5126, 6
        %v5183 = vsel %vm1588, %v5181, %v5182
        %v5184 = vrot.slane %v5127, 6
        %v5185 = vsel %vm1588, %v5182, %v5184
        %v5186 = vrot.slane %v5128, 6
        %v5187 = vrot.slane %v5129, 6
        %v5188 = vsel %vm1588, %v5186, %v5187
        %v5189 = vrot.slane %v5130, 6
        %v5190 = vsel %vm1588, %v5187, %v5189
        %v5191 = vrot.slane %v5131, 6
        %v5192 = vrot.slane %v5132, 6
        %v5193 = vsel %vm1588, %v5191, %v5192
        %v5194 = vrot.slane %v5133, 6
        %v5195 = vsel %vm1588, %v5192, %v5194
        %v5196 = vrot.slane %v5134, 6
        %v5197 = vrot.slane %v5135, 6
        %v5198 = vsel %vm1588, %v5196, %v5197
        %v5199 = vrot.slane %v5136, 6
        %v5200 = vsel %vm1588, %v5197, %v5199
        %v5225 = vadd.f32 %v5085, %v5161
        %v5226 = vadd.f32 %v5086, %v5163
        %v5227 = vadd.f32 %v5087, %v5165
        %v5228 = vadd.f32 %v5088, %v5166
        %v5229 = vadd.f32 %v5089, %v5168
        %v5230 = vadd.f32 %v5090, %v5170
        %v5231 = vadd.f32 %v5091, %v5171
        %v5232 = vadd.f32 %v5092, %v5173
        %v5233 = vadd.f32 %v5093, %v5175
        %v5234 = vadd.f32 %v5094, %v5176
        %v5235 = vadd.f32 %v5095, %v5178
        %v5236 = vadd.f32 %v5096, %v5180
        %v5237 = vadd.f32 %v5097, %v5181
        %v5238 = vadd.f32 %v5098, %v5183
        %v5239 = vadd.f32 %v5099, %v5185
        %v5240 = vadd.f32 %v5100, %v5186
        %v5241 = vadd.f32 %v5101, %v5188
        %v5242 = vadd.f32 %v5102, %v5190
        %v5243 = vadd.f32 %v5103, %v5191
        %v5244 = vadd.f32 %v5104, %v5193
        %v5245 = vadd.f32 %v5105, %v5195
        %v5246 = vadd.f32 %v5106, %v5196
        %v5247 = vadd.f32 %v5107, %v5198
        %v5248 = vadd.f32 %v5108, %v5200
        %s5249 = scalar_lea.vmem [#allocation2], 160
        %v5250 = vld [vmem:[%s5249] sm:$0xff]
        %v5251 = vld [vmem:[%s5249 + $0x8] sm:$0xff]
        %v5252 = vld [vmem:[%s5249 + $0x10] sm:$0xff]
        %v5253 = vld [vmem:[%s5249 + $0x18] sm:$0xff]
        %v5254 = vld [vmem:[%s5249 + $0x20] sm:$0xff]
        %v5255 = vld [vmem:[%s5249 + $0x28] sm:$0xff]
        %v5256 = vld [vmem:[%s5249 + $0x30] sm:$0xff]
        %v5257 = vld [vmem:[%s5249 + $0x38] sm:$0xff]
        %v5258 = vld [vmem:[%s5249 + $0x40] sm:$0xff]
        %v5259 = vld [vmem:[%s5249 + $0x48] sm:$0xff]
        %v5260 = vld [vmem:[%s5249 + $0x50] sm:$0xff]
        %v5261 = vld [vmem:[%s5249 + $0x58] sm:$0xff]
        %v5262 = vld [vmem:[%s5249 + $0x60] sm:$0xff]
        %v5263 = vld [vmem:[%s5249 + $0x68] sm:$0xff]
        %v5264 = vld [vmem:[%s5249 + $0x70] sm:$0xff]
        %v5265 = vld [vmem:[%s5249 + $0x78] sm:$0xff]
        %v5266 = vld [vmem:[%s5249 + $0x80] sm:$0xff]
        %v5267 = vld [vmem:[%s5249 + $0x88] sm:$0xff]
        %v5268 = vld [vmem:[%s5249 + $0x90] sm:$0xff]
        %v5269 = vld [vmem:[%s5249 + $0x98] sm:$0xff]
        %v5270 = vld [vmem:[%s5249 + $0xa0] sm:$0xff]
        %v5271 = vld [vmem:[%s5249 + $0xa8] sm:$0xff]
        %v5272 = vld [vmem:[%s5249 + $0xb0] sm:$0xff]
        %v5273 = vld [vmem:[%s5249 + $0xb8] sm:$0xff]
        %v5274 = vld [vmem:[%s5249 + $0xc0] sm:$0xff]
        %v5275 = vld [vmem:[%s5249 + $0xc8] sm:$0xff]
        %v5276 = vld [vmem:[%s5249 + $0xd0] sm:$0xff]
        %v5277 = vld [vmem:[%s5249 + $0xd8] sm:$0xff]
        %v5278 = vld [vmem:[%s5249 + $0xe0] sm:$0xff]
        %v5279 = vld [vmem:[%s5249 + $0xe8] sm:$0xff]
        %v5280 = vld [vmem:[%s5249 + $0xf0] sm:$0xff]
        %v5281 = vld [vmem:[%s5249 + $0xf8] sm:$0xff]
        %v5282 = vlaneseq
        %v5283 = vshrl.u32 %v5282, 7
        %v5284 = vsub.s32 3, %v5283
        %v5285 = vrot.slane %v776, %v5284
        %v5286 = vmul.f32 %v5250, %v5285
        %v5287 = vmul.f32 %v5251, %v5285
        %v5288 = vmul.f32 %v5252, %v5285
        %v5289 = vmul.f32 %v5254, %v5285
        %v5290 = vmul.f32 %v5255, %v5285
        %v5291 = vmul.f32 %v5256, %v5285
        %v5292 = vmul.f32 %v5258, %v5285
        %v5293 = vmul.f32 %v5259, %v5285
        %v5294 = vmul.f32 %v5260, %v5285
        %v5295 = vmul.f32 %v5262, %v5285
        %v5296 = vmul.f32 %v5263, %v5285
        %v5297 = vmul.f32 %v5264, %v5285
        %v5298 = vmul.f32 %v5266, %v5285
        %v5299 = vmul.f32 %v5267, %v5285
        %v5300 = vmul.f32 %v5268, %v5285
        %v5301 = vmul.f32 %v5270, %v5285
        %v5302 = vmul.f32 %v5271, %v5285
        %v5303 = vmul.f32 %v5272, %v5285
        %v5304 = vmul.f32 %v5274, %v5285
        %v5305 = vmul.f32 %v5275, %v5285
        %v5306 = vmul.f32 %v5276, %v5285
        %v5307 = vmul.f32 %v5278, %v5285
        %v5308 = vmul.f32 %v5279, %v5285
        %v5309 = vmul.f32 %v5280, %v5285
        %v5310 = vadd.f32 %v5225, %v5286
        %v5311 = vadd.f32 %v5226, %v5287
        %v5312 = vadd.f32 %v5227, %v5288
        %v5313 = vadd.f32 %v5228, %v5289
        %v5314 = vadd.f32 %v5229, %v5290
        %v5315 = vadd.f32 %v5230, %v5291
        %v5316 = vadd.f32 %v5231, %v5292
        %v5317 = vadd.f32 %v5232, %v5293
        %v5318 = vadd.f32 %v5233, %v5294
        %v5319 = vadd.f32 %v5234, %v5295
        %v5320 = vadd.f32 %v5235, %v5296
        %v5321 = vadd.f32 %v5236, %v5297
        %v5322 = vadd.f32 %v5237, %v5298
        %v5323 = vadd.f32 %v5238, %v5299
        %v5324 = vadd.f32 %v5239, %v5300
        %v5325 = vadd.f32 %v5240, %v5301
        %v5326 = vadd.f32 %v5241, %v5302
        %v5327 = vadd.f32 %v5242, %v5303
        %v5328 = vadd.f32 %v5243, %v5304
        %v5329 = vadd.f32 %v5244, %v5305
        %v5330 = vadd.f32 %v5245, %v5306
        %v5331 = vadd.f32 %v5246, %v5307
        %v5332 = vadd.f32 %v5247, %v5308
        %v5333 = vadd.f32 %v5248, %v5309
        %v5334 = vlaneseq
        %v5335 = vshrl.u32 %v5334, 7
        %v5336 = vsub.s32 4, %v5335
        %v5337 = vrot.slane %v776, %v5336
        %v5338 = vmul.f32 %v5250, %v5337
        %v5339 = vmul.f32 %v5251, %v5337
        %v5340 = vmul.f32 %v5252, %v5337
        %v5341 = vmul.f32 %v5254, %v5337
        %v5342 = vmul.f32 %v5255, %v5337
        %v5343 = vmul.f32 %v5256, %v5337
        %v5344 = vmul.f32 %v5258, %v5337
        %v5345 = vmul.f32 %v5259, %v5337
        %v5346 = vmul.f32 %v5260, %v5337
        %v5347 = vmul.f32 %v5262, %v5337
        %v5348 = vmul.f32 %v5263, %v5337
        %v5349 = vmul.f32 %v5264, %v5337
        %v5350 = vmul.f32 %v5266, %v5337
        %v5351 = vmul.f32 %v5267, %v5337
        %v5352 = vmul.f32 %v5268, %v5337
        %v5353 = vmul.f32 %v5270, %v5337
        %v5354 = vmul.f32 %v5271, %v5337
        %v5355 = vmul.f32 %v5272, %v5337
        %v5356 = vmul.f32 %v5274, %v5337
        %v5357 = vmul.f32 %v5275, %v5337
        %v5358 = vmul.f32 %v5276, %v5337
        %v5359 = vmul.f32 %v5278, %v5337
        %v5360 = vmul.f32 %v5279, %v5337
        %v5361 = vmul.f32 %v5280, %v5337
        %v5386 = vrot.slane %v5338, 1
        %v5387 = vrot.slane %v5339, 1
        %v5388 = vsel %vm915, %v5386, %v5387
        %v5389 = vrot.slane %v5340, 1
        %v5390 = vsel %vm915, %v5387, %v5389
        %v5391 = vrot.slane %v5341, 1
        %v5392 = vrot.slane %v5342, 1
        %v5393 = vsel %vm915, %v5391, %v5392
        %v5394 = vrot.slane %v5343, 1
        %v5395 = vsel %vm915, %v5392, %v5394
        %v5396 = vrot.slane %v5344, 1
        %v5397 = vrot.slane %v5345, 1
        %v5398 = vsel %vm915, %v5396, %v5397
        %v5399 = vrot.slane %v5346, 1
        %v5400 = vsel %vm915, %v5397, %v5399
        %v5401 = vrot.slane %v5347, 1
        %v5402 = vrot.slane %v5348, 1
        %v5403 = vsel %vm915, %v5401, %v5402
        %v5404 = vrot.slane %v5349, 1
        %v5405 = vsel %vm915, %v5402, %v5404
        %v5406 = vrot.slane %v5350, 1
        %v5407 = vrot.slane %v5351, 1
        %v5408 = vsel %vm915, %v5406, %v5407
        %v5409 = vrot.slane %v5352, 1
        %v5410 = vsel %vm915, %v5407, %v5409
        %v5411 = vrot.slane %v5353, 1
        %v5412 = vrot.slane %v5354, 1
        %v5413 = vsel %vm915, %v5411, %v5412
        %v5414 = vrot.slane %v5355, 1
        %v5415 = vsel %vm915, %v5412, %v5414
        %v5416 = vrot.slane %v5356, 1
        %v5417 = vrot.slane %v5357, 1
        %v5418 = vsel %vm915, %v5416, %v5417
        %v5419 = vrot.slane %v5358, 1
        %v5420 = vsel %vm915, %v5417, %v5419
        %v5421 = vrot.slane %v5359, 1
        %v5422 = vrot.slane %v5360, 1
        %v5423 = vsel %vm915, %v5421, %v5422
        %v5424 = vrot.slane %v5361, 1
        %v5425 = vsel %vm915, %v5422, %v5424
        %v5450 = vadd.f32 %v5310, %v5388
        %v5451 = vadd.f32 %v5311, %v5390
        %v5452 = vadd.f32 %v5312, %v5389
        %v5453 = vadd.f32 %v5313, %v5393
        %v5454 = vadd.f32 %v5314, %v5395
        %v5455 = vadd.f32 %v5315, %v5394
        %v5456 = vadd.f32 %v5316, %v5398
        %v5457 = vadd.f32 %v5317, %v5400
        %v5458 = vadd.f32 %v5318, %v5399
        %v5459 = vadd.f32 %v5319, %v5403
        %v5460 = vadd.f32 %v5320, %v5405
        %v5461 = vadd.f32 %v5321, %v5404
        %v5462 = vadd.f32 %v5322, %v5408
        %v5463 = vadd.f32 %v5323, %v5410
        %v5464 = vadd.f32 %v5324, %v5409
        %v5465 = vadd.f32 %v5325, %v5413
        %v5466 = vadd.f32 %v5326, %v5415
        %v5467 = vadd.f32 %v5327, %v5414
        %v5468 = vadd.f32 %v5328, %v5418
        %v5469 = vadd.f32 %v5329, %v5420
        %v5470 = vadd.f32 %v5330, %v5419
        %v5471 = vadd.f32 %v5331, %v5423
        %v5472 = vadd.f32 %v5332, %v5425
        %v5473 = vadd.f32 %v5333, %v5424
        %v5474 = vlaneseq
        %v5475 = vshrl.u32 %v5474, 7
        %v5476 = vsub.s32 5, %v5475
        %v5477 = vrot.slane %v776, %v5476
        %v5478 = vmul.f32 %v5250, %v5477
        %v5479 = vmul.f32 %v5251, %v5477
        %v5480 = vmul.f32 %v5252, %v5477
        %v5481 = vmul.f32 %v5254, %v5477
        %v5482 = vmul.f32 %v5255, %v5477
        %v5483 = vmul.f32 %v5256, %v5477
        %v5484 = vmul.f32 %v5258, %v5477
        %v5485 = vmul.f32 %v5259, %v5477
        %v5486 = vmul.f32 %v5260, %v5477
        %v5487 = vmul.f32 %v5262, %v5477
        %v5488 = vmul.f32 %v5263, %v5477
        %v5489 = vmul.f32 %v5264, %v5477
        %v5490 = vmul.f32 %v5266, %v5477
        %v5491 = vmul.f32 %v5267, %v5477
        %v5492 = vmul.f32 %v5268, %v5477
        %v5493 = vmul.f32 %v5270, %v5477
        %v5494 = vmul.f32 %v5271, %v5477
        %v5495 = vmul.f32 %v5272, %v5477
        %v5496 = vmul.f32 %v5274, %v5477
        %v5497 = vmul.f32 %v5275, %v5477
        %v5498 = vmul.f32 %v5276, %v5477
        %v5499 = vmul.f32 %v5278, %v5477
        %v5500 = vmul.f32 %v5279, %v5477
        %v5501 = vmul.f32 %v5280, %v5477
        %v5526 = vrot.slane %v5478, 2
        %v5527 = vrot.slane %v5479, 2
        %v5528 = vsel %vm1056, %v5526, %v5527
        %v5529 = vrot.slane %v5480, 2
        %v5530 = vsel %vm1056, %v5527, %v5529
        %v5531 = vrot.slane %v5481, 2
        %v5532 = vrot.slane %v5482, 2
        %v5533 = vsel %vm1056, %v5531, %v5532
        %v5534 = vrot.slane %v5483, 2
        %v5535 = vsel %vm1056, %v5532, %v5534
        %v5536 = vrot.slane %v5484, 2
        %v5537 = vrot.slane %v5485, 2
        %v5538 = vsel %vm1056, %v5536, %v5537
        %v5539 = vrot.slane %v5486, 2
        %v5540 = vsel %vm1056, %v5537, %v5539
        %v5541 = vrot.slane %v5487, 2
        %v5542 = vrot.slane %v5488, 2
        %v5543 = vsel %vm1056, %v5541, %v5542
        %v5544 = vrot.slane %v5489, 2
        %v5545 = vsel %vm1056, %v5542, %v5544
        %v5546 = vrot.slane %v5490, 2
        %v5547 = vrot.slane %v5491, 2
        %v5548 = vsel %vm1056, %v5546, %v5547
        %v5549 = vrot.slane %v5492, 2
        %v5550 = vsel %vm1056, %v5547, %v5549
        %v5551 = vrot.slane %v5493, 2
        %v5552 = vrot.slane %v5494, 2
        %v5553 = vsel %vm1056, %v5551, %v5552
        %v5554 = vrot.slane %v5495, 2
        %v5555 = vsel %vm1056, %v5552, %v5554
        %v5556 = vrot.slane %v5496, 2
        %v5557 = vrot.slane %v5497, 2
        %v5558 = vsel %vm1056, %v5556, %v5557
        %v5559 = vrot.slane %v5498, 2
        %v5560 = vsel %vm1056, %v5557, %v5559
        %v5561 = vrot.slane %v5499, 2
        %v5562 = vrot.slane %v5500, 2
        %v5563 = vsel %vm1056, %v5561, %v5562
        %v5564 = vrot.slane %v5501, 2
        %v5565 = vsel %vm1056, %v5562, %v5564
        %v5590 = vadd.f32 %v5450, %v5528
        %v5591 = vadd.f32 %v5451, %v5530
        %v5592 = vadd.f32 %v5452, %v5529
        %v5593 = vadd.f32 %v5453, %v5533
        %v5594 = vadd.f32 %v5454, %v5535
        %v5595 = vadd.f32 %v5455, %v5534
        %v5596 = vadd.f32 %v5456, %v5538
        %v5597 = vadd.f32 %v5457, %v5540
        %v5598 = vadd.f32 %v5458, %v5539
        %v5599 = vadd.f32 %v5459, %v5543
        %v5600 = vadd.f32 %v5460, %v5545
        %v5601 = vadd.f32 %v5461, %v5544
        %v5602 = vadd.f32 %v5462, %v5548
        %v5603 = vadd.f32 %v5463, %v5550
        %v5604 = vadd.f32 %v5464, %v5549
        %v5605 = vadd.f32 %v5465, %v5553
        %v5606 = vadd.f32 %v5466, %v5555
        %v5607 = vadd.f32 %v5467, %v5554
        %v5608 = vadd.f32 %v5468, %v5558
        %v5609 = vadd.f32 %v5469, %v5560
        %v5610 = vadd.f32 %v5470, %v5559
        %v5611 = vadd.f32 %v5471, %v5563
        %v5612 = vadd.f32 %v5472, %v5565
        %v5613 = vadd.f32 %v5473, %v5564
        %v5614 = vlaneseq
        %v5615 = vshrl.u32 %v5614, 7
        %v5616 = vsub.s32 6, %v5615
        %v5617 = vrot.slane %v776, %v5616
        %v5618 = vmul.f32 %v5251, %v5617
        %v5619 = vmul.f32 %v5252, %v5617
        %v5620 = vmul.f32 %v5255, %v5617
        %v5621 = vmul.f32 %v5256, %v5617
        %v5622 = vmul.f32 %v5259, %v5617
        %v5623 = vmul.f32 %v5260, %v5617
        %v5624 = vmul.f32 %v5263, %v5617
        %v5625 = vmul.f32 %v5264, %v5617
        %v5626 = vmul.f32 %v5267, %v5617
        %v5627 = vmul.f32 %v5268, %v5617
        %v5628 = vmul.f32 %v5271, %v5617
        %v5629 = vmul.f32 %v5272, %v5617
        %v5630 = vmul.f32 %v5275, %v5617
        %v5631 = vmul.f32 %v5276, %v5617
        %v5632 = vmul.f32 %v5279, %v5617
        %v5633 = vmul.f32 %v5280, %v5617
        %v5650 = vrot.slane %v5618, 3
        %v5651 = vrot.slane %v5619, 3
        %v5652 = vsel %vm1181, %v5650, %v5651
        %v5653 = vrot.slane %v5620, 3
        %v5654 = vrot.slane %v5621, 3
        %v5655 = vsel %vm1181, %v5653, %v5654
        %v5656 = vrot.slane %v5622, 3
        %v5657 = vrot.slane %v5623, 3
        %v5658 = vsel %vm1181, %v5656, %v5657
        %v5659 = vrot.slane %v5624, 3
        %v5660 = vrot.slane %v5625, 3
        %v5661 = vsel %vm1181, %v5659, %v5660
        %v5662 = vrot.slane %v5626, 3
        %v5663 = vrot.slane %v5627, 3
        %v5664 = vsel %vm1181, %v5662, %v5663
        %v5665 = vrot.slane %v5628, 3
        %v5666 = vrot.slane %v5629, 3
        %v5667 = vsel %vm1181, %v5665, %v5666
        %v5668 = vrot.slane %v5630, 3
        %v5669 = vrot.slane %v5631, 3
        %v5670 = vsel %vm1181, %v5668, %v5669
        %v5671 = vrot.slane %v5632, 3
        %v5672 = vrot.slane %v5633, 3
        %v5673 = vsel %vm1181, %v5671, %v5672
        %v5698 = vadd.f32 %v5590, %v5650
        %v5699 = vadd.f32 %v5591, %v5652
        %v5700 = vadd.f32 %v5592, %v5651
        %v5701 = vadd.f32 %v5593, %v5653
        %v5702 = vadd.f32 %v5594, %v5655
        %v5703 = vadd.f32 %v5595, %v5654
        %v5704 = vadd.f32 %v5596, %v5656
        %v5705 = vadd.f32 %v5597, %v5658
        %v5706 = vadd.f32 %v5598, %v5657
        %v5707 = vadd.f32 %v5599, %v5659
        %v5708 = vadd.f32 %v5600, %v5661
        %v5709 = vadd.f32 %v5601, %v5660
        %v5710 = vadd.f32 %v5602, %v5662
        %v5711 = vadd.f32 %v5603, %v5664
        %v5712 = vadd.f32 %v5604, %v5663
        %v5713 = vadd.f32 %v5605, %v5665
        %v5714 = vadd.f32 %v5606, %v5667
        %v5715 = vadd.f32 %v5607, %v5666
        %v5716 = vadd.f32 %v5608, %v5668
        %v5717 = vadd.f32 %v5609, %v5670
        %v5718 = vadd.f32 %v5610, %v5669
        %v5719 = vadd.f32 %v5611, %v5671
        %v5720 = vadd.f32 %v5612, %v5673
        %v5721 = vadd.f32 %v5613, %v5672
        %v5722 = vlaneseq
        %v5723 = vshrl.u32 %v5722, 7
        %v5724 = vsub.s32 7, %v5723
        %v5725 = vrot.slane %v776, %v5724
        %v5726 = vmul.f32 %v5251, %v5725
        %v5727 = vmul.f32 %v5252, %v5725
        %v5728 = vmul.f32 %v5253, %v5725
        %v5729 = vmul.f32 %v5255, %v5725
        %v5730 = vmul.f32 %v5256, %v5725
        %v5731 = vmul.f32 %v5257, %v5725
        %v5732 = vmul.f32 %v5259, %v5725
        %v5733 = vmul.f32 %v5260, %v5725
        %v5734 = vmul.f32 %v5261, %v5725
        %v5735 = vmul.f32 %v5263, %v5725
        %v5736 = vmul.f32 %v5264, %v5725
        %v5737 = vmul.f32 %v5265, %v5725
        %v5738 = vmul.f32 %v5267, %v5725
        %v5739 = vmul.f32 %v5268, %v5725
        %v5740 = vmul.f32 %v5269, %v5725
        %v5741 = vmul.f32 %v5271, %v5725
        %v5742 = vmul.f32 %v5272, %v5725
        %v5743 = vmul.f32 %v5273, %v5725
        %v5744 = vmul.f32 %v5275, %v5725
        %v5745 = vmul.f32 %v5276, %v5725
        %v5746 = vmul.f32 %v5277, %v5725
        %v5747 = vmul.f32 %v5279, %v5725
        %v5748 = vmul.f32 %v5280, %v5725
        %v5749 = vmul.f32 %v5281, %v5725
        %v5774 = vrot.slane %v5726, 4
        %v5775 = vrot.slane %v5727, 4
        %v5776 = vsel %vm1306, %v5774, %v5775
        %v5777 = vrot.slane %v5728, 4
        %v5778 = vsel %vm1306, %v5775, %v5777
        %v5779 = vrot.slane %v5729, 4
        %v5780 = vrot.slane %v5730, 4
        %v5781 = vsel %vm1306, %v5779, %v5780
        %v5782 = vrot.slane %v5731, 4
        %v5783 = vsel %vm1306, %v5780, %v5782
        %v5784 = vrot.slane %v5732, 4
        %v5785 = vrot.slane %v5733, 4
        %v5786 = vsel %vm1306, %v5784, %v5785
        %v5787 = vrot.slane %v5734, 4
        %v5788 = vsel %vm1306, %v5785, %v5787
        %v5789 = vrot.slane %v5735, 4
        %v5790 = vrot.slane %v5736, 4
        %v5791 = vsel %vm1306, %v5789, %v5790
        %v5792 = vrot.slane %v5737, 4
        %v5793 = vsel %vm1306, %v5790, %v5792
        %v5794 = vrot.slane %v5738, 4
        %v5795 = vrot.slane %v5739, 4
        %v5796 = vsel %vm1306, %v5794, %v5795
        %v5797 = vrot.slane %v5740, 4
        %v5798 = vsel %vm1306, %v5795, %v5797
        %v5799 = vrot.slane %v5741, 4
        %v5800 = vrot.slane %v5742, 4
        %v5801 = vsel %vm1306, %v5799, %v5800
        %v5802 = vrot.slane %v5743, 4
        %v5803 = vsel %vm1306, %v5800, %v5802
        %v5804 = vrot.slane %v5744, 4
        %v5805 = vrot.slane %v5745, 4
        %v5806 = vsel %vm1306, %v5804, %v5805
        %v5807 = vrot.slane %v5746, 4
        %v5808 = vsel %vm1306, %v5805, %v5807
        %v5809 = vrot.slane %v5747, 4
        %v5810 = vrot.slane %v5748, 4
        %v5811 = vsel %vm1306, %v5809, %v5810
        %v5812 = vrot.slane %v5749, 4
        %v5813 = vsel %vm1306, %v5810, %v5812
        %v5838 = vadd.f32 %v5698, %v5774
        %v5839 = vadd.f32 %v5699, %v5776
        %v5840 = vadd.f32 %v5700, %v5778
        %v5841 = vadd.f32 %v5701, %v5779
        %v5842 = vadd.f32 %v5702, %v5781
        %v5843 = vadd.f32 %v5703, %v5783
        %v5844 = vadd.f32 %v5704, %v5784
        %v5845 = vadd.f32 %v5705, %v5786
        %v5846 = vadd.f32 %v5706, %v5788
        %v5847 = vadd.f32 %v5707, %v5789
        %v5848 = vadd.f32 %v5708, %v5791
        %v5849 = vadd.f32 %v5709, %v5793
        %v5850 = vadd.f32 %v5710, %v5794
        %v5851 = vadd.f32 %v5711, %v5796
        %v5852 = vadd.f32 %v5712, %v5798
        %v5853 = vadd.f32 %v5713, %v5799
        %v5854 = vadd.f32 %v5714, %v5801
        %v5855 = vadd.f32 %v5715, %v5803
        %v5856 = vadd.f32 %v5716, %v5804
        %v5857 = vadd.f32 %v5717, %v5806
        %v5858 = vadd.f32 %v5718, %v5808
        %v5859 = vadd.f32 %v5719, %v5809
        %v5860 = vadd.f32 %v5720, %v5811
        %v5861 = vadd.f32 %v5721, %v5813
        %v5862 = vlaneseq
        %v5863 = vshrl.u32 %v5862, 7
        %v5864 = vsub.s32 0, %v5863
        %v5865 = vrot.slane %v777, %v5864
        %v5866 = vmul.f32 %v5251, %v5865
        %v5867 = vmul.f32 %v5252, %v5865
        %v5868 = vmul.f32 %v5253, %v5865
        %v5869 = vmul.f32 %v5255, %v5865
        %v5870 = vmul.f32 %v5256, %v5865
        %v5871 = vmul.f32 %v5257, %v5865
        %v5872 = vmul.f32 %v5259, %v5865
        %v5873 = vmul.f32 %v5260, %v5865
        %v5874 = vmul.f32 %v5261, %v5865
        %v5875 = vmul.f32 %v5263, %v5865
        %v5876 = vmul.f32 %v5264, %v5865
        %v5877 = vmul.f32 %v5265, %v5865
        %v5878 = vmul.f32 %v5267, %v5865
        %v5879 = vmul.f32 %v5268, %v5865
        %v5880 = vmul.f32 %v5269, %v5865
        %v5881 = vmul.f32 %v5271, %v5865
        %v5882 = vmul.f32 %v5272, %v5865
        %v5883 = vmul.f32 %v5273, %v5865
        %v5884 = vmul.f32 %v5275, %v5865
        %v5885 = vmul.f32 %v5276, %v5865
        %v5886 = vmul.f32 %v5277, %v5865
        %v5887 = vmul.f32 %v5279, %v5865
        %v5888 = vmul.f32 %v5280, %v5865
        %v5889 = vmul.f32 %v5281, %v5865
        %v5914 = vrot.slane %v5866, 5
        %v5915 = vrot.slane %v5867, 5
        %v5916 = vsel %vm1447, %v5914, %v5915
        %v5917 = vrot.slane %v5868, 5
        %v5918 = vsel %vm1447, %v5915, %v5917
        %v5919 = vrot.slane %v5869, 5
        %v5920 = vrot.slane %v5870, 5
        %v5921 = vsel %vm1447, %v5919, %v5920
        %v5922 = vrot.slane %v5871, 5
        %v5923 = vsel %vm1447, %v5920, %v5922
        %v5924 = vrot.slane %v5872, 5
        %v5925 = vrot.slane %v5873, 5
        %v5926 = vsel %vm1447, %v5924, %v5925
        %v5927 = vrot.slane %v5874, 5
        %v5928 = vsel %vm1447, %v5925, %v5927
        %v5929 = vrot.slane %v5875, 5
        %v5930 = vrot.slane %v5876, 5
        %v5931 = vsel %vm1447, %v5929, %v5930
        %v5932 = vrot.slane %v5877, 5
        %v5933 = vsel %vm1447, %v5930, %v5932
        %v5934 = vrot.slane %v5878, 5
        %v5935 = vrot.slane %v5879, 5
        %v5936 = vsel %vm1447, %v5934, %v5935
        %v5937 = vrot.slane %v5880, 5
        %v5938 = vsel %vm1447, %v5935, %v5937
        %v5939 = vrot.slane %v5881, 5
        %v5940 = vrot.slane %v5882, 5
        %v5941 = vsel %vm1447, %v5939, %v5940
        %v5942 = vrot.slane %v5883, 5
        %v5943 = vsel %vm1447, %v5940, %v5942
        %v5944 = vrot.slane %v5884, 5
        %v5945 = vrot.slane %v5885, 5
        %v5946 = vsel %vm1447, %v5944, %v5945
        %v5947 = vrot.slane %v5886, 5
        %v5948 = vsel %vm1447, %v5945, %v5947
        %v5949 = vrot.slane %v5887, 5
        %v5950 = vrot.slane %v5888, 5
        %v5951 = vsel %vm1447, %v5949, %v5950
        %v5952 = vrot.slane %v5889, 5
        %v5953 = vsel %vm1447, %v5950, %v5952
        %v5978 = vadd.f32 %v5838, %v5914
        %v5979 = vadd.f32 %v5839, %v5916
        %v5980 = vadd.f32 %v5840, %v5918
        %v5981 = vadd.f32 %v5841, %v5919
        %v5982 = vadd.f32 %v5842, %v5921
        %v5983 = vadd.f32 %v5843, %v5923
        %v5984 = vadd.f32 %v5844, %v5924
        %v5985 = vadd.f32 %v5845, %v5926
        %v5986 = vadd.f32 %v5846, %v5928
        %v5987 = vadd.f32 %v5847, %v5929
        %v5988 = vadd.f32 %v5848, %v5931
        %v5989 = vadd.f32 %v5849, %v5933
        %v5990 = vadd.f32 %v5850, %v5934
        %v5991 = vadd.f32 %v5851, %v5936
        %v5992 = vadd.f32 %v5852, %v5938
        %v5993 = vadd.f32 %v5853, %v5939
        %v5994 = vadd.f32 %v5854, %v5941
        %v5995 = vadd.f32 %v5855, %v5943
        %v5996 = vadd.f32 %v5856, %v5944
        %v5997 = vadd.f32 %v5857, %v5946
        %v5998 = vadd.f32 %v5858, %v5948
        %v5999 = vadd.f32 %v5859, %v5949
        %v6000 = vadd.f32 %v5860, %v5951
        %v6001 = vadd.f32 %v5861, %v5953
        %v6002 = vlaneseq
        %v6003 = vshrl.u32 %v6002, 7
        %v6004 = vsub.s32 1, %v6003
        %v6005 = vrot.slane %v777, %v6004
        %v6006 = vmul.f32 %v5251, %v6005
        %v6007 = vmul.f32 %v5252, %v6005
        %v6008 = vmul.f32 %v5253, %v6005
        %v6009 = vmul.f32 %v5255, %v6005
        %v6010 = vmul.f32 %v5256, %v6005
        %v6011 = vmul.f32 %v5257, %v6005
        %v6012 = vmul.f32 %v5259, %v6005
        %v6013 = vmul.f32 %v5260, %v6005
        %v6014 = vmul.f32 %v5261, %v6005
        %v6015 = vmul.f32 %v5263, %v6005
        %v6016 = vmul.f32 %v5264, %v6005
        %v6017 = vmul.f32 %v5265, %v6005
        %v6018 = vmul.f32 %v5267, %v6005
        %v6019 = vmul.f32 %v5268, %v6005
        %v6020 = vmul.f32 %v5269, %v6005
        %v6021 = vmul.f32 %v5271, %v6005
        %v6022 = vmul.f32 %v5272, %v6005
        %v6023 = vmul.f32 %v5273, %v6005
        %v6024 = vmul.f32 %v5275, %v6005
        %v6025 = vmul.f32 %v5276, %v6005
        %v6026 = vmul.f32 %v5277, %v6005
        %v6027 = vmul.f32 %v5279, %v6005
        %v6028 = vmul.f32 %v5280, %v6005
        %v6029 = vmul.f32 %v5281, %v6005
        %v6054 = vrot.slane %v6006, 6
        %v6055 = vrot.slane %v6007, 6
        %v6056 = vsel %vm1588, %v6054, %v6055
        %v6057 = vrot.slane %v6008, 6
        %v6058 = vsel %vm1588, %v6055, %v6057
        %v6059 = vrot.slane %v6009, 6
        %v6060 = vrot.slane %v6010, 6
        %v6061 = vsel %vm1588, %v6059, %v6060
        %v6062 = vrot.slane %v6011, 6
        %v6063 = vsel %vm1588, %v6060, %v6062
        %v6064 = vrot.slane %v6012, 6
        %v6065 = vrot.slane %v6013, 6
        %v6066 = vsel %vm1588, %v6064, %v6065
        %v6067 = vrot.slane %v6014, 6
        %v6068 = vsel %vm1588, %v6065, %v6067
        %v6069 = vrot.slane %v6015, 6
        %v6070 = vrot.slane %v6016, 6
        %v6071 = vsel %vm1588, %v6069, %v6070
        %v6072 = vrot.slane %v6017, 6
        %v6073 = vsel %vm1588, %v6070, %v6072
        %v6074 = vrot.slane %v6018, 6
        %v6075 = vrot.slane %v6019, 6
        %v6076 = vsel %vm1588, %v6074, %v6075
        %v6077 = vrot.slane %v6020, 6
        %v6078 = vsel %vm1588, %v6075, %v6077
        %v6079 = vrot.slane %v6021, 6
        %v6080 = vrot.slane %v6022, 6
        %v6081 = vsel %vm1588, %v6079, %v6080
        %v6082 = vrot.slane %v6023, 6
        %v6083 = vsel %vm1588, %v6080, %v6082
        %v6084 = vrot.slane %v6024, 6
        %v6085 = vrot.slane %v6025, 6
        %v6086 = vsel %vm1588, %v6084, %v6085
        %v6087 = vrot.slane %v6026, 6
        %v6088 = vsel %vm1588, %v6085, %v6087
        %v6089 = vrot.slane %v6027, 6
        %v6090 = vrot.slane %v6028, 6
        %v6091 = vsel %vm1588, %v6089, %v6090
        %v6092 = vrot.slane %v6029, 6
        %v6093 = vsel %vm1588, %v6090, %v6092
        %v6118 = vadd.f32 %v5978, %v6054
        %v6119 = vadd.f32 %v5979, %v6056
        %v6120 = vadd.f32 %v5980, %v6058
        %v6121 = vadd.f32 %v5981, %v6059
        %v6122 = vadd.f32 %v5982, %v6061
        %v6123 = vadd.f32 %v5983, %v6063
        %v6124 = vadd.f32 %v5984, %v6064
        %v6125 = vadd.f32 %v5985, %v6066
        %v6126 = vadd.f32 %v5986, %v6068
        %v6127 = vadd.f32 %v5987, %v6069
        %v6128 = vadd.f32 %v5988, %v6071
        %v6129 = vadd.f32 %v5989, %v6073
        %v6130 = vadd.f32 %v5990, %v6074
        %v6131 = vadd.f32 %v5991, %v6076
        %v6132 = vadd.f32 %v5992, %v6078
        %v6133 = vadd.f32 %v5993, %v6079
        %v6134 = vadd.f32 %v5994, %v6081
        %v6135 = vadd.f32 %v5995, %v6083
        %v6136 = vadd.f32 %v5996, %v6084
        %v6137 = vadd.f32 %v5997, %v6086
        %v6138 = vadd.f32 %v5998, %v6088
        %v6139 = vadd.f32 %v5999, %v6089
        %v6140 = vadd.f32 %v6000, %v6091
        %v6141 = vadd.f32 %v6001, %v6093
        %s6142 = scalar_lea.vmem [#allocation2], 192
        %v6143 = vld [vmem:[%s6142] sm:$0xff]
        %v6144 = vld [vmem:[%s6142 + $0x8] sm:$0xff]
        %v6145 = vld [vmem:[%s6142 + $0x10] sm:$0xff]
        %v6146 = vld [vmem:[%s6142 + $0x18] sm:$0xff]
        %v6147 = vld [vmem:[%s6142 + $0x20] sm:$0xff]
        %v6148 = vld [vmem:[%s6142 + $0x28] sm:$0xff]
        %v6149 = vld [vmem:[%s6142 + $0x30] sm:$0xff]
        %v6150 = vld [vmem:[%s6142 + $0x38] sm:$0xff]
        %v6151 = vld [vmem:[%s6142 + $0x40] sm:$0xff]
        %v6152 = vld [vmem:[%s6142 + $0x48] sm:$0xff]
        %v6153 = vld [vmem:[%s6142 + $0x50] sm:$0xff]
        %v6154 = vld [vmem:[%s6142 + $0x58] sm:$0xff]
        %v6155 = vld [vmem:[%s6142 + $0x60] sm:$0xff]
        %v6156 = vld [vmem:[%s6142 + $0x68] sm:$0xff]
        %v6157 = vld [vmem:[%s6142 + $0x70] sm:$0xff]
        %v6158 = vld [vmem:[%s6142 + $0x78] sm:$0xff]
        %v6159 = vld [vmem:[%s6142 + $0x80] sm:$0xff]
        %v6160 = vld [vmem:[%s6142 + $0x88] sm:$0xff]
        %v6161 = vld [vmem:[%s6142 + $0x90] sm:$0xff]
        %v6162 = vld [vmem:[%s6142 + $0x98] sm:$0xff]
        %v6163 = vld [vmem:[%s6142 + $0xa0] sm:$0xff]
        %v6164 = vld [vmem:[%s6142 + $0xa8] sm:$0xff]
        %v6165 = vld [vmem:[%s6142 + $0xb0] sm:$0xff]
        %v6166 = vld [vmem:[%s6142 + $0xb8] sm:$0xff]
        %v6167 = vld [vmem:[%s6142 + $0xc0] sm:$0xff]
        %v6168 = vld [vmem:[%s6142 + $0xc8] sm:$0xff]
        %v6169 = vld [vmem:[%s6142 + $0xd0] sm:$0xff]
        %v6170 = vld [vmem:[%s6142 + $0xd8] sm:$0xff]
        %v6171 = vld [vmem:[%s6142 + $0xe0] sm:$0xff]
        %v6172 = vld [vmem:[%s6142 + $0xe8] sm:$0xff]
        %v6173 = vld [vmem:[%s6142 + $0xf0] sm:$0xff]
        %v6174 = vld [vmem:[%s6142 + $0xf8] sm:$0xff]
        %v6175 = vlaneseq
        %v6176 = vshrl.u32 %v6175, 7
        %v6177 = vsub.s32 2, %v6176
        %v6178 = vrot.slane %v777, %v6177
        %v6179 = vmul.f32 %v6143, %v6178
        %v6180 = vmul.f32 %v6144, %v6178
        %v6181 = vmul.f32 %v6145, %v6178
        %v6182 = vmul.f32 %v6147, %v6178
        %v6183 = vmul.f32 %v6148, %v6178
        %v6184 = vmul.f32 %v6149, %v6178
        %v6185 = vmul.f32 %v6151, %v6178
        %v6186 = vmul.f32 %v6152, %v6178
        %v6187 = vmul.f32 %v6153, %v6178
        %v6188 = vmul.f32 %v6155, %v6178
        %v6189 = vmul.f32 %v6156, %v6178
        %v6190 = vmul.f32 %v6157, %v6178
        %v6191 = vmul.f32 %v6159, %v6178
        %v6192 = vmul.f32 %v6160, %v6178
        %v6193 = vmul.f32 %v6161, %v6178
        %v6194 = vmul.f32 %v6163, %v6178
        %v6195 = vmul.f32 %v6164, %v6178
        %v6196 = vmul.f32 %v6165, %v6178
        %v6197 = vmul.f32 %v6167, %v6178
        %v6198 = vmul.f32 %v6168, %v6178
        %v6199 = vmul.f32 %v6169, %v6178
        %v6200 = vmul.f32 %v6171, %v6178
        %v6201 = vmul.f32 %v6172, %v6178
        %v6202 = vmul.f32 %v6173, %v6178
        %v6203 = vadd.f32 %v6118, %v6179
        %v6204 = vadd.f32 %v6119, %v6180
        %v6205 = vadd.f32 %v6120, %v6181
        %v6206 = vadd.f32 %v6121, %v6182
        %v6207 = vadd.f32 %v6122, %v6183
        %v6208 = vadd.f32 %v6123, %v6184
        %v6209 = vadd.f32 %v6124, %v6185
        %v6210 = vadd.f32 %v6125, %v6186
        %v6211 = vadd.f32 %v6126, %v6187
        %v6212 = vadd.f32 %v6127, %v6188
        %v6213 = vadd.f32 %v6128, %v6189
        %v6214 = vadd.f32 %v6129, %v6190
        %v6215 = vadd.f32 %v6130, %v6191
        %v6216 = vadd.f32 %v6131, %v6192
        %v6217 = vadd.f32 %v6132, %v6193
        %v6218 = vadd.f32 %v6133, %v6194
        %v6219 = vadd.f32 %v6134, %v6195
        %v6220 = vadd.f32 %v6135, %v6196
        %v6221 = vadd.f32 %v6136, %v6197
        %v6222 = vadd.f32 %v6137, %v6198
        %v6223 = vadd.f32 %v6138, %v6199
        %v6224 = vadd.f32 %v6139, %v6200
        %v6225 = vadd.f32 %v6140, %v6201
        %v6226 = vadd.f32 %v6141, %v6202
        %v6227 = vlaneseq
        %v6228 = vshrl.u32 %v6227, 7
        %v6229 = vsub.s32 3, %v6228
        %v6230 = vrot.slane %v777, %v6229
        %v6231 = vmul.f32 %v6143, %v6230
        %v6232 = vmul.f32 %v6144, %v6230
        %v6233 = vmul.f32 %v6145, %v6230
        %v6234 = vmul.f32 %v6147, %v6230
        %v6235 = vmul.f32 %v6148, %v6230
        %v6236 = vmul.f32 %v6149, %v6230
        %v6237 = vmul.f32 %v6151, %v6230
        %v6238 = vmul.f32 %v6152, %v6230
        %v6239 = vmul.f32 %v6153, %v6230
        %v6240 = vmul.f32 %v6155, %v6230
        %v6241 = vmul.f32 %v6156, %v6230
        %v6242 = vmul.f32 %v6157, %v6230
        %v6243 = vmul.f32 %v6159, %v6230
        %v6244 = vmul.f32 %v6160, %v6230
        %v6245 = vmul.f32 %v6161, %v6230
        %v6246 = vmul.f32 %v6163, %v6230
        %v6247 = vmul.f32 %v6164, %v6230
        %v6248 = vmul.f32 %v6165, %v6230
        %v6249 = vmul.f32 %v6167, %v6230
        %v6250 = vmul.f32 %v6168, %v6230
        %v6251 = vmul.f32 %v6169, %v6230
        %v6252 = vmul.f32 %v6171, %v6230
        %v6253 = vmul.f32 %v6172, %v6230
        %v6254 = vmul.f32 %v6173, %v6230
        %v6279 = vrot.slane %v6231, 1
        %v6280 = vrot.slane %v6232, 1
        %v6281 = vsel %vm915, %v6279, %v6280
        %v6282 = vrot.slane %v6233, 1
        %v6283 = vsel %vm915, %v6280, %v6282
        %v6284 = vrot.slane %v6234, 1
        %v6285 = vrot.slane %v6235, 1
        %v6286 = vsel %vm915, %v6284, %v6285
        %v6287 = vrot.slane %v6236, 1
        %v6288 = vsel %vm915, %v6285, %v6287
        %v6289 = vrot.slane %v6237, 1
        %v6290 = vrot.slane %v6238, 1
        %v6291 = vsel %vm915, %v6289, %v6290
        %v6292 = vrot.slane %v6239, 1
        %v6293 = vsel %vm915, %v6290, %v6292
        %v6294 = vrot.slane %v6240, 1
        %v6295 = vrot.slane %v6241, 1
        %v6296 = vsel %vm915, %v6294, %v6295
        %v6297 = vrot.slane %v6242, 1
        %v6298 = vsel %vm915, %v6295, %v6297
        %v6299 = vrot.slane %v6243, 1
        %v6300 = vrot.slane %v6244, 1
        %v6301 = vsel %vm915, %v6299, %v6300
        %v6302 = vrot.slane %v6245, 1
        %v6303 = vsel %vm915, %v6300, %v6302
        %v6304 = vrot.slane %v6246, 1
        %v6305 = vrot.slane %v6247, 1
        %v6306 = vsel %vm915, %v6304, %v6305
        %v6307 = vrot.slane %v6248, 1
        %v6308 = vsel %vm915, %v6305, %v6307
        %v6309 = vrot.slane %v6249, 1
        %v6310 = vrot.slane %v6250, 1
        %v6311 = vsel %vm915, %v6309, %v6310
        %v6312 = vrot.slane %v6251, 1
        %v6313 = vsel %vm915, %v6310, %v6312
        %v6314 = vrot.slane %v6252, 1
        %v6315 = vrot.slane %v6253, 1
        %v6316 = vsel %vm915, %v6314, %v6315
        %v6317 = vrot.slane %v6254, 1
        %v6318 = vsel %vm915, %v6315, %v6317
        %v6343 = vadd.f32 %v6203, %v6281
        %v6344 = vadd.f32 %v6204, %v6283
        %v6345 = vadd.f32 %v6205, %v6282
        %v6346 = vadd.f32 %v6206, %v6286
        %v6347 = vadd.f32 %v6207, %v6288
        %v6348 = vadd.f32 %v6208, %v6287
        %v6349 = vadd.f32 %v6209, %v6291
        %v6350 = vadd.f32 %v6210, %v6293
        %v6351 = vadd.f32 %v6211, %v6292
        %v6352 = vadd.f32 %v6212, %v6296
        %v6353 = vadd.f32 %v6213, %v6298
        %v6354 = vadd.f32 %v6214, %v6297
        %v6355 = vadd.f32 %v6215, %v6301
        %v6356 = vadd.f32 %v6216, %v6303
        %v6357 = vadd.f32 %v6217, %v6302
        %v6358 = vadd.f32 %v6218, %v6306
        %v6359 = vadd.f32 %v6219, %v6308
        %v6360 = vadd.f32 %v6220, %v6307
        %v6361 = vadd.f32 %v6221, %v6311
        %v6362 = vadd.f32 %v6222, %v6313
        %v6363 = vadd.f32 %v6223, %v6312
        %v6364 = vadd.f32 %v6224, %v6316
        %v6365 = vadd.f32 %v6225, %v6318
        %v6366 = vadd.f32 %v6226, %v6317
        %v6367 = vlaneseq
        %v6368 = vshrl.u32 %v6367, 7
        %v6369 = vsub.s32 4, %v6368
        %v6370 = vrot.slane %v777, %v6369
        %v6371 = vmul.f32 %v6143, %v6370
        %v6372 = vmul.f32 %v6144, %v6370
        %v6373 = vmul.f32 %v6145, %v6370
        %v6374 = vmul.f32 %v6147, %v6370
        %v6375 = vmul.f32 %v6148, %v6370
        %v6376 = vmul.f32 %v6149, %v6370
        %v6377 = vmul.f32 %v6151, %v6370
        %v6378 = vmul.f32 %v6152, %v6370
        %v6379 = vmul.f32 %v6153, %v6370
        %v6380 = vmul.f32 %v6155, %v6370
        %v6381 = vmul.f32 %v6156, %v6370
        %v6382 = vmul.f32 %v6157, %v6370
        %v6383 = vmul.f32 %v6159, %v6370
        %v6384 = vmul.f32 %v6160, %v6370
        %v6385 = vmul.f32 %v6161, %v6370
        %v6386 = vmul.f32 %v6163, %v6370
        %v6387 = vmul.f32 %v6164, %v6370
        %v6388 = vmul.f32 %v6165, %v6370
        %v6389 = vmul.f32 %v6167, %v6370
        %v6390 = vmul.f32 %v6168, %v6370
        %v6391 = vmul.f32 %v6169, %v6370
        %v6392 = vmul.f32 %v6171, %v6370
        %v6393 = vmul.f32 %v6172, %v6370
        %v6394 = vmul.f32 %v6173, %v6370
        %v6419 = vrot.slane %v6371, 2
        %v6420 = vrot.slane %v6372, 2
        %v6421 = vsel %vm1056, %v6419, %v6420
        %v6422 = vrot.slane %v6373, 2
        %v6423 = vsel %vm1056, %v6420, %v6422
        %v6424 = vrot.slane %v6374, 2
        %v6425 = vrot.slane %v6375, 2
        %v6426 = vsel %vm1056, %v6424, %v6425
        %v6427 = vrot.slane %v6376, 2
        %v6428 = vsel %vm1056, %v6425, %v6427
        %v6429 = vrot.slane %v6377, 2
        %v6430 = vrot.slane %v6378, 2
        %v6431 = vsel %vm1056, %v6429, %v6430
        %v6432 = vrot.slane %v6379, 2
        %v6433 = vsel %vm1056, %v6430, %v6432
        %v6434 = vrot.slane %v6380, 2
        %v6435 = vrot.slane %v6381, 2
        %v6436 = vsel %vm1056, %v6434, %v6435
        %v6437 = vrot.slane %v6382, 2
        %v6438 = vsel %vm1056, %v6435, %v6437
        %v6439 = vrot.slane %v6383, 2
        %v6440 = vrot.slane %v6384, 2
        %v6441 = vsel %vm1056, %v6439, %v6440
        %v6442 = vrot.slane %v6385, 2
        %v6443 = vsel %vm1056, %v6440, %v6442
        %v6444 = vrot.slane %v6386, 2
        %v6445 = vrot.slane %v6387, 2
        %v6446 = vsel %vm1056, %v6444, %v6445
        %v6447 = vrot.slane %v6388, 2
        %v6448 = vsel %vm1056, %v6445, %v6447
        %v6449 = vrot.slane %v6389, 2
        %v6450 = vrot.slane %v6390, 2
        %v6451 = vsel %vm1056, %v6449, %v6450
        %v6452 = vrot.slane %v6391, 2
        %v6453 = vsel %vm1056, %v6450, %v6452
        %v6454 = vrot.slane %v6392, 2
        %v6455 = vrot.slane %v6393, 2
        %v6456 = vsel %vm1056, %v6454, %v6455
        %v6457 = vrot.slane %v6394, 2
        %v6458 = vsel %vm1056, %v6455, %v6457
        %v6483 = vadd.f32 %v6343, %v6421
        %v6484 = vadd.f32 %v6344, %v6423
        %v6485 = vadd.f32 %v6345, %v6422
        %v6486 = vadd.f32 %v6346, %v6426
        %v6487 = vadd.f32 %v6347, %v6428
        %v6488 = vadd.f32 %v6348, %v6427
        %v6489 = vadd.f32 %v6349, %v6431
        %v6490 = vadd.f32 %v6350, %v6433
        %v6491 = vadd.f32 %v6351, %v6432
        %v6492 = vadd.f32 %v6352, %v6436
        %v6493 = vadd.f32 %v6353, %v6438
        %v6494 = vadd.f32 %v6354, %v6437
        %v6495 = vadd.f32 %v6355, %v6441
        %v6496 = vadd.f32 %v6356, %v6443
        %v6497 = vadd.f32 %v6357, %v6442
        %v6498 = vadd.f32 %v6358, %v6446
        %v6499 = vadd.f32 %v6359, %v6448
        %v6500 = vadd.f32 %v6360, %v6447
        %v6501 = vadd.f32 %v6361, %v6451
        %v6502 = vadd.f32 %v6362, %v6453
        %v6503 = vadd.f32 %v6363, %v6452
        %v6504 = vadd.f32 %v6364, %v6456
        %v6505 = vadd.f32 %v6365, %v6458
        %v6506 = vadd.f32 %v6366, %v6457
        %v6507 = vlaneseq
        %v6508 = vshrl.u32 %v6507, 7
        %v6509 = vsub.s32 5, %v6508
        %v6510 = vrot.slane %v777, %v6509
        %v6511 = vmul.f32 %v6144, %v6510
        %v6512 = vmul.f32 %v6145, %v6510
        %v6513 = vmul.f32 %v6148, %v6510
        %v6514 = vmul.f32 %v6149, %v6510
        %v6515 = vmul.f32 %v6152, %v6510
        %v6516 = vmul.f32 %v6153, %v6510
        %v6517 = vmul.f32 %v6156, %v6510
        %v6518 = vmul.f32 %v6157, %v6510
        %v6519 = vmul.f32 %v6160, %v6510
        %v6520 = vmul.f32 %v6161, %v6510
        %v6521 = vmul.f32 %v6164, %v6510
        %v6522 = vmul.f32 %v6165, %v6510
        %v6523 = vmul.f32 %v6168, %v6510
        %v6524 = vmul.f32 %v6169, %v6510
        %v6525 = vmul.f32 %v6172, %v6510
        %v6526 = vmul.f32 %v6173, %v6510
        %v6543 = vrot.slane %v6511, 3
        %v6544 = vrot.slane %v6512, 3
        %v6545 = vsel %vm1181, %v6543, %v6544
        %v6546 = vrot.slane %v6513, 3
        %v6547 = vrot.slane %v6514, 3
        %v6548 = vsel %vm1181, %v6546, %v6547
        %v6549 = vrot.slane %v6515, 3
        %v6550 = vrot.slane %v6516, 3
        %v6551 = vsel %vm1181, %v6549, %v6550
        %v6552 = vrot.slane %v6517, 3
        %v6553 = vrot.slane %v6518, 3
        %v6554 = vsel %vm1181, %v6552, %v6553
        %v6555 = vrot.slane %v6519, 3
        %v6556 = vrot.slane %v6520, 3
        %v6557 = vsel %vm1181, %v6555, %v6556
        %v6558 = vrot.slane %v6521, 3
        %v6559 = vrot.slane %v6522, 3
        %v6560 = vsel %vm1181, %v6558, %v6559
        %v6561 = vrot.slane %v6523, 3
        %v6562 = vrot.slane %v6524, 3
        %v6563 = vsel %vm1181, %v6561, %v6562
        %v6564 = vrot.slane %v6525, 3
        %v6565 = vrot.slane %v6526, 3
        %v6566 = vsel %vm1181, %v6564, %v6565
        %v6591 = vadd.f32 %v6483, %v6543
        %v6592 = vadd.f32 %v6484, %v6545
        %v6593 = vadd.f32 %v6485, %v6544
        %v6594 = vadd.f32 %v6486, %v6546
        %v6595 = vadd.f32 %v6487, %v6548
        %v6596 = vadd.f32 %v6488, %v6547
        %v6597 = vadd.f32 %v6489, %v6549
        %v6598 = vadd.f32 %v6490, %v6551
        %v6599 = vadd.f32 %v6491, %v6550
        %v6600 = vadd.f32 %v6492, %v6552
        %v6601 = vadd.f32 %v6493, %v6554
        %v6602 = vadd.f32 %v6494, %v6553
        %v6603 = vadd.f32 %v6495, %v6555
        %v6604 = vadd.f32 %v6496, %v6557
        %v6605 = vadd.f32 %v6497, %v6556
        %v6606 = vadd.f32 %v6498, %v6558
        %v6607 = vadd.f32 %v6499, %v6560
        %v6608 = vadd.f32 %v6500, %v6559
        %v6609 = vadd.f32 %v6501, %v6561
        %v6610 = vadd.f32 %v6502, %v6563
        %v6611 = vadd.f32 %v6503, %v6562
        %v6612 = vadd.f32 %v6504, %v6564
        %v6613 = vadd.f32 %v6505, %v6566
        %v6614 = vadd.f32 %v6506, %v6565
        %v6615 = vlaneseq
        %v6616 = vshrl.u32 %v6615, 7
        %v6617 = vsub.s32 6, %v6616
        %v6618 = vrot.slane %v777, %v6617
        %v6619 = vmul.f32 %v6144, %v6618
        %v6620 = vmul.f32 %v6145, %v6618
        %v6621 = vmul.f32 %v6146, %v6618
        %v6622 = vmul.f32 %v6148, %v6618
        %v6623 = vmul.f32 %v6149, %v6618
        %v6624 = vmul.f32 %v6150, %v6618
        %v6625 = vmul.f32 %v6152, %v6618
        %v6626 = vmul.f32 %v6153, %v6618
        %v6627 = vmul.f32 %v6154, %v6618
        %v6628 = vmul.f32 %v6156, %v6618
        %v6629 = vmul.f32 %v6157, %v6618
        %v6630 = vmul.f32 %v6158, %v6618
        %v6631 = vmul.f32 %v6160, %v6618
        %v6632 = vmul.f32 %v6161, %v6618
        %v6633 = vmul.f32 %v6162, %v6618
        %v6634 = vmul.f32 %v6164, %v6618
        %v6635 = vmul.f32 %v6165, %v6618
        %v6636 = vmul.f32 %v6166, %v6618
        %v6637 = vmul.f32 %v6168, %v6618
        %v6638 = vmul.f32 %v6169, %v6618
        %v6639 = vmul.f32 %v6170, %v6618
        %v6640 = vmul.f32 %v6172, %v6618
        %v6641 = vmul.f32 %v6173, %v6618
        %v6642 = vmul.f32 %v6174, %v6618
        %v6667 = vrot.slane %v6619, 4
        %v6668 = vrot.slane %v6620, 4
        %v6669 = vsel %vm1306, %v6667, %v6668
        %v6670 = vrot.slane %v6621, 4
        %v6671 = vsel %vm1306, %v6668, %v6670
        %v6672 = vrot.slane %v6622, 4
        %v6673 = vrot.slane %v6623, 4
        %v6674 = vsel %vm1306, %v6672, %v6673
        %v6675 = vrot.slane %v6624, 4
        %v6676 = vsel %vm1306, %v6673, %v6675
        %v6677 = vrot.slane %v6625, 4
        %v6678 = vrot.slane %v6626, 4
        %v6679 = vsel %vm1306, %v6677, %v6678
        %v6680 = vrot.slane %v6627, 4
        %v6681 = vsel %vm1306, %v6678, %v6680
        %v6682 = vrot.slane %v6628, 4
        %v6683 = vrot.slane %v6629, 4
        %v6684 = vsel %vm1306, %v6682, %v6683
        %v6685 = vrot.slane %v6630, 4
        %v6686 = vsel %vm1306, %v6683, %v6685
        %v6687 = vrot.slane %v6631, 4
        %v6688 = vrot.slane %v6632, 4
        %v6689 = vsel %vm1306, %v6687, %v6688
        %v6690 = vrot.slane %v6633, 4
        %v6691 = vsel %vm1306, %v6688, %v6690
        %v6692 = vrot.slane %v6634, 4
        %v6693 = vrot.slane %v6635, 4
        %v6694 = vsel %vm1306, %v6692, %v6693
        %v6695 = vrot.slane %v6636, 4
        %v6696 = vsel %vm1306, %v6693, %v6695
        %v6697 = vrot.slane %v6637, 4
        %v6698 = vrot.slane %v6638, 4
        %v6699 = vsel %vm1306, %v6697, %v6698
        %v6700 = vrot.slane %v6639, 4
        %v6701 = vsel %vm1306, %v6698, %v6700
        %v6702 = vrot.slane %v6640, 4
        %v6703 = vrot.slane %v6641, 4
        %v6704 = vsel %vm1306, %v6702, %v6703
        %v6705 = vrot.slane %v6642, 4
        %v6706 = vsel %vm1306, %v6703, %v6705
        %v6731 = vadd.f32 %v6591, %v6667
        %v6732 = vadd.f32 %v6592, %v6669
        %v6733 = vadd.f32 %v6593, %v6671
        %v6734 = vadd.f32 %v6594, %v6672
        %v6735 = vadd.f32 %v6595, %v6674
        %v6736 = vadd.f32 %v6596, %v6676
        %v6737 = vadd.f32 %v6597, %v6677
        %v6738 = vadd.f32 %v6598, %v6679
        %v6739 = vadd.f32 %v6599, %v6681
        %v6740 = vadd.f32 %v6600, %v6682
        %v6741 = vadd.f32 %v6601, %v6684
        %v6742 = vadd.f32 %v6602, %v6686
        %v6743 = vadd.f32 %v6603, %v6687
        %v6744 = vadd.f32 %v6604, %v6689
        %v6745 = vadd.f32 %v6605, %v6691
        %v6746 = vadd.f32 %v6606, %v6692
        %v6747 = vadd.f32 %v6607, %v6694
        %v6748 = vadd.f32 %v6608, %v6696
        %v6749 = vadd.f32 %v6609, %v6697
        %v6750 = vadd.f32 %v6610, %v6699
        %v6751 = vadd.f32 %v6611, %v6701
        %v6752 = vadd.f32 %v6612, %v6702
        %v6753 = vadd.f32 %v6613, %v6704
        %v6754 = vadd.f32 %v6614, %v6706
        %v6755 = vlaneseq
        %v6756 = vshrl.u32 %v6755, 7
        %v6757 = vsub.s32 7, %v6756
        %v6758 = vrot.slane %v777, %v6757
        %v6759 = vmul.f32 %v6144, %v6758
        %v6760 = vmul.f32 %v6145, %v6758
        %v6761 = vmul.f32 %v6146, %v6758
        %v6762 = vmul.f32 %v6148, %v6758
        %v6763 = vmul.f32 %v6149, %v6758
        %v6764 = vmul.f32 %v6150, %v6758
        %v6765 = vmul.f32 %v6152, %v6758
        %v6766 = vmul.f32 %v6153, %v6758
        %v6767 = vmul.f32 %v6154, %v6758
        %v6768 = vmul.f32 %v6156, %v6758
        %v6769 = vmul.f32 %v6157, %v6758
        %v6770 = vmul.f32 %v6158, %v6758
        %v6771 = vmul.f32 %v6160, %v6758
        %v6772 = vmul.f32 %v6161, %v6758
        %v6773 = vmul.f32 %v6162, %v6758
        %v6774 = vmul.f32 %v6164, %v6758
        %v6775 = vmul.f32 %v6165, %v6758
        %v6776 = vmul.f32 %v6166, %v6758
        %v6777 = vmul.f32 %v6168, %v6758
        %v6778 = vmul.f32 %v6169, %v6758
        %v6779 = vmul.f32 %v6170, %v6758
        %v6780 = vmul.f32 %v6172, %v6758
        %v6781 = vmul.f32 %v6173, %v6758
        %v6782 = vmul.f32 %v6174, %v6758
        %v6807 = vrot.slane %v6759, 5
        %v6808 = vrot.slane %v6760, 5
        %v6809 = vsel %vm1447, %v6807, %v6808
        %v6810 = vrot.slane %v6761, 5
        %v6811 = vsel %vm1447, %v6808, %v6810
        %v6812 = vrot.slane %v6762, 5
        %v6813 = vrot.slane %v6763, 5
        %v6814 = vsel %vm1447, %v6812, %v6813
        %v6815 = vrot.slane %v6764, 5
        %v6816 = vsel %vm1447, %v6813, %v6815
        %v6817 = vrot.slane %v6765, 5
        %v6818 = vrot.slane %v6766, 5
        %v6819 = vsel %vm1447, %v6817, %v6818
        %v6820 = vrot.slane %v6767, 5
        %v6821 = vsel %vm1447, %v6818, %v6820
        %v6822 = vrot.slane %v6768, 5
        %v6823 = vrot.slane %v6769, 5
        %v6824 = vsel %vm1447, %v6822, %v6823
        %v6825 = vrot.slane %v6770, 5
        %v6826 = vsel %vm1447, %v6823, %v6825
        %v6827 = vrot.slane %v6771, 5
        %v6828 = vrot.slane %v6772, 5
        %v6829 = vsel %vm1447, %v6827, %v6828
        %v6830 = vrot.slane %v6773, 5
        %v6831 = vsel %vm1447, %v6828, %v6830
        %v6832 = vrot.slane %v6774, 5
        %v6833 = vrot.slane %v6775, 5
        %v6834 = vsel %vm1447, %v6832, %v6833
        %v6835 = vrot.slane %v6776, 5
        %v6836 = vsel %vm1447, %v6833, %v6835
        %v6837 = vrot.slane %v6777, 5
        %v6838 = vrot.slane %v6778, 5
        %v6839 = vsel %vm1447, %v6837, %v6838
        %v6840 = vrot.slane %v6779, 5
        %v6841 = vsel %vm1447, %v6838, %v6840
        %v6842 = vrot.slane %v6780, 5
        %v6843 = vrot.slane %v6781, 5
        %v6844 = vsel %vm1447, %v6842, %v6843
        %v6845 = vrot.slane %v6782, 5
        %v6846 = vsel %vm1447, %v6843, %v6845
        %v6871 = vadd.f32 %v6731, %v6807
        %v6872 = vadd.f32 %v6732, %v6809
        %v6873 = vadd.f32 %v6733, %v6811
        %v6874 = vadd.f32 %v6734, %v6812
        %v6875 = vadd.f32 %v6735, %v6814
        %v6876 = vadd.f32 %v6736, %v6816
        %v6877 = vadd.f32 %v6737, %v6817
        %v6878 = vadd.f32 %v6738, %v6819
        %v6879 = vadd.f32 %v6739, %v6821
        %v6880 = vadd.f32 %v6740, %v6822
        %v6881 = vadd.f32 %v6741, %v6824
        %v6882 = vadd.f32 %v6742, %v6826
        %v6883 = vadd.f32 %v6743, %v6827
        %v6884 = vadd.f32 %v6744, %v6829
        %v6885 = vadd.f32 %v6745, %v6831
        %v6886 = vadd.f32 %v6746, %v6832
        %v6887 = vadd.f32 %v6747, %v6834
        %v6888 = vadd.f32 %v6748, %v6836
        %v6889 = vadd.f32 %v6749, %v6837
        %v6890 = vadd.f32 %v6750, %v6839
        %v6891 = vadd.f32 %v6751, %v6841
        %v6892 = vadd.f32 %v6752, %v6842
        %v6893 = vadd.f32 %v6753, %v6844
        %v6894 = vadd.f32 %v6754, %v6846
        %v6895 = vlaneseq
        %v6896 = vshrl.u32 %v6895, 7
        %v6897 = vsub.s32 0, %v6896
        %v6898 = vrot.slane %v778, %v6897
        %v6899 = vmul.f32 %v6144, %v6898
        %v6900 = vmul.f32 %v6145, %v6898
        %v6901 = vmul.f32 %v6146, %v6898
        %v6902 = vmul.f32 %v6148, %v6898
        %v6903 = vmul.f32 %v6149, %v6898
        %v6904 = vmul.f32 %v6150, %v6898
        %v6905 = vmul.f32 %v6152, %v6898
        %v6906 = vmul.f32 %v6153, %v6898
        %v6907 = vmul.f32 %v6154, %v6898
        %v6908 = vmul.f32 %v6156, %v6898
        %v6909 = vmul.f32 %v6157, %v6898
        %v6910 = vmul.f32 %v6158, %v6898
        %v6911 = vmul.f32 %v6160, %v6898
        %v6912 = vmul.f32 %v6161, %v6898
        %v6913 = vmul.f32 %v6162, %v6898
        %v6914 = vmul.f32 %v6164, %v6898
        %v6915 = vmul.f32 %v6165, %v6898
        %v6916 = vmul.f32 %v6166, %v6898
        %v6917 = vmul.f32 %v6168, %v6898
        %v6918 = vmul.f32 %v6169, %v6898
        %v6919 = vmul.f32 %v6170, %v6898
        %v6920 = vmul.f32 %v6172, %v6898
        %v6921 = vmul.f32 %v6173, %v6898
        %v6922 = vmul.f32 %v6174, %v6898
        %v6947 = vrot.slane %v6899, 6
        %v6948 = vrot.slane %v6900, 6
        %v6949 = vsel %vm1588, %v6947, %v6948
        %v6950 = vrot.slane %v6901, 6
        %v6951 = vsel %vm1588, %v6948, %v6950
        %v6952 = vrot.slane %v6902, 6
        %v6953 = vrot.slane %v6903, 6
        %v6954 = vsel %vm1588, %v6952, %v6953
        %v6955 = vrot.slane %v6904, 6
        %v6956 = vsel %vm1588, %v6953, %v6955
        %v6957 = vrot.slane %v6905, 6
        %v6958 = vrot.slane %v6906, 6
        %v6959 = vsel %vm1588, %v6957, %v6958
        %v6960 = vrot.slane %v6907, 6
        %v6961 = vsel %vm1588, %v6958, %v6960
        %v6962 = vrot.slane %v6908, 6
        %v6963 = vrot.slane %v6909, 6
        %v6964 = vsel %vm1588, %v6962, %v6963
        %v6965 = vrot.slane %v6910, 6
        %v6966 = vsel %vm1588, %v6963, %v6965
        %v6967 = vrot.slane %v6911, 6
        %v6968 = vrot.slane %v6912, 6
        %v6969 = vsel %vm1588, %v6967, %v6968
        %v6970 = vrot.slane %v6913, 6
        %v6971 = vsel %vm1588, %v6968, %v6970
        %v6972 = vrot.slane %v6914, 6
        %v6973 = vrot.slane %v6915, 6
        %v6974 = vsel %vm1588, %v6972, %v6973
        %v6975 = vrot.slane %v6916, 6
        %v6976 = vsel %vm1588, %v6973, %v6975
        %v6977 = vrot.slane %v6917, 6
        %v6978 = vrot.slane %v6918, 6
        %v6979 = vsel %vm1588, %v6977, %v6978
        %v6980 = vrot.slane %v6919, 6
        %v6981 = vsel %vm1588, %v6978, %v6980
        %v6982 = vrot.slane %v6920, 6
        %v6983 = vrot.slane %v6921, 6
        %v6984 = vsel %vm1588, %v6982, %v6983
        %v6985 = vrot.slane %v6922, 6
        %v6986 = vsel %vm1588, %v6983, %v6985
        %v7011 = vadd.f32 %v6871, %v6947
        %v7012 = vadd.f32 %v6872, %v6949
        %v7013 = vadd.f32 %v6873, %v6951
        %v7014 = vadd.f32 %v6874, %v6952
        %v7015 = vadd.f32 %v6875, %v6954
        %v7016 = vadd.f32 %v6876, %v6956
        %v7017 = vadd.f32 %v6877, %v6957
        %v7018 = vadd.f32 %v6878, %v6959
        %v7019 = vadd.f32 %v6879, %v6961
        %v7020 = vadd.f32 %v6880, %v6962
        %v7021 = vadd.f32 %v6881, %v6964
        %v7022 = vadd.f32 %v6882, %v6966
        %v7023 = vadd.f32 %v6883, %v6967
        %v7024 = vadd.f32 %v6884, %v6969
        %v7025 = vadd.f32 %v6885, %v6971
        %v7026 = vadd.f32 %v6886, %v6972
        %v7027 = vadd.f32 %v6887, %v6974
        %v7028 = vadd.f32 %v6888, %v6976
        %v7029 = vadd.f32 %v6889, %v6977
        %v7030 = vadd.f32 %v6890, %v6979
        %v7031 = vadd.f32 %v6891, %v6981
        %v7032 = vadd.f32 %v6892, %v6982
        %v7033 = vadd.f32 %v6893, %v6984
        %v7034 = vadd.f32 %v6894, %v6986
        %v7059 = vrot.slane %v7011, 5
        %v7060 = vrot.slane %v7012, 5
        %v7061 = vsel %vm1447, %v7059, %v7060
        %v7062 = vrot.slane %v7013, 5
        %v7063 = vsel %vm1447, %v7060, %v7062
        %v7064 = vrot.slane %v7014, 5
        %v7065 = vrot.slane %v7015, 5
        %v7066 = vsel %vm1447, %v7064, %v7065
        %v7067 = vrot.slane %v7016, 5
        %v7068 = vsel %vm1447, %v7065, %v7067
        %v7069 = vrot.slane %v7017, 5
        %v7070 = vrot.slane %v7018, 5
        %v7071 = vsel %vm1447, %v7069, %v7070
        %v7072 = vrot.slane %v7019, 5
        %v7073 = vsel %vm1447, %v7070, %v7072
        %v7074 = vrot.slane %v7020, 5
        %v7075 = vrot.slane %v7021, 5
        %v7076 = vsel %vm1447, %v7074, %v7075
        %v7077 = vrot.slane %v7022, 5
        %v7078 = vsel %vm1447, %v7075, %v7077
        %v7079 = vrot.slane %v7023, 5
        %v7080 = vrot.slane %v7024, 5
        %v7081 = vsel %vm1447, %v7079, %v7080
        %v7082 = vrot.slane %v7025, 5
        %v7083 = vsel %vm1447, %v7080, %v7082
        %v7084 = vrot.slane %v7026, 5
        %v7085 = vrot.slane %v7027, 5
        %v7086 = vsel %vm1447, %v7084, %v7085
        %v7087 = vrot.slane %v7028, 5
        %v7088 = vsel %vm1447, %v7085, %v7087
        %v7089 = vrot.slane %v7029, 5
        %v7090 = vrot.slane %v7030, 5
        %v7091 = vsel %vm1447, %v7089, %v7090
        %v7092 = vrot.slane %v7031, 5
        %v7093 = vsel %vm1447, %v7090, %v7092
        %v7094 = vrot.slane %v7032, 5
        %v7095 = vrot.slane %v7033, 5
        %v7096 = vsel %vm1447, %v7094, %v7095
        %v7097 = vrot.slane %v7034, 5
        %v7098 = vsel %vm1447, %v7095, %v7097
        %v7115 = vpack.c.bf16 %v7063, %v7061
        %v7116 = vpack.c.bf16 %v7068, %v7066
        %v7117 = vpack.c.bf16 %v7073, %v7071
        %v7118 = vpack.c.bf16 %v7078, %v7076
        %v7119 = vpack.c.bf16 %v7083, %v7081
        %v7120 = vpack.c.bf16 %v7088, %v7086
        %v7121 = vpack.c.bf16 %v7093, %v7091
        %v7122 = vpack.c.bf16 %v7098, %v7096
        %v7123 = vld [vmem:[%s5] sm:$0xf]
        %v7124 = vld [vmem:[%s5 + $0x4] sm:$0xf]
        %v7125 = vld [vmem:[%s5 + $0x8] sm:$0xf]
        %v7126 = vld [vmem:[%s5 + $0xc] sm:$0xf]
        %v7131 = vunpack.c.l.b16 %v7123
        %v7132 = vunpack.c.l.b16 %v7124
        %v7133 = vunpack.c.l.b16 %v7125
        %v7134 = vunpack.c.l.b16 %v7126
        %v7135 = vpack.c.b16 %v7132, %v7131
        %v7136 = vpack.c.b16 %v7134, %v7133
        %v7140 = vsel %vm682, %v7115, 0
        %v7143 = vsel %vm682, %v7116, 0
        %v7146 = vsel %vm682, %v7117, 0
        %v7149 = vsel %vm682, %v7118, 0
        %v7152 = vsel %vm682, %v7119, 0
        %v7155 = vsel %vm682, %v7120, 0
        %v7158 = vsel %vm682, %v7121, 0
        %v7161 = vsel %vm682, %v7122, 0
        %7163 = vmatprep.subr.bf16.mxu0 0
        %7164 = vmatpush1.bf16.msra.mxu0 %v7135
        %7165 = vmatprep.subr.bf16.mxu0 0
        %7166 = vmatpush1.bf16.msra.mxu0 %v7136
        %7167 = vmatprep.subr.bf16.mxu0 0
        %7168 = vmatpush1.bf16.msra.mxu0 0
        %7169 = vmatprep.subr.bf16.mxu0 0
        %7170 = vmatpush1.bf16.msra.mxu0 0
        %7171 = vmatprep.subr.bf16.mxu0 0
        %7172 = vmatpush1.bf16.msra.mxu0 0
        %7173 = vmatprep.subr.bf16.mxu0 0
        %7174 = vmatpush1.bf16.msra.mxu0 0
        %7175 = vmatprep.subr.bf16.mxu0 0
        %7176 = vmatpush1.bf16.msra.mxu0 0
        %7177 = vmatprep.subr.bf16.mxu0 0
        %7178 = vmatpush1.bf16.msra.mxu0 0
        %7179 = vmatprep.subr.bf16.mxu0 0
        %7180 = vmatpush1.bf16.msra.mxu0 0
        %7181 = vmatprep.subr.bf16.mxu0 0
        %7182 = vmatpush1.bf16.msra.mxu0 0
        %7183 = vmatprep.subr.bf16.mxu0 0
        %7184 = vmatpush1.bf16.msra.mxu0 0
        %7185 = vmatprep.subr.bf16.mxu0 0
        %7186 = vmatpush1.bf16.msra.mxu0 0
        %7187 = vmatprep.subr.bf16.mxu0 0
        %7188 = vmatpush1.bf16.msra.mxu0 0
        %7189 = vmatprep.subr.bf16.mxu0 0
        %7190 = vmatpush1.bf16.msra.mxu0 0
        %7191 = vmatprep.subr.bf16.mxu0 0
        %7192 = vmatpush1.bf16.msra.mxu0 0
        %7193 = vmatprep.subr.bf16.mxu0 0
        %7194 = vmatpush1.bf16.msra.mxu0 0
        %7195 = vmatprep.mubr.bf16.mxu0 0
        %7196 = vmatmul.mubr.bf16.gmra.mrb[0].mxu0 %v7140
        %v7197 = vpop.f32.mrb[0].mxu0
        %v7198 = vadd.f32 0.0, %v7197
        %v7199 = vpop.f32.mrb[0].mxu0
        %v7200 = vpop.f32.mrb[0].mxu0
        %v7201 = vadd.f32 0.0, %v7200
        %v7202 = vpop.f32.mrb[0].mxu0
        %7203 = vmatprep.mubr.bf16.mxu0 0
        %7204 = vmatmul.mubr.bf16.gmra.mrb[0].mxu0 %v7143
        %v7205 = vpop.f32.mrb[0].mxu0
        %v7206 = vadd.f32 0.0, %v7205
        %v7207 = vpop.f32.mrb[0].mxu0
        %v7208 = vpop.f32.mrb[0].mxu0
        %v7209 = vadd.f32 0.0, %v7208
        %v7210 = vpop.f32.mrb[0].mxu0
        %7211 = vmatprep.mubr.bf16.mxu0 0
        %7212 = vmatmul.mubr.bf16.gmra.mrb[0].mxu0 %v7146
        %v7213 = vpop.f32.mrb[0].mxu0
        %v7214 = vadd.f32 0.0, %v7213
        %v7215 = vpop.f32.mrb[0].mxu0
        %v7216 = vpop.f32.mrb[0].mxu0
        %v7217 = vadd.f32 0.0, %v7216
        %v7218 = vpop.f32.mrb[0].mxu0
        %7219 = vmatprep.mubr.bf16.mxu0 0
        %7220 = vmatmul.mubr.bf16.gmra.mrb[0].mxu0 %v7149
        %v7221 = vpop.f32.mrb[0].mxu0
        %v7222 = vadd.f32 0.0, %v7221
        %v7223 = vpop.f32.mrb[0].mxu0
        %v7224 = vpop.f32.mrb[0].mxu0
        %v7225 = vadd.f32 0.0, %v7224
        %v7226 = vpop.f32.mrb[0].mxu0
        %7227 = vmatprep.mubr.bf16.mxu0 0
        %7228 = vmatmul.mubr.bf16.gmra.mrb[0].mxu0 %v7152
        %v7229 = vpop.f32.mrb[0].mxu0
        %v7230 = vadd.f32 0.0, %v7229
        %v7231 = vpop.f32.mrb[0].mxu0
        %v7232 = vpop.f32.mrb[0].mxu0
        %v7233 = vadd.f32 0.0, %v7232
        %v7234 = vpop.f32.mrb[0].mxu0
        %7235 = vmatprep.mubr.bf16.mxu0 0
        %7236 = vmatmul.mubr.bf16.gmra.mrb[0].mxu0 %v7155
        %v7237 = vpop.f32.mrb[0].mxu0
        %v7238 = vadd.f32 0.0, %v7237
        %v7239 = vpop.f32.mrb[0].mxu0
        %v7240 = vpop.f32.mrb[0].mxu0
        %v7241 = vadd.f32 0.0, %v7240
        %v7242 = vpop.f32.mrb[0].mxu0
        %7243 = vmatprep.mubr.bf16.mxu0 0
        %7244 = vmatmul.mubr.bf16.gmra.mrb[0].mxu0 %v7158
        %v7245 = vpop.f32.mrb[0].mxu0
        %v7246 = vadd.f32 0.0, %v7245
        %v7247 = vpop.f32.mrb[0].mxu0
        %v7248 = vpop.f32.mrb[0].mxu0
        %v7249 = vadd.f32 0.0, %v7248
        %v7250 = vpop.f32.mrb[0].mxu0
        %7251 = vmatprep.mubr.bf16.mxu0 0
        %7252 = vmatmul.mubr.bf16.gmra.mrb[0].mxu0 %v7161
        %v7253 = vpop.f32.mrb[0].mxu0
        %v7254 = vadd.f32 0.0, %v7253
        %v7255 = vpop.f32.mrb[0].mxu0
        %v7256 = vpop.f32.mrb[0].mxu0
        %v7257 = vadd.f32 0.0, %v7256
        %v7258 = vpop.f32.mrb[0].mxu0
        %7259 = vdwg.mxu0
        %7260 = vst.msk [vmem:[%s248] sm:$0xff] %vm362, %v7198
        %7261 = vst.msk [vmem:[%s248 + $0x8] sm:$0xff] %vm362, %v7201
        %7262 = vst.msk [vmem:[%s248 + $0x10] sm:$0xff] %vm362, %v7206
        %7263 = vst.msk [vmem:[%s248 + $0x18] sm:$0xff] %vm362, %v7209
        %7264 = vst.msk [vmem:[%s248 + $0x20] sm:$0xff] %vm362, %v7214
        %7265 = vst.msk [vmem:[%s248 + $0x28] sm:$0xff] %vm362, %v7217
        %7266 = vst.msk [vmem:[%s248 + $0x30] sm:$0xff] %vm362, %v7222
        %7267 = vst.msk [vmem:[%s248 + $0x38] sm:$0xff] %vm362, %v7225
        %7268 = vst.msk [vmem:[%s248 + $0x40] sm:$0xff] %vm362, %v7230
        %7269 = vst.msk [vmem:[%s248 + $0x48] sm:$0xff] %vm362, %v7233
        %7270 = vst.msk [vmem:[%s248 + $0x50] sm:$0xff] %vm362, %v7238
        %7271 = vst.msk [vmem:[%s248 + $0x58] sm:$0xff] %vm362, %v7241
        %7272 = vst.msk [vmem:[%s248 + $0x60] sm:$0xff] %vm362, %v7246
        %7273 = vst.msk [vmem:[%s248 + $0x68] sm:$0xff] %vm362, %v7249
        %7274 = vst.msk [vmem:[%s248 + $0x70] sm:$0xff] %vm362, %v7254
        %7275 = vst.msk [vmem:[%s248 + $0x78] sm:$0xff] %vm362, %v7257
        %s7276 = sand.u32 %s163, 1
        %s7277 = scalar_lea.sflag [#allocation6], %s7276
        %s7278 = sand.u32 %s163, 1
        %s7279 = smul.addr %s7278, 128
        %s7280 = scalar_lea.vmem [#allocation5], %s7279
        // Predicated region
        $region53: #{sepconv.1} parent=43 // pred_check
          %p7281 = pneg %p173
        $region54: #{sepconv.1} parent=43 // pred_check_branch
          %7283 = sbr.rel (%p7281) target = $region56
        $region55: #{sepconv.1} parent=43 // pred_region
          %s7284 = smul.u32 8, %s24
          %s7286 = ssub.s32 2048, 2048
          %7287 = vsyncadd %s7277, %s7286
          %s7288 = smul.addr %s7284, 2
          %s7289 = smul.addr %s7288, 128
          %s7290 = scalar_lea.hbm %s6, %s7289
          %s7291 = sshll.u32 %s7280, 4
          %s7292 = int_to_ptr.vmem [resolvable:$true] %s7291
          %7297 = dma.vmem_to_hbm [thread:$0]  %s7292, 2048, %s7290, %s7277, 128, 128, 8
        $region56: #{sepconv.1} parent=43 // pred_fallthru
          _
      $region44: #{sepconv.1} parent=5 // pred_fallthru
        _
      %p7298 = scmp.le.s32.totalorder 2, %s19
      // Predicated region
      $region57: #{sepconv.1} parent=5 // pred_check
        %p7299 = pneg %p7298
      $region58: #{sepconv.1} parent=5 // pred_check_branch
        %7301 = sbr.rel (%p7299) target = $region60
      $region59: #{sepconv.1} parent=5 // pred_region
        %s7302 = ssub.s32 %s19, 2
        // Predicated region
        $region61: #{sepconv.1} parent=59 // pred_check
          %p7303 = pneg %p179
        $region62: #{sepconv.1} parent=59 // pred_check_branch
          %7305 = sbr.rel (%p7303) target = $region64
        $region63: #{sepconv.1} parent=59 // pred_region
          %s7306 = sand.u32 %s164, 1
          %s7307 = scalar_lea.sflag [#allocation6], %s7306
          %s7308 = sand.u32 %s164, 1
          %s7309 = smul.addr %s7308, 128
          %s7310 = scalar_lea.vmem [#allocation5], %s7309
          %7311 = dma.done %s7307, 2048
        $region64: #{sepconv.1} parent=59 // pred_fallthru
          _
      $region60: #{sepconv.1} parent=5 // pred_fallthru
        _
    $region6: #{sepconv.1} parent=1 // loop_footer
      %s23 = sadd.s32 1, %s19
    $region7: #{sepconv.1} parent=1 // loop_footer_branch
      %18 = sbr.rel target = $region3
    $region8: #{sepconv.1} parent=1 // loop_exit
      _
    %7312 = vsyncpa [#allocation6], 1
    %s7313 = scalar_lea.sflag [#allocation6], 1
    %7314 = vsyncpa %s7313, 1

</llo_original>
